<compile_context>
chip_gen: v5e
topology: v5e:2x2
jax: 0.10.0
libtpu: 0.0.40
codegen_flags: <defaults>
</compile_context>

<pallas_src>
import math
from functools import partial

import jax
import jax.numpy as jnp
from jax.experimental import pallas as pl
from jax.experimental.pallas import tpu as pltpu

_LN_EPS = 1e-12                  # matches nn.LayerNorm(d_model, eps=1e-12)


# --------------------------------------------------------------------------------------
# generation-aware budgets (v5e/v6e: 128 MiB VMEM, v7x: 64 MiB)
# --------------------------------------------------------------------------------------
def _vmem_capacity_bytes():
    """Physical VMEM per core; falls back to the smallest generation (v7x) if unknown."""
    try:
        info = pltpu.get_tpu_info()
        for name in ("vmem_capacity_bytes", "vmem_bytes", "vmem_size_bytes"):
            v = getattr(info, name, None)
            if v:
                return int(v)
    except Exception:
        pass
    return 64 * 1024 * 1024


_VMEM_CAP = _vmem_capacity_bytes()
# v7x (64 MiB physical) -> 48 MiB scoped limit; v5e/v6e (128 MiB) -> 96 MiB scoped limit.
_VMEM_LIMIT = min((_VMEM_CAP * 3) // 4, 112 * 1024 * 1024)
# 512-row tiles on the 128 MiB generations (closer to HBM roofline), 256 on v7x.
_ROW_TILE_PREF = 512 if _VMEM_CAP >= 96 * 1024 * 1024 else 256


def _compiler_params(semantics):
    return pltpu.CompilerParams(dimension_semantics=semantics,
                                vmem_limit_bytes=_VMEM_LIMIT)


def _const_spec(shape):
    """BlockSpec for constant-index blocks (weights / biases / LN params):
    single-buffered so they don't pay 2x VMEM for pipelining."""
    idx = lambda *_: (0,) * len(shape)
    try:
        return pl.BlockSpec(shape, idx, pipeline_mode=pl.Buffered(1))
    except Exception:                      # older jax without pipeline_mode
        return pl.BlockSpec(shape, idx)


def _row_tile(rows):
    return rows if rows <= _ROW_TILE_PREF else _ROW_TILE_PREF


def _pick_tile(n, candidates):
    """Largest candidate tile that exactly divides n (contraction-safe); else n."""
    for c in candidates:
        if c <= n and n % c == 0:
            return c
    return n


def _vocab_tile(v):
    if v <= 2048:
        return v
    for c in (2048, 1024, 512):
        if v % c == 0:
            return c
    return 2048        # partial final block: vocab is an output dim, padding is masked


def _heads_per_group(nhead, head_dim):
    """Smallest whole-head group whose combined width is lane-dense (multiple of 128)."""
    for g in range(1, nhead + 1):
        if nhead % g == 0 and (g * head_dim) % 128 == 0:
            return g
    return nhead


def _kv_tile_size(seq, pref=512):
    if seq <= pref:
        return seq
    t = pref
    while t > 8 and seq % t != 0:
        t //= 2
    return t


def _layer_norm(x, w, b):
    mu = jnp.mean(x, axis=-1, keepdims=True)
    var = jnp.mean((x - mu) ** 2, axis=-1, keepdims=True)
    return (x - mu) * jax.lax.rsqrt(var + _LN_EPS) * w + b


# --------------------------------------------------------------------------------------
# kernel 1: LayerNorm1 + fused QKV projection (row-tiled)
# --------------------------------------------------------------------------------------
def _ln_qkv_kernel(h_ref, lnw_ref, lnb_ref, w_ref, b_ref, qkv_ref, hn_ref):
    hn = _layer_norm(h_ref[...], lnw_ref[...], lnb_ref[...])             # f32
    hn_ref[...] = hn                                                     # residual base
    qkv = jnp.dot(hn.astype(jnp.bfloat16), w_ref[...],
                  preferred_element_type=jnp.float32) + b_ref[...]
    qkv_ref[...] = qkv.astype(qkv_ref.dtype)                             # bf16 writeback


def ln_qkv(h2d, lnw, lnb, w, b):
    rows, d = h2d.shape
    n = w.shape[1]
    tm = _row_tile(rows)
    return pl.pallas_call(
        _ln_qkv_kernel,
        out_shape=(jax.ShapeDtypeStruct((rows, n), jnp.bfloat16),   # qkv: bf16 halves HBM traffic
                   jax.ShapeDtypeStruct((rows, d), jnp.float32)),   # LN1 output (residual base)
        grid=(pl.cdiv(rows, tm),),
        in_specs=[
            pl.BlockSpec((tm, d), lambda i: (i, 0)),                # activation row tile
            _const_spec((1, d)), _const_spec((1, d)),               # LN1 weight / bias
            _const_spec((d, n)), _const_spec((1, n)),               # (in, out) bf16 QKV weight, bias
        ],
        out_specs=(pl.BlockSpec((tm, n), lambda i: (i, 0)),
                   pl.BlockSpec((tm, d), lambda i: (i, 0))),
        compiler_params=_compiler_params(("parallel",)),
    )(h2d, lnw, lnb, w, b)


# --------------------------------------------------------------------------------------
# kernel 2: flash-style causal attention reading the 2-D qkv tensor directly
#   grid = (batch, head_groups, kv_tiles)   kv axis is the online-softmax accumulation
# --------------------------------------------------------------------------------------
def _attention_kernel(q_ref, k_ref, v_ref, o_ref, m_ref, l_ref, acc_ref,
                      *, heads, head_dim, kv_tile, seq):
    kv = pl.program_id(2)

    @pl.when(kv == 0)
    def _():
        m_ref[...] = jnp.full_like(m_ref, -jnp.inf)
        l_ref[...] = jnp.zeros_like(l_ref)
        acc_ref[...] = jnp.zeros_like(acc_ref)

    # causal mask with global kv positions (finite fill -> no -inf arithmetic NaNs)
    q_pos = jax.lax.broadcasted_iota(jnp.int32, (seq, kv_tile), 0)
    k_pos = jax.lax.broadcasted_iota(jnp.int32, (seq, kv_tile), 1) + kv * kv_tile
    causal = k_pos <= q_pos

    q_all = q_ref[...]                      # (seq, heads*head_dim) bf16; scale folded into Wq
    k_all = k_ref[...]                      # (kv_tile, heads*head_dim) bf16
    v_all = v_ref[...]

    # static unroll over the heads of this lane-dense group: only one head's
    # (seq, kv_tile) score block is live at a time.
    for h in range(heads):
        sl = slice(h * head_dim, (h + 1) * head_dim)
        s = jax.lax.dot_general(q_all[:, sl], k_all[:, sl],
                                (((1,), (1,)), ((), ())),
                                preferred_element_type=jnp.float32)    # (seq, kv_tile)
        s = jnp.where(causal, s, -1e30)

        m_prev = m_ref[h]                                              # (seq, 1)
        m_new = jnp.maximum(m_prev, jnp.max(s, axis=-1, keepdims=True))
        alpha = jnp.exp(m_prev - m_new)
        p = jnp.exp(s - m_new)
        l_ref[h] = alpha * l_ref[h] + jnp.sum(p, axis=-1, keepdims=True)
        acc_ref[:, sl] = alpha * acc_ref[:, sl] + jnp.dot(
            p.astype(v_all.dtype), v_all[:, sl], preferred_element_type=jnp.float32)
        m_ref[h] = m_new

    @pl.when(kv == pl.num_programs(2) - 1)
    def _():
        for h in range(heads):
            sl = slice(h * head_dim, (h + 1) * head_dim)
            # exact division (not approx reciprocal) for parity with the reference softmax
            o_ref[:, sl] = (acc_ref[:, sl] / l_ref[h]).astype(o_ref.dtype)


def attention(qkv, *, batch, seq, nhead, d_model):
    # NOTE: assumes seq is a multiple of 8 (sublane) — true for the demo shapes.
    rows = batch * seq
    head_dim = d_model // nhead
    g = _heads_per_group(nhead, head_dim)          # lane-dense head group
    ghd = g * head_dim
    n_groups = nhead // g
    tk = _kv_tile_size(seq)
    n_kv = seq // tk

    # qkv columns: [0,D) = Q, [D,2D) = K, [2D,3D) = V; in units of ghd a group hg lives at
    # column-block hg / n_groups+hg / 2*n_groups+hg respectively.
    q_spec = pl.BlockSpec((seq, ghd), lambda b, hg, kv: (b, hg))
    k_spec = pl.BlockSpec((tk, ghd), lambda b, hg, kv: (b * n_kv + kv, n_groups + hg))
    v_spec = pl.BlockSpec((tk, ghd), lambda b, hg, kv: (b * n_kv + kv, 2 * n_groups + hg))

    return pl.pallas_call(
        partial(_attention_kernel, heads=g, head_dim=head_dim, kv_tile=tk, seq=seq),
        out_shape=jax.ShapeDtypeStruct((rows, d_model), jnp.bfloat16),
        grid=(batch, n_groups, n_kv),
        in_specs=[q_spec, k_spec, v_spec],
        out_specs=pl.BlockSpec((seq, ghd), lambda b, hg, kv: (b, hg)),   # lane-dense, resident over kv
        scratch_shapes=[
            pltpu.VMEM((g, seq, 1), jnp.float32),    # running max m
            pltpu.VMEM((g, seq, 1), jnp.float32),    # running sum l
            pltpu.VMEM((seq, ghd), jnp.float32),     # f32 output accumulator
        ],
        compiler_params=_compiler_params(("parallel", "parallel", "arbitrary")),
    )(qkv, qkv, qkv)


# --------------------------------------------------------------------------------------
# kernel 3: out_proj + residual + LayerNorm2 + FFN + residual
#   grid = (row_tiles, ff_chunks): w1/w2 are streamed per ff-chunk, output accumulates
# --------------------------------------------------------------------------------------
def _out_ffn_kernel(attn_ref, hn_ref, wo_ref, bo_ref, ln2w_ref, ln2b_ref,
                    w1_ref, b1_ref, w2_ref, b2_ref, o_ref, h2_ref):
    @pl.when(pl.program_id(1) == 0)
    def _():
        x = jnp.dot(attn_ref[...], wo_ref[...],
                    preferred_element_type=jnp.float32) + bo_ref[...]
        h1 = x + hn_ref[...]                              # residual onto LN1 output (matches reference)
        h2 = _layer_norm(h1, ln2w_ref[...], ln2b_ref[...])
        h2_ref[...] = h2
        o_ref[...] = h2 + b2_ref[...]                     # residual onto LN2 output + final bias

    ff = jnp.dot(h2_ref[...].astype(jnp.bfloat16), w1_ref[...],
                 preferred_element_type=jnp.float32) + b1_ref[...]
    ff = jnp.maximum(ff, 0.0)                             # ReLU
    o_ref[...] += jnp.dot(ff.astype(jnp.bfloat16), w2_ref[...],
                          preferred_element_type=jnp.float32)


def out_proj_ffn(attn2d, hn2d, lp):
    rows, d = hn2d.shape
    ffdim = lp['w1'].shape[1]
    tm = _row_tile(rows)
    tf = _pick_tile(ffdim, (2048, 1024, 512, 256, 128))
    n_ff = ffdim // tf

    return pl.pallas_call(
        _out_ffn_kernel,
        out_shape=jax.ShapeDtypeStruct((rows, d), jnp.float32),
        grid=(pl.cdiv(rows, tm), n_ff),
        in_specs=[
            pl.BlockSpec((tm, d), lambda i, j: (i, 0)),   # attention output rows (bf16)
            pl.BlockSpec((tm, d), lambda i, j: (i, 0)),   # LN1 output rows (residual base)
            _const_spec((d, d)), _const_spec((1, d)),     # wo, bo
            _const_spec((1, d)), _const_spec((1, d)),     # ln2 w, b
            pl.BlockSpec((d, tf), lambda i, j: (0, j)),   # streamed w1 column chunk
            pl.BlockSpec((1, tf), lambda i, j: (0, j)),   # b1 chunk
            pl.BlockSpec((tf, d), lambda i, j: (j, 0)),   # streamed w2 row chunk
            _const_spec((1, d)),                          # b2
        ],
        out_specs=pl.BlockSpec((tm, d), lambda i, j: (i, 0)),   # resident over the ff axis
        scratch_shapes=[pltpu.VMEM((tm, d), jnp.float32)],      # LN2 output reused across ff chunks
        compiler_params=_compiler_params(("parallel", "arbitrary")),
    )(attn2d, hn2d, lp['wo'], lp['bo'], lp['ln2w'], lp['ln2b'],
      lp['w1'], lp['b1'], lp['w2'], lp['b2'])


# --------------------------------------------------------------------------------------
# kernel 4: LM head, tiled over (row tiles, vocab tiles)
# --------------------------------------------------------------------------------------
def _lm_head_kernel(x_ref, w_ref, b_ref, o_ref):
    o_ref[...] = jnp.dot(x_ref[...].astype(jnp.bfloat16), w_ref[...],
                         preferred_element_type=jnp.float32) + b_ref[...]


def lm_head(h2d, w, b):
    rows, d = h2d.shape
    v = w.shape[1]
    tm = _row_tile(rows)
    tv = _vocab_tile(v)                                   # up to 2048-wide vocab tiles
    return pl.pallas_call(
        _lm_head_kernel,
        out_shape=jax.ShapeDtypeStruct((rows, v), jnp.float32),
        grid=(pl.cdiv(rows, tm), pl.cdiv(v, tv)),
        in_specs=[
            pl.BlockSpec((tm, d), lambda i, j: (i, 0)),   # activations
            pl.BlockSpec((d, tv), lambda i, j: (0, j)),   # streamed weight tile
            pl.BlockSpec((1, tv), lambda i, j: (0, j)),   # bias tile
        ],
        out_specs=pl.BlockSpec((tm, tv), lambda i, j: (i, j)),
        compiler_params=_compiler_params(("parallel", "parallel")),
    )(h2d, w, b)


# --------------------------------------------------------------------------------------
# model wrapper
# --------------------------------------------------------------------------------------
def transformer_layer(h2d, lp, *, batch, seq, nhead):
    qkv, hn = ln_qkv(h2d, lp['ln1w'], lp['ln1b'], lp['w_qkv'], lp['b_qkv'])
    attn2d = attention(qkv, batch=batch, seq=seq, nhead=nhead, d_model=h2d.shape[1])
    return out_proj_ffn(attn2d, hn, lp)


def transformer_lm_forward(tokens, params, nhead):
    batch, seq = tokens.shape
    d = params['tok_emb'].shape[1]
    # TODO(synk): nn.Embedding vocab gather stays plain JAX (no clean rectangular BlockSpec).
    h = jnp.take(params['tok_emb'], tokens, axis=0)             # (B, S, D)
    h = h + params['pos_emb'][:seq][None, :, :]                 # position embeddings
    # dropout == identity (eval semantics)
    h2d = h.reshape(batch * seq, d).astype(jnp.float32)         # 2-D activations end-to-end
    for lp in params['layers']:
        h2d = transformer_layer(h2d, lp, batch=batch, seq=seq, nhead=nhead)
    logits = lm_head(h2d, params['head_w'], params['head_b'])   # (B*S, vocab)
    logits = logits.reshape(batch, seq, -1)
    return logits, (jnp.zeros((d,), jnp.float32),)


def make_params(key, vocab, d, nhead, nlayers, seq_len, ff):
    std = 0.02
    q_scale = 1.0 / math.sqrt(d // nhead)
    keys = iter(jax.random.split(key, 4 + 8 * nlayers))
    f32 = lambda k, shp: (std * jax.random.normal(k, shp)).astype(jnp.float32)
    params = {
        'tok_emb': f32(next(keys), (vocab, d)),
        'pos_emb': f32(next(keys), (seq_len, d)),
        # All matmul weights stored pre-transposed to (in, out) and bf16 for the MXU.
        'head_w': f32(next(keys), (d, vocab)).astype(jnp.bfloat16),
        'head_b': jnp.zeros((1, vocab), jnp.float32),
        'layers': [],
    }
    for _ in range(nlayers):
        # fold the 1/sqrt(head_dim) attention scale into the Q columns of the combined
        # in-projection (weight and bias) so the attention kernel never multiplies by it.
        w_qkv = f32(next(keys), (d, 3 * d)).at[:, :d].multiply(q_scale)
        b_qkv = jnp.zeros((1, 3 * d), jnp.float32).at[:, :d].multiply(q_scale)
        lp = {
            'ln1w': f32(next(keys), (1, d)), 'ln1b': jnp.zeros((1, d), jnp.float32),
            'ln2w': f32(next(keys), (1, d)), 'ln2b': jnp.zeros((1, d), jnp.float32),
            'w_qkv': w_qkv.astype(jnp.bfloat16),            # combined in_proj (q|k|v)
            'b_qkv': b_qkv,
            'wo': f32(next(keys), (d, d)).astype(jnp.bfloat16),
            'bo': jnp.zeros((1, d), jnp.float32),
            'w1': f32(next(keys), (d, ff)).astype(jnp.bfloat16),
            'b1': jnp.zeros((1, ff), jnp.float32),
            'w2': f32(next(keys), (ff, d)).astype(jnp.bfloat16),
            'b2': jnp.zeros((1, d), jnp.float32),
        }
        params['layers'].append(lp)
    return params


if __name__ == "__main__":
    # small shapes, but chosen lane-dense: head_group width = 4*32 = 128 lanes.
    VOCAB, D_MODEL, NHEAD, NLAYERS, SEQ, FF = 512, 128, 4, 2, 16, 256
    BATCH = 2

    key = jax.random.PRNGKey(0)
    pkey, dkey = jax.random.split(key)
    params = make_params(pkey, VOCAB, D_MODEL, NHEAD, NLAYERS, SEQ, FF)
    tokens = jax.random.randint(dkey, (BATCH, SEQ), 0, VOCAB, dtype=jnp.int32)

    fwd = jax.jit(partial(transformer_lm_forward, nhead=NHEAD))
    logits, (hidden,) = fwd(tokens, params)
    jax.block_until_ready(logits)

    assert logits.shape == (BATCH, SEQ, VOCAB), logits.shape
    assert hidden.shape == (D_MODEL,), hidden.shape
    assert bool(jnp.all(jnp.isfinite(logits)))
    print("KERNEL_OK")
</pallas_src>

<mosaic_0001>
module attributes {stable_mosaic.version = 11 : i64} {
  func.func @_ln_qkv_kernel(%arg0: i32, %arg1: memref<32x128xf32, #tpu.memory_space<vmem>>, %arg2: memref<1x128xf32, #tpu.memory_space<vmem>>, %arg3: memref<1x128xf32, #tpu.memory_space<vmem>>, %arg4: memref<128x384xbf16, #tpu.memory_space<vmem>>, %arg5: memref<1x384xf32, #tpu.memory_space<vmem>>, %arg6: memref<32x384xbf16, #tpu.memory_space<vmem>>, %arg7: memref<32x128xf32, #tpu.memory_space<vmem>>) attributes {dimension_semantics = [#tpu.dimension_semantics<parallel>], iteration_bounds = array<i64: 1>, scalar_prefetch = 0 : i64, scratch_operands = 0 : i64, tpu.core_type = #tpu.core_type<tc>, window_params = [{transform_indices = @transform_0, window_bounds = array<i64: 32, 128>}, {pipeline_mode = #tpu.pipeline_mode<synchronous>, transform_indices = @transform_1, window_bounds = array<i64: 1, 128>}, {pipeline_mode = #tpu.pipeline_mode<synchronous>, transform_indices = @transform_2, window_bounds = array<i64: 1, 128>}, {pipeline_mode = #tpu.pipeline_mode<synchronous>, transform_indices = @transform_3, window_bounds = array<i64: 128, 384>}, {pipeline_mode = #tpu.pipeline_mode<synchronous>, transform_indices = @transform_4, window_bounds = array<i64: 1, 384>}, {transform_indices = @transform_5, window_bounds = array<i64: 32, 384>}, {transform_indices = @transform_6, window_bounds = array<i64: 32, 128>}]} {
    %c0 = arith.constant 0 : index
    %c0_0 = arith.constant 0 : index
    %0 = vector.load %arg1[%c0, %c0_0] : memref<32x128xf32, #tpu.memory_space<vmem>>, vector<32x128xf32>
    %c0_1 = arith.constant 0 : index
    %c0_2 = arith.constant 0 : index
    %1 = vector.load %arg2[%c0_1, %c0_2] : memref<1x128xf32, #tpu.memory_space<vmem>>, vector<1x128xf32>
    %c0_3 = arith.constant 0 : index
    %c0_4 = arith.constant 0 : index
    %2 = vector.load %arg3[%c0_3, %c0_4] : memref<1x128xf32, #tpu.memory_space<vmem>>, vector<1x128xf32>
    %cst = arith.constant dense<0.000000e+00> : vector<32xf32>
    %3 = vector.multi_reduction <add>, %0, %cst [1] : vector<32x128xf32> to vector<32xf32>
    %4 = vector.shape_cast %3 : vector<32xf32> to vector<32x1xf32>
    %cst_5 = arith.constant 1.280000e+02 : f32
    %5 = vector.broadcast %cst_5 : f32 to vector<32x1xf32>
    %6 = arith.divf %4, %5 : vector<32x1xf32>
    %7 = vector.broadcast %6 : vector<32x1xf32> to vector<32x128xf32>
    %8 = arith.subf %0, %7 : vector<32x128xf32>
    %9 = arith.mulf %8, %8 : vector<32x128xf32>
    %cst_6 = arith.constant dense<0.000000e+00> : vector<32xf32>
    %10 = vector.multi_reduction <add>, %9, %cst_6 [1] : vector<32x128xf32> to vector<32xf32>
    %11 = vector.shape_cast %10 : vector<32xf32> to vector<32x1xf32>
    %cst_7 = arith.constant 1.280000e+02 : f32
    %12 = vector.broadcast %cst_7 : f32 to vector<32x1xf32>
    %13 = arith.divf %11, %12 : vector<32x1xf32>
    %14 = vector.broadcast %6 : vector<32x1xf32> to vector<32x128xf32>
    %15 = arith.subf %0, %14 : vector<32x128xf32>
    %cst_8 = arith.constant 9.99999996E-13 : f32
    %16 = vector.broadcast %cst_8 : f32 to vector<32x1xf32>
    %17 = arith.addf %13, %16 : vector<32x1xf32>
    %18 = math.rsqrt %17 : vector<32x1xf32>
    %19 = vector.broadcast %18 : vector<32x1xf32> to vector<32x128xf32>
    %20 = arith.mulf %15, %19 : vector<32x128xf32>
    %21 = vector.broadcast %1 : vector<1x128xf32> to vector<32x128xf32>
    %22 = arith.mulf %20, %21 : vector<32x128xf32>
    %23 = vector.broadcast %2 : vector<1x128xf32> to vector<32x128xf32>
    %24 = arith.addf %22, %23 : vector<32x128xf32>
    %c0_9 = arith.constant 0 : index
    %c0_10 = arith.constant 0 : index
    %25 = vector.load %arg7[%c0_9, %c0_10] : memref<32x128xf32, #tpu.memory_space<vmem>>, vector<32x128xf32>
    tpu.vector_store %arg7[%c0_9, %c0_10], %24 {strides = array<i32>} : memref<32x128xf32, #tpu.memory_space<vmem>>, vector<32x128xf32>,
    %26 = arith.truncf %24 : vector<32x128xf32> to vector<32x128xbf16>
    %c0_11 = arith.constant 0 : index
    %c0_12 = arith.constant 0 : index
    %27 = vector.load %arg4[%c0_11, %c0_12] : memref<128x384xbf16, #tpu.memory_space<vmem>>, vector<128x384xbf16>
    %cst_13 = arith.constant dense<0.000000e+00> : vector<32x384xf32>
    %28 = tpu.matmul %26, %27, %cst_13 {dimension_numbers = #tpu.dot_dimension_numbers<[1], [0], [0], [1], [0, 0, 1, 1], [], []>} : vector<32x128xbf16>, vector<128x384xbf16>, vector<32x384xf32> -> vector<32x384xf32>
    %c0_14 = arith.constant 0 : index
    %c0_15 = arith.constant 0 : index
    %29 = vector.load %arg5[%c0_14, %c0_15] : memref<1x384xf32, #tpu.memory_space<vmem>>, vector<1x384xf32>
    %30 = vector.broadcast %29 : vector<1x384xf32> to vector<32x384xf32>
    %31 = arith.addf %28, %30 : vector<32x384xf32>
    %32 = arith.truncf %31 : vector<32x384xf32> to vector<32x384xbf16>
    %c0_16 = arith.constant 0 : index
    %c0_17 = arith.constant 0 : index
    %33 = vector.load %arg6[%c0_16, %c0_17] : memref<32x384xbf16, #tpu.memory_space<vmem>>, vector<32x384xbf16>
    tpu.vector_store %arg6[%c0_16, %c0_17], %32 {strides = array<i32>} : memref<32x384xbf16, #tpu.memory_space<vmem>>, vector<32x384xbf16>,
    return
  }
  func.func @transform_0(%arg0: i32) -> (i32, i32) {
    %c0_i32 = arith.constant 0 : i32
    %c0_i32_0 = arith.constant 0 : i32
    return %arg0, %c0_i32 : i32, i32
  }
  func.func @transform_1(%arg0: i32) -> (i32, i32) {
    %c0_i32 = arith.constant 0 : i32
    %c0_i32_0 = arith.constant 0 : i32
    %c0_i32_1 = arith.constant 0 : i32
    return %c0_i32, %c0_i32_0 : i32, i32
  }
  func.func @transform_2(%arg0: i32) -> (i32, i32) {
    %c0_i32 = arith.constant 0 : i32
    %c0_i32_0 = arith.constant 0 : i32
    %c0_i32_1 = arith.constant 0 : i32
    return %c0_i32, %c0_i32_0 : i32, i32
  }
  func.func @transform_3(%arg0: i32) -> (i32, i32) {
    %c0_i32 = arith.constant 0 : i32
    %c0_i32_0 = arith.constant 0 : i32
    %c0_i32_1 = arith.constant 0 : i32
    return %c0_i32, %c0_i32_0 : i32, i32
  }
  func.func @transform_4(%arg0: i32) -> (i32, i32) {
    %c0_i32 = arith.constant 0 : i32
    %c0_i32_0 = arith.constant 0 : i32
    %c0_i32_1 = arith.constant 0 : i32
    return %c0_i32, %c0_i32_0 : i32, i32
  }
  func.func @transform_5(%arg0: i32) -> (i32, i32) {
    %c0_i32 = arith.constant 0 : i32
    %c0_i32_0 = arith.constant 0 : i32
    return %arg0, %c0_i32 : i32, i32
  }
  func.func @transform_6(%arg0: i32) -> (i32, i32) {
    %c0_i32 = arith.constant 0 : i32
    %c0_i32_0 = arith.constant 0 : i32
    return %arg0, %c0_i32 : i32, i32
  }
}

module attributes {stable_mosaic.version = 11 : i64} {
  func.func @_out_ffn_kernel(%arg0: i32, %arg1: i32, %arg2: memref<32x128xbf16, #tpu.memory_space<vmem>>, %arg3: memref<32x128xf32, #tpu.memory_space<vmem>>, %arg4: memref<128x128xbf16, #tpu.memory_space<vmem>>, %arg5: memref<1x128xf32, #tpu.memory_space<vmem>>, %arg6: memref<1x128xf32, #tpu.memory_space<vmem>>, %arg7: memref<1x128xf32, #tpu.memory_space<vmem>>, %arg8: memref<128x256xbf16, #tpu.memory_space<vmem>>, %arg9: memref<1x256xf32, #tpu.memory_space<vmem>>, %arg10: memref<256x128xbf16, #tpu.memory_space<vmem>>, %arg11: memref<1x128xf32, #tpu.memory_space<vmem>>, %arg12: memref<32x128xf32, #tpu.memory_space<vmem>>, %arg13: memref<32x128xf32, #tpu.memory_space<vmem>>) attributes {dimension_semantics = [#tpu.dimension_semantics<parallel>, #tpu.dimension_semantics<arbitrary>], iteration_bounds = array<i64: 1, 1>, scalar_prefetch = 0 : i64, scratch_operands = 1 : i64, tpu.core_type = #tpu.core_type<tc>, window_params = [{transform_indices = @transform_0, window_bounds = array<i64: 32, 128>}, {transform_indices = @transform_1, window_bounds = array<i64: 32, 128>}, {pipeline_mode = #tpu.pipeline_mode<synchronous>, transform_indices = @transform_2, window_bounds = array<i64: 128, 128>}, {pipeline_mode = #tpu.pipeline_mode<synchronous>, transform_indices = @transform_3, window_bounds = array<i64: 1, 128>}, {pipeline_mode = #tpu.pipeline_mode<synchronous>, transform_indices = @transform_4, window_bounds = array<i64: 1, 128>}, {pipeline_mode = #tpu.pipeline_mode<synchronous>, transform_indices = @transform_5, window_bounds = array<i64: 1, 128>}, {transform_indices = @transform_6, window_bounds = array<i64: 128, 256>}, {transform_indices = @transform_7, window_bounds = array<i64: 1, 256>}, {transform_indices = @transform_8, window_bounds = array<i64: 256, 128>}, {pipeline_mode = #tpu.pipeline_mode<synchronous>, transform_indices = @transform_9, window_bounds = array<i64: 1, 128>}, {transform_indices = @transform_10, window_bounds = array<i64: 32, 128>}]} {
    %c0_i32 = arith.constant 0 : i32
    %0 = arith.cmpi eq, %arg1, %c0_i32 : i32
    %1 = arith.extui %0 : i1 to i32
    %c0_i32_0 = arith.constant 0 : i32
    %2 = arith.cmpi ne, %1, %c0_i32_0 : i32
    scf.if %2 {
      %c0_14 = arith.constant 0 : index
      %c0_15 = arith.constant 0 : index
      %18 = vector.load %arg2[%c0_14, %c0_15] : memref<32x128xbf16, #tpu.memory_space<vmem>>, vector<32x128xbf16>
      %c0_16 = arith.constant 0 : index
      %c0_17 = arith.constant 0 : index
      %19 = vector.load %arg4[%c0_16, %c0_17] : memref<128x128xbf16, #tpu.memory_space<vmem>>, vector<128x128xbf16>
      %cst_18 = arith.constant dense<0.000000e+00> : vector<32x128xf32>
      %20 = tpu.matmul %18, %19, %cst_18 {dimension_numbers = #tpu.dot_dimension_numbers<[1], [0], [0], [1], [0, 0, 1, 1], [], []>} : vector<32x128xbf16>, vector<128x128xbf16>, vector<32x128xf32> -> vector<32x128xf32>
      %c0_19 = arith.constant 0 : index
      %c0_20 = arith.constant 0 : index
      %21 = vector.load %arg5[%c0_19, %c0_20] : memref<1x128xf32, #tpu.memory_space<vmem>>, vector<1x128xf32>
      %22 = vector.broadcast %21 : vector<1x128xf32> to vector<32x128xf32>
      %23 = arith.addf %20, %22 : vector<32x128xf32>
      %c0_21 = arith.constant 0 : index
      %c0_22 = arith.constant 0 : index
      %24 = vector.load %arg3[%c0_21, %c0_22] : memref<32x128xf32, #tpu.memory_space<vmem>>, vector<32x128xf32>
      %25 = arith.addf %23, %24 : vector<32x128xf32>
      %c0_23 = arith.constant 0 : index
      %c0_24 = arith.constant 0 : index
      %26 = vector.load %arg6[%c0_23, %c0_24] : memref<1x128xf32, #tpu.memory_space<vmem>>, vector<1x128xf32>
      %c0_25 = arith.constant 0 : index
      %c0_26 = arith.constant 0 : index
      %27 = vector.load %arg7[%c0_25, %c0_26] : memref<1x128xf32, #tpu.memory_space<vmem>>, vector<1x128xf32>
      %cst_27 = arith.constant dense<0.000000e+00> : vector<32xf32>
      %28 = vector.multi_reduction <add>, %25, %cst_27 [1] : vector<32x128xf32> to vector<32xf32>
      %29 = vector.shape_cast %28 : vector<32xf32> to vector<32x1xf32>
      %cst_28 = arith.constant 1.280000e+02 : f32
      %30 = vector.broadcast %cst_28 : f32 to vector<32x1xf32>
      %31 = arith.divf %29, %30 : vector<32x1xf32>
      %32 = vector.broadcast %31 : vector<32x1xf32> to vector<32x128xf32>
      %33 = arith.subf %25, %32 : vector<32x128xf32>
      %34 = arith.mulf %33, %33 : vector<32x128xf32>
      %cst_29 = arith.constant dense<0.000000e+00> : vector<32xf32>
      %35 = vector.multi_reduction <add>, %34, %cst_29 [1] : vector<32x128xf32> to vector<32xf32>
      %36 = vector.shape_cast %35 : vector<32xf32> to vector<32x1xf32>
      %cst_30 = arith.constant 1.280000e+02 : f32
      %37 = vector.broadcast %cst_30 : f32 to vector<32x1xf32>
      %38 = arith.divf %36, %37 : vector<32x1xf32>
      %39 = vector.broadcast %31 : vector<32x1xf32> to vector<32x128xf32>
      %40 = arith.subf %25, %39 : vector<32x128xf32>
      %cst_31 = arith.constant 9.99999996E-13 : f32
      %41 = vector.broadcast %cst_31 : f32 to vector<32x1xf32>
      %42 = arith.addf %38, %41 : vector<32x1xf32>
      %43 = math.rsqrt %42 : vector<32x1xf32>
      %44 = vector.broadcast %43 : vector<32x1xf32> to vector<32x128xf32>
      %45 = arith.mulf %40, %44 : vector<32x128xf32>
      %46 = vector.broadcast %26 : vector<1x128xf32> to vector<32x128xf32>
      %47 = arith.mulf %45, %46 : vector<32x128xf32>
      %48 = vector.broadcast %27 : vector<1x128xf32> to vector<32x128xf32>
      %49 = arith.addf %47, %48 : vector<32x128xf32>
      %c0_32 = arith.constant 0 : index
      %c0_33 = arith.constant 0 : index
      %50 = vector.load %arg13[%c0_32, %c0_33] : memref<32x128xf32, #tpu.memory_space<vmem>>, vector<32x128xf32>
      tpu.vector_store %arg13[%c0_32, %c0_33], %49 {strides = array<i32>} : memref<32x128xf32, #tpu.memory_space<vmem>>, vector<32x128xf32>,
      %c0_34 = arith.constant 0 : index
      %c0_35 = arith.constant 0 : index
      %51 = vector.load %arg11[%c0_34, %c0_35] : memref<1x128xf32, #tpu.memory_space<vmem>>, vector<1x128xf32>
      %52 = vector.broadcast %51 : vector<1x128xf32> to vector<32x128xf32>
      %53 = arith.addf %49, %52 : vector<32x128xf32>
      %c0_36 = arith.constant 0 : index
      %c0_37 = arith.constant 0 : index
      %54 = vector.load %arg12[%c0_36, %c0_37] : memref<32x128xf32, #tpu.memory_space<vmem>>, vector<32x128xf32>
      tpu.vector_store %arg12[%c0_36, %c0_37], %53 {strides = array<i32>} : memref<32x128xf32, #tpu.memory_space<vmem>>, vector<32x128xf32>,
    } else {
    }
    %c0 = arith.constant 0 : index
    %c0_1 = arith.constant 0 : index
    %3 = vector.load %arg13[%c0, %c0_1] : memref<32x128xf32, #tpu.memory_space<vmem>>, vector<32x128xf32>
    %4 = arith.truncf %3 : vector<32x128xf32> to vector<32x128xbf16>
    %c0_2 = arith.constant 0 : index
    %c0_3 = arith.constant 0 : index
    %5 = vector.load %arg8[%c0_2, %c0_3] : memref<128x256xbf16, #tpu.memory_space<vmem>>, vector<128x256xbf16>
    %cst = arith.constant dense<0.000000e+00> : vector<32x256xf32>
    %6 = tpu.matmul %4, %5, %cst {dimension_numbers = #tpu.dot_dimension_numbers<[1], [0], [0], [1], [0, 0, 1, 1], [], []>} : vector<32x128xbf16>, vector<128x256xbf16>, vector<32x256xf32> -> vector<32x256xf32>
    %c0_4 = arith.constant 0 : index
    %c0_5 = arith.constant 0 : index
    %7 = vector.load %arg9[%c0_4, %c0_5] : memref<1x256xf32, #tpu.memory_space<vmem>>, vector<1x256xf32>
    %8 = vector.broadcast %7 : vector<1x256xf32> to vector<32x256xf32>
    %9 = arith.addf %6, %8 : vector<32x256xf32>
    %cst_6 = arith.constant 0.000000e+00 : f32
    %10 = vector.broadcast %cst_6 : f32 to vector<32x256xf32>
    %11 = arith.maximumf %9, %10 : vector<32x256xf32>
    %c0_7 = arith.constant 0 : index
    %c0_8 = arith.constant 0 : index
    %12 = vector.load %arg12[%c0_7, %c0_8] : memref<32x128xf32, #tpu.memory_space<vmem>>, vector<32x128xf32>
    %13 = arith.truncf %11 : vector<32x256xf32> to vector<32x256xbf16>
    %c0_9 = arith.constant 0 : index
    %c0_10 = arith.constant 0 : index
    %14 = vector.load %arg10[%c0_9, %c0_10] : memref<256x128xbf16, #tpu.memory_space<vmem>>, vector<256x128xbf16>
    %cst_11 = arith.constant dense<0.000000e+00> : vector<32x128xf32>
    %15 = tpu.matmul %13, %14, %cst_11 {dimension_numbers = #tpu.dot_dimension_numbers<[1], [0], [0], [1], [0, 0, 1, 1], [], []>} : vector<32x256xbf16>, vector<256x128xbf16>, vector<32x128xf32> -> vector<32x128xf32>
    %16 = arith.addf %12, %15 : vector<32x128xf32>
    %c0_12 = arith.constant 0 : index
    %c0_13 = arith.constant 0 : index
    %17 = vector.load %arg12[%c0_12, %c0_13] : memref<32x128xf32, #tpu.memory_space<vmem>>, vector<32x128xf32>
    tpu.vector_store %arg12[%c0_12, %c0_13], %16 {strides = array<i32>} : memref<32x128xf32, #tpu.memory_space<vmem>>, vector<32x128xf32>,
    return
  }
  func.func @transform_0(%arg0: i32, %arg1: i32) -> (i32, i32) {
    %c0_i32 = arith.constant 0 : i32
    %c0_i32_0 = arith.constant 0 : i32
    return %arg0, %c0_i32 : i32, i32
  }
  func.func @transform_1(%arg0: i32, %arg1: i32) -> (i32, i32) {
    %c0_i32 = arith.constant 0 : i32
    %c0_i32_0 = arith.constant 0 : i32
    return %arg0, %c0_i32 : i32, i32
  }
  func.func @transform_2(%arg0: i32, %arg1: i32) -> (i32, i32) {
    %c0_i32 = arith.constant 0 : i32
    %c0_i32_0 = arith.constant 0 : i32
    %c0_i32_1 = arith.constant 0 : i32
    return %c0_i32, %c0_i32_0 : i32, i32
  }
  func.func @transform_3(%arg0: i32, %arg1: i32) -> (i32, i32) {
    %c0_i32 = arith.constant 0 : i32
    %c0_i32_0 = arith.constant 0 : i32
    %c0_i32_1 = arith.constant 0 : i32
    return %c0_i32, %c0_i32_0 : i32, i32
  }
  func.func @transform_4(%arg0: i32, %arg1: i32) -> (i32, i32) {
    %c0_i32 = arith.constant 0 : i32
    %c0_i32_0 = arith.constant 0 : i32
    %c0_i32_1 = arith.constant 0 : i32
    return %c0_i32, %c0_i32_0 : i32, i32
  }
  func.func @transform_5(%arg0: i32, %arg1: i32) -> (i32, i32) {
    %c0_i32 = arith.constant 0 : i32
    %c0_i32_0 = arith.constant 0 : i32
    %c0_i32_1 = arith.constant 0 : i32
    return %c0_i32, %c0_i32_0 : i32, i32
  }
  func.func @transform_6(%arg0: i32, %arg1: i32) -> (i32, i32) {
    %c0_i32 = arith.constant 0 : i32
    %c0_i32_0 = arith.constant 0 : i32
    return %c0_i32, %arg1 : i32, i32
  }
  func.func @transform_7(%arg0: i32, %arg1: i32) -> (i32, i32) {
    %c0_i32 = arith.constant 0 : i32
    %c0_i32_0 = arith.constant 0 : i32
    return %c0_i32, %arg1 : i32, i32
  }
  func.func @transform_8(%arg0: i32, %arg1: i32) -> (i32, i32) {
    %c0_i32 = arith.constant 0 : i32
    %c0_i32_0 = arith.constant 0 : i32
    return %arg1, %c0_i32 : i32, i32
  }
  func.func @transform_9(%arg0: i32, %arg1: i32) -> (i32, i32) {
    %c0_i32 = arith.constant 0 : i32
    %c0_i32_0 = arith.constant 0 : i32
    %c0_i32_1 = arith.constant 0 : i32
    return %c0_i32, %c0_i32_0 : i32, i32
  }
  func.func @transform_10(%arg0: i32, %arg1: i32) -> (i32, i32) {
    %c0_i32 = arith.constant 0 : i32
    %c0_i32_0 = arith.constant 0 : i32
    return %arg0, %c0_i32 : i32, i32
  }
}

module attributes {stable_mosaic.version = 11 : i64} {
  func.func @_attention_kernel(%arg0: i32, %arg1: i32, %arg2: i32, %arg3: memref<16x128xbf16, #tpu.memory_space<vmem>>, %arg4: memref<16x128xbf16, #tpu.memory_space<vmem>>, %arg5: memref<16x128xbf16, #tpu.memory_space<vmem>>, %arg6: memref<16x128xbf16, #tpu.memory_space<vmem>>, %arg7: memref<4x16x1xf32, #tpu.memory_space<vmem>>, %arg8: memref<4x16x1xf32, #tpu.memory_space<vmem>>, %arg9: memref<16x128xf32, #tpu.memory_space<vmem>>) attributes {dimension_semantics = [#tpu.dimension_semantics<parallel>, #tpu.dimension_semantics<parallel>, #tpu.dimension_semantics<arbitrary>], iteration_bounds = array<i64: 2, 1, 1>, scalar_prefetch = 0 : i64, scratch_operands = 3 : i64, tpu.core_type = #tpu.core_type<tc>, window_params = [{transform_indices = @transform_0, window_bounds = array<i64: 16, 128>}, {transform_indices = @transform_1, window_bounds = array<i64: 16, 128>}, {transform_indices = @transform_2, window_bounds = array<i64: 16, 128>}, {transform_indices = @transform_3, window_bounds = array<i64: 16, 128>}]} {
    %c0_i32 = arith.constant 0 : i32
    %0 = arith.cmpi eq, %arg2, %c0_i32 : i32
    %1 = arith.extui %0 : i1 to i32
    %c0_i32_0 = arith.constant 0 : i32
    %2 = arith.cmpi ne, %1, %c0_i32_0 : i32
    scf.if %2 {
      %cst_85 = arith.constant 0xFF800000 : f32
      %155 = vector.broadcast %cst_85 : f32 to vector<4x16x1xf32>
      %c0_86 = arith.constant 0 : index
      %c0_87 = arith.constant 0 : index
      %c0_88 = arith.constant 0 : index
      %156 = vector.load %arg7[%c0_86, %c0_87, %c0_88] : memref<4x16x1xf32, #tpu.memory_space<vmem>>, vector<4x16x1xf32>
      tpu.vector_store %arg7[%c0_86, %c0_87, %c0_88], %155 {strides = array<i32>} : memref<4x16x1xf32, #tpu.memory_space<vmem>>, vector<4x16x1xf32>,
      %cst_89 = arith.constant 0.000000e+00 : f32
      %157 = vector.broadcast %cst_89 : f32 to vector<4x16x1xf32>
      %c0_90 = arith.constant 0 : index
      %c0_91 = arith.constant 0 : index
      %c0_92 = arith.constant 0 : index
      %158 = vector.load %arg8[%c0_90, %c0_91, %c0_92] : memref<4x16x1xf32, #tpu.memory_space<vmem>>, vector<4x16x1xf32>
      tpu.vector_store %arg8[%c0_90, %c0_91, %c0_92], %157 {strides = array<i32>} : memref<4x16x1xf32, #tpu.memory_space<vmem>>, vector<4x16x1xf32>,
      %cst_93 = arith.constant 0.000000e+00 : f32
      %159 = vector.broadcast %cst_93 : f32 to vector<16x128xf32>
      %c0_94 = arith.constant 0 : index
      %c0_95 = arith.constant 0 : index
      %160 = vector.load %arg9[%c0_94, %c0_95] : memref<16x128xf32, #tpu.memory_space<vmem>>, vector<16x128xf32>
      tpu.vector_store %arg9[%c0_94, %c0_95], %159 {strides = array<i32>} : memref<16x128xf32, #tpu.memory_space<vmem>>, vector<16x128xf32>,
    } else {
    }
    %3 = tpu.iota {dimensions = array<i32: 0>} : vector<16x16xi32>
    %4 = tpu.iota {dimensions = array<i32: 1>} : vector<16x16xi32>
    %c16_i32 = arith.constant 16 : i32
    %5 = arith.muli %arg2, %c16_i32 : i32
    %6 = vector.broadcast %5 : i32 to vector<16x16xi32>
    %7 = arith.addi %4, %6 : vector<16x16xi32>
    %8 = arith.cmpi sle, %7, %3 : vector<16x16xi32>
    %c0 = arith.constant 0 : index
    %c0_1 = arith.constant 0 : index
    %9 = vector.load %arg3[%c0, %c0_1] : memref<16x128xbf16, #tpu.memory_space<vmem>>, vector<16x128xbf16>
    %c0_2 = arith.constant 0 : index
    %c0_3 = arith.constant 0 : index
    %10 = vector.load %arg4[%c0_2, %c0_3] : memref<16x128xbf16, #tpu.memory_space<vmem>>, vector<16x128xbf16>
    %c0_4 = arith.constant 0 : index
    %c0_5 = arith.constant 0 : index
    %11 = vector.load %arg5[%c0_4, %c0_5] : memref<16x128xbf16, #tpu.memory_space<vmem>>, vector<16x128xbf16>
    %12 = vector.extract_strided_slice %9 {offsets = [0, 0], sizes = [16, 32], strides = [1, 1]} : vector<16x128xbf16> to vector<16x32xbf16>
    %13 = vector.extract_strided_slice %10 {offsets = [0, 0], sizes = [16, 32], strides = [1, 1]} : vector<16x128xbf16> to vector<16x32xbf16>
    %cst = arith.constant dense<0.000000e+00> : vector<16x16xf32>
    %14 = tpu.matmul %12, %13, %cst {dimension_numbers = #tpu.dot_dimension_numbers<[1], [1], [0], [0], [0, 0, 1, 0], [], []>} : vector<16x32xbf16>, vector<16x32xbf16>, vector<16x16xf32> -> vector<16x16xf32>
    %cst_6 = arith.constant -1.000000e+30 : f32
    %15 = vector.broadcast %cst_6 : f32 to vector<16x16xf32>
    %16 = arith.select %8, %14, %15 : vector<16x16xi1>, vector<16x16xf32>
    %c0_7 = arith.constant 0 : index
    %c0_8 = arith.constant 0 : index
    %c0_9 = arith.constant 0 : index
    %17 = vector.load %arg7[%c0_7, %c0_8, %c0_9] : memref<4x16x1xf32, #tpu.memory_space<vmem>>, vector<1x16x1xf32>
    %18 = vector.shape_cast %17 : vector<1x16x1xf32> to vector<16x1xf32>
    %cst_10 = arith.constant dense<0xFF800000> : vector<16xf32>
    %19 = vector.multi_reduction <maximumf>, %16, %cst_10 [1] : vector<16x16xf32> to vector<16xf32>
    %20 = vector.shape_cast %19 : vector<16xf32> to vector<16x1xf32>
    %21 = arith.maximumf %18, %20 : vector<16x1xf32>
    %22 = arith.subf %18, %21 : vector<16x1xf32>
    %23 = math.exp %22 : vector<16x1xf32>
    %24 = vector.broadcast %21 : vector<16x1xf32> to vector<16x16xf32>
    %25 = arith.subf %16, %24 : vector<16x16xf32>
    %26 = math.exp %25 : vector<16x16xf32>
    %c0_11 = arith.constant 0 : index
    %c0_12 = arith.constant 0 : index
    %c0_13 = arith.constant 0 : index
    %27 = vector.load %arg8[%c0_11, %c0_12, %c0_13] : memref<4x16x1xf32, #tpu.memory_space<vmem>>, vector<1x16x1xf32>
    %28 = vector.shape_cast %27 : vector<1x16x1xf32> to vector<16x1xf32>
    %29 = arith.mulf %23, %28 : vector<16x1xf32>
    %cst_14 = arith.constant dense<0.000000e+00> : vector<16xf32>
    %30 = vector.multi_reduction <add>, %26, %cst_14 [1] : vector<16x16xf32> to vector<16xf32>
    %31 = vector.shape_cast %30 : vector<16xf32> to vector<16x1xf32>
    %32 = arith.addf %29, %31 : vector<16x1xf32>
    %c0_15 = arith.constant 0 : index
    %c0_16 = arith.constant 0 : index
    %c0_17 = arith.constant 0 : index
    %33 = vector.load %arg8[%c0_15, %c0_16, %c0_17] : memref<4x16x1xf32, #tpu.memory_space<vmem>>, vector<1x16x1xf32>
    %34 = vector.shape_cast %33 : vector<1x16x1xf32> to vector<16x1xf32>
    %35 = vector.shape_cast %32 : vector<16x1xf32> to vector<1x16x1xf32>
    tpu.vector_store %arg8[%c0_15, %c0_16, %c0_17], %35 {strides = array<i32>} : memref<4x16x1xf32, #tpu.memory_space<vmem>>, vector<1x16x1xf32>,
    %c0_18 = arith.constant 0 : index
    %c0_19 = arith.constant 0 : index
    %36 = vector.load %arg9[%c0_18, %c0_19] : memref<16x128xf32, #tpu.memory_space<vmem>>, vector<16x32xf32>
    %37 = vector.broadcast %23 : vector<16x1xf32> to vector<16x32xf32>
    %38 = arith.mulf %37, %36 : vector<16x32xf32>
    %39 = arith.truncf %26 : vector<16x16xf32> to vector<16x16xbf16>
    %40 = vector.extract_strided_slice %11 {offsets = [0, 0], sizes = [16, 32], strides = [1, 1]} : vector<16x128xbf16> to vector<16x32xbf16>
    %cst_20 = arith.constant dense<0.000000e+00> : vector<16x32xf32>
    %41 = tpu.matmul %39, %40, %cst_20 {dimension_numbers = #tpu.dot_dimension_numbers<[1], [0], [0], [1], [0, 0, 1, 1], [], []>} : vector<16x16xbf16>, vector<16x32xbf16>, vector<16x32xf32> -> vector<16x32xf32>
    %42 = arith.addf %38, %41 : vector<16x32xf32>
    %c0_21 = arith.constant 0 : index
    %c0_22 = arith.constant 0 : index
    %43 = vector.load %arg9[%c0_21, %c0_22] : memref<16x128xf32, #tpu.memory_space<vmem>>, vector<16x32xf32>
    tpu.vector_store %arg9[%c0_21, %c0_22], %42 {strides = array<i32>} : memref<16x128xf32, #tpu.memory_space<vmem>>, vector<16x32xf32>,
    %c0_23 = arith.constant 0 : index
    %c0_24 = arith.constant 0 : index
    %c0_25 = arith.constant 0 : index
    %44 = vector.load %arg7[%c0_23, %c0_24, %c0_25] : memref<4x16x1xf32, #tpu.memory_space<vmem>>, vector<1x16x1xf32>
    %45 = vector.shape_cast %44 : vector<1x16x1xf32> to vector<16x1xf32>
    %46 = vector.shape_cast %21 : vector<16x1xf32> to vector<1x16x1xf32>
    tpu.vector_store %arg7[%c0_23, %c0_24, %c0_25], %46 {strides = array<i32>} : memref<4x16x1xf32, #tpu.memory_space<vmem>>, vector<1x16x1xf32>,
    %47 = vector.extract_strided_slice %9 {offsets = [0, 32], sizes = [16, 32], strides = [1, 1]} : vector<16x128xbf16> to vector<16x32xbf16>
    %48 = vector.extract_strided_slice %10 {offsets = [0, 32], sizes = [16, 32], strides = [1, 1]} : vector<16x128xbf16> to vector<16x32xbf16>
    %cst_26 = arith.constant dense<0.000000e+00> : vector<16x16xf32>
    %49 = tpu.matmul %47, %48, %cst_26 {dimension_numbers = #tpu.dot_dimension_numbers<[1], [1], [0], [0], [0, 0, 1, 0], [], []>} : vector<16x32xbf16>, vector<16x32xbf16>, vector<16x16xf32> -> vector<16x16xf32>
    %cst_27 = arith.constant -1.000000e+30 : f32
    %50 = vector.broadcast %cst_27 : f32 to vector<16x16xf32>
    %51 = arith.select %8, %49, %50 : vector<16x16xi1>, vector<16x16xf32>
    %c1 = arith.constant 1 : index
    %c0_28 = arith.constant 0 : index
    %c0_29 = arith.constant 0 : index
    %52 = vector.load %arg7[%c1, %c0_28, %c0_29] : memref<4x16x1xf32, #tpu.memory_space<vmem>>, vector<1x16x1xf32>
    %53 = vector.shape_cast %52 : vector<1x16x1xf32> to vector<16x1xf32>
    %cst_30 = arith.constant dense<0xFF800000> : vector<16xf32>
    %54 = vector.multi_reduction <maximumf>, %51, %cst_30 [1] : vector<16x16xf32> to vector<16xf32>
    %55 = vector.shape_cast %54 : vector<16xf32> to vector<16x1xf32>
    %56 = arith.maximumf %53, %55 : vector<16x1xf32>
    %57 = arith.subf %53, %56 : vector<16x1xf32>
    %58 = math.exp %57 : vector<16x1xf32>
    %59 = vector.broadcast %56 : vector<16x1xf32> to vector<16x16xf32>
    %60 = arith.subf %51, %59 : vector<16x16xf32>
    %61 = math.exp %60 : vector<16x16xf32>
    %c1_31 = arith.constant 1 : index
    %c0_32 = arith.constant 0 : index
    %c0_33 = arith.constant 0 : index
    %62 = vector.load %arg8[%c1_31, %c0_32, %c0_33] : memref<4x16x1xf32, #tpu.memory_space<vmem>>, vector<1x16x1xf32>
    %63 = vector.shape_cast %62 : vector<1x16x1xf32> to vector<16x1xf32>
    %64 = arith.mulf %58, %63 : vector<16x1xf32>
    %cst_34 = arith.constant dense<0.000000e+00> : vector<16xf32>
    %65 = vector.multi_reduction <add>, %61, %cst_34 [1] : vector<16x16xf32> to vector<16xf32>
    %66 = vector.shape_cast %65 : vector<16xf32> to vector<16x1xf32>
    %67 = arith.addf %64, %66 : vector<16x1xf32>
    %c1_35 = arith.constant 1 : index
    %c0_36 = arith.constant 0 : index
    %c0_37 = arith.constant 0 : index
    %68 = vector.load %arg8[%c1_35, %c0_36, %c0_37] : memref<4x16x1xf32, #tpu.memory_space<vmem>>, vector<1x16x1xf32>
    %69 = vector.shape_cast %68 : vector<1x16x1xf32> to vector<16x1xf32>
    %70 = vector.shape_cast %67 : vector<16x1xf32> to vector<1x16x1xf32>
    tpu.vector_store %arg8[%c1_35, %c0_36, %c0_37], %70 {strides = array<i32>} : memref<4x16x1xf32, #tpu.memory_space<vmem>>, vector<1x16x1xf32>,
    %c0_38 = arith.constant 0 : index
    %c32 = arith.constant 32 : index
    %71 = vector.load %arg9[%c0_38, %c32] : memref<16x128xf32, #tpu.memory_space<vmem>>, vector<16x32xf32>
    %72 = vector.broadcast %58 : vector<16x1xf32> to vector<16x32xf32>
    %73 = arith.mulf %72, %71 : vector<16x32xf32>
    %74 = arith.truncf %61 : vector<16x16xf32> to vector<16x16xbf16>
    %75 = vector.extract_strided_slice %11 {offsets = [0, 32], sizes = [16, 32], strides = [1, 1]} : vector<16x128xbf16> to vector<16x32xbf16>
    %cst_39 = arith.constant dense<0.000000e+00> : vector<16x32xf32>
    %76 = tpu.matmul %74, %75, %cst_39 {dimension_numbers = #tpu.dot_dimension_numbers<[1], [0], [0], [1], [0, 0, 1, 1], [], []>} : vector<16x16xbf16>, vector<16x32xbf16>, vector<16x32xf32> -> vector<16x32xf32>
    %77 = arith.addf %73, %76 : vector<16x32xf32>
    %c0_40 = arith.constant 0 : index
    %c32_41 = arith.constant 32 : index
    %78 = vector.load %arg9[%c0_40, %c32_41] : memref<16x128xf32, #tpu.memory_space<vmem>>, vector<16x32xf32>
    tpu.vector_store %arg9[%c0_40, %c32_41], %77 {strides = array<i32>} : memref<16x128xf32, #tpu.memory_space<vmem>>, vector<16x32xf32>,
    %c1_42 = arith.constant 1 : index
    %c0_43 = arith.constant 0 : index
    %c0_44 = arith.constant 0 : index
    %79 = vector.load %arg7[%c1_42, %c0_43, %c0_44] : memref<4x16x1xf32, #tpu.memory_space<vmem>>, vector<1x16x1xf32>
    %80 = vector.shape_cast %79 : vector<1x16x1xf32> to vector<16x1xf32>
    %81 = vector.shape_cast %56 : vector<16x1xf32> to vector<1x16x1xf32>
    tpu.vector_store %arg7[%c1_42, %c0_43, %c0_44], %81 {strides = array<i32>} : memref<4x16x1xf32, #tpu.memory_space<vmem>>, vector<1x16x1xf32>,
    %82 = vector.extract_strided_slice %9 {offsets = [0, 64], sizes = [16, 32], strides = [1, 1]} : vector<16x128xbf16> to vector<16x32xbf16>
    %83 = vector.extract_strided_slice %10 {offsets = [0, 64], sizes = [16, 32], strides = [1, 1]} : vector<16x128xbf16> to vector<16x32xbf16>
    %cst_45 = arith.constant dense<0.000000e+00> : vector<16x16xf32>
    %84 = tpu.matmul %82, %83, %cst_45 {dimension_numbers = #tpu.dot_dimension_numbers<[1], [1], [0], [0], [0, 0, 1, 0], [], []>} : vector<16x32xbf16>, vector<16x32xbf16>, vector<16x16xf32> -> vector<16x16xf32>
    %cst_46 = arith.constant -1.000000e+30 : f32
    %85 = vector.broadcast %cst_46 : f32 to vector<16x16xf32>
    %86 = arith.select %8, %84, %85 : vector<16x16xi1>, vector<16x16xf32>
    %c2 = arith.constant 2 : index
    %c0_47 = arith.constant 0 : index
    %c0_48 = arith.constant 0 : index
    %87 = vector.load %arg7[%c2, %c0_47, %c0_48] : memref<4x16x1xf32, #tpu.memory_space<vmem>>, vector<1x16x1xf32>
    %88 = vector.shape_cast %87 : vector<1x16x1xf32> to vector<16x1xf32>
    %cst_49 = arith.constant dense<0xFF800000> : vector<16xf32>
    %89 = vector.multi_reduction <maximumf>, %86, %cst_49 [1] : vector<16x16xf32> to vector<16xf32>
    %90 = vector.shape_cast %89 : vector<16xf32> to vector<16x1xf32>
    %91 = arith.maximumf %88, %90 : vector<16x1xf32>
    %92 = arith.subf %88, %91 : vector<16x1xf32>
    %93 = math.exp %92 : vector<16x1xf32>
    %94 = vector.broadcast %91 : vector<16x1xf32> to vector<16x16xf32>
    %95 = arith.subf %86, %94 : vector<16x16xf32>
    %96 = math.exp %95 : vector<16x16xf32>
    %c2_50 = arith.constant 2 : index
    %c0_51 = arith.constant 0 : index
    %c0_52 = arith.constant 0 : index
    %97 = vector.load %arg8[%c2_50, %c0_51, %c0_52] : memref<4x16x1xf32, #tpu.memory_space<vmem>>, vector<1x16x1xf32>
    %98 = vector.shape_cast %97 : vector<1x16x1xf32> to vector<16x1xf32>
    %99 = arith.mulf %93, %98 : vector<16x1xf32>
    %cst_53 = arith.constant dense<0.000000e+00> : vector<16xf32>
    %100 = vector.multi_reduction <add>, %96, %cst_53 [1] : vector<16x16xf32> to vector<16xf32>
    %101 = vector.shape_cast %100 : vector<16xf32> to vector<16x1xf32>
    %102 = arith.addf %99, %101 : vector<16x1xf32>
    %c2_54 = arith.constant 2 : index
    %c0_55 = arith.constant 0 : index
    %c0_56 = arith.constant 0 : index
    %103 = vector.load %arg8[%c2_54, %c0_55, %c0_56] : memref<4x16x1xf32, #tpu.memory_space<vmem>>, vector<1x16x1xf32>
    %104 = vector.shape_cast %103 : vector<1x16x1xf32> to vector<16x1xf32>
    %105 = vector.shape_cast %102 : vector<16x1xf32> to vector<1x16x1xf32>
    tpu.vector_store %arg8[%c2_54, %c0_55, %c0_56], %105 {strides = array<i32>} : memref<4x16x1xf32, #tpu.memory_space<vmem>>, vector<1x16x1xf32>,
    %c0_57 = arith.constant 0 : index
    %c64 = arith.constant 64 : index
    %106 = vector.load %arg9[%c0_57, %c64] : memref<16x128xf32, #tpu.memory_space<vmem>>, vector<16x32xf32>
    %107 = vector.broadcast %93 : vector<16x1xf32> to vector<16x32xf32>
    %108 = arith.mulf %107, %106 : vector<16x32xf32>
    %109 = arith.truncf %96 : vector<16x16xf32> to vector<16x16xbf16>
    %110 = vector.extract_strided_slice %11 {offsets = [0, 64], sizes = [16, 32], strides = [1, 1]} : vector<16x128xbf16> to vector<16x32xbf16>
    %cst_58 = arith.constant dense<0.000000e+00> : vector<16x32xf32>
    %111 = tpu.matmul %109, %110, %cst_58 {dimension_numbers = #tpu.dot_dimension_numbers<[1], [0], [0], [1], [0, 0, 1, 1], [], []>} : vector<16x16xbf16>, vector<16x32xbf16>, vector<16x32xf32> -> vector<16x32xf32>
    %112 = arith.addf %108, %111 : vector<16x32xf32>
    %c0_59 = arith.constant 0 : index
    %c64_60 = arith.constant 64 : index
    %113 = vector.load %arg9[%c0_59, %c64_60] : memref<16x128xf32, #tpu.memory_space<vmem>>, vector<16x32xf32>
    tpu.vector_store %arg9[%c0_59, %c64_60], %112 {strides = array<i32>} : memref<16x128xf32, #tpu.memory_space<vmem>>, vector<16x32xf32>,
    %c2_61 = arith.constant 2 : index
    %c0_62 = arith.constant 0 : index
    %c0_63 = arith.constant 0 : index
    %114 = vector.load %arg7[%c2_61, %c0_62, %c0_63] : memref<4x16x1xf32, #tpu.memory_space<vmem>>, vector<1x16x1xf32>
    %115 = vector.shape_cast %114 : vector<1x16x1xf32> to vector<16x1xf32>
    %116 = vector.shape_cast %91 : vector<16x1xf32> to vector<1x16x1xf32>
    tpu.vector_store %arg7[%c2_61, %c0_62, %c0_63], %116 {strides = array<i32>} : memref<4x16x1xf32, #tpu.memory_space<vmem>>, vector<1x16x1xf32>,
    %117 = vector.extract_strided_slice %9 {offsets = [0, 96], sizes = [16, 32], strides = [1, 1]} : vector<16x128xbf16> to vector<16x32xbf16>
    %118 = vector.extract_strided_slice %10 {offsets = [0, 96], sizes = [16, 32], strides = [1, 1]} : vector<16x128xbf16> to vector<16x32xbf16>
    %cst_64 = arith.constant dense<0.000000e+00> : vector<16x16xf32>
    %119 = tpu.matmul %117, %118, %cst_64 {dimension_numbers = #tpu.dot_dimension_numbers<[1], [1], [0], [0], [0, 0, 1, 0], [], []>} : vector<16x32xbf16>, vector<16x32xbf16>, vector<16x16xf32> -> vector<16x16xf32>
    %cst_65 = arith.constant -1.000000e+30 : f32
    %120 = vector.broadcast %cst_65 : f32 to vector<16x16xf32>
    %121 = arith.select %8, %119, %120 : vector<16x16xi1>, vector<16x16xf32>
    %c3 = arith.constant 3 : index
    %c0_66 = arith.constant 0 : index
    %c0_67 = arith.constant 0 : index
    %122 = vector.load %arg7[%c3, %c0_66, %c0_67] : memref<4x16x1xf32, #tpu.memory_space<vmem>>, vector<1x16x1xf32>
    %123 = vector.shape_cast %122 : vector<1x16x1xf32> to vector<16x1xf32>
    %cst_68 = arith.constant dense<0xFF800000> : vector<16xf32>
    %124 = vector.multi_reduction <maximumf>, %121, %cst_68 [1] : vector<16x16xf32> to vector<16xf32>
    %125 = vector.shape_cast %124 : vector<16xf32> to vector<16x1xf32>
    %126 = arith.maximumf %123, %125 : vector<16x1xf32>
    %127 = arith.subf %123, %126 : vector<16x1xf32>
    %128 = math.exp %127 : vector<16x1xf32>
    %129 = vector.broadcast %126 : vector<16x1xf32> to vector<16x16xf32>
    %130 = arith.subf %121, %129 : vector<16x16xf32>
    %131 = math.exp %130 : vector<16x16xf32>
    %c3_69 = arith.constant 3 : index
    %c0_70 = arith.constant 0 : index
    %c0_71 = arith.constant 0 : index
    %132 = vector.load %arg8[%c3_69, %c0_70, %c0_71] : memref<4x16x1xf32, #tpu.memory_space<vmem>>, vector<1x16x1xf32>
    %133 = vector.shape_cast %132 : vector<1x16x1xf32> to vector<16x1xf32>
    %134 = arith.mulf %128, %133 : vector<16x1xf32>
    %cst_72 = arith.constant dense<0.000000e+00> : vector<16xf32>
    %135 = vector.multi_reduction <add>, %131, %cst_72 [1] : vector<16x16xf32> to vector<16xf32>
    %136 = vector.shape_cast %135 : vector<16xf32> to vector<16x1xf32>
    %137 = arith.addf %134, %136 : vector<16x1xf32>
    %c3_73 = arith.constant 3 : index
    %c0_74 = arith.constant 0 : index
    %c0_75 = arith.constant 0 : index
    %138 = vector.load %arg8[%c3_73, %c0_74, %c0_75] : memref<4x16x1xf32, #tpu.memory_space<vmem>>, vector<1x16x1xf32>
    %139 = vector.shape_cast %138 : vector<1x16x1xf32> to vector<16x1xf32>
    %140 = vector.shape_cast %137 : vector<16x1xf32> to vector<1x16x1xf32>
    tpu.vector_store %arg8[%c3_73, %c0_74, %c0_75], %140 {strides = array<i32>} : memref<4x16x1xf32, #tpu.memory_space<vmem>>, vector<1x16x1xf32>,
    %c0_76 = arith.constant 0 : index
    %c96 = arith.constant 96 : index
    %141 = vector.load %arg9[%c0_76, %c96] : memref<16x128xf32, #tpu.memory_space<vmem>>, vector<16x32xf32>
    %142 = vector.broadcast %128 : vector<16x1xf32> to vector<16x32xf32>
    %143 = arith.mulf %142, %141 : vector<16x32xf32>
    %144 = arith.truncf %131 : vector<16x16xf32> to vector<16x16xbf16>
    %145 = vector.extract_strided_slice %11 {offsets = [0, 96], sizes = [16, 32], strides = [1, 1]} : vector<16x128xbf16> to vector<16x32xbf16>
    %cst_77 = arith.constant dense<0.000000e+00> : vector<16x32xf32>
    %146 = tpu.matmul %144, %145, %cst_77 {dimension_numbers = #tpu.dot_dimension_numbers<[1], [0], [0], [1], [0, 0, 1, 1], [], []>} : vector<16x16xbf16>, vector<16x32xbf16>, vector<16x32xf32> -> vector<16x32xf32>
    %147 = arith.addf %143, %146 : vector<16x32xf32>
    %c0_78 = arith.constant 0 : index
    %c96_79 = arith.constant 96 : index
    %148 = vector.load %arg9[%c0_78, %c96_79] : memref<16x128xf32, #tpu.memory_space<vmem>>, vector<16x32xf32>
    tpu.vector_store %arg9[%c0_78, %c96_79], %147 {strides = array<i32>} : memref<16x128xf32, #tpu.memory_space<vmem>>, vector<16x32xf32>,
    %c3_80 = arith.constant 3 : index
    %c0_81 = arith.constant 0 : index
    %c0_82 = arith.constant 0 : index
    %149 = vector.load %arg7[%c3_80, %c0_81, %c0_82] : memref<4x16x1xf32, #tpu.memory_space<vmem>>, vector<1x16x1xf32>
    %150 = vector.shape_cast %149 : vector<1x16x1xf32> to vector<16x1xf32>
    %151 = vector.shape_cast %126 : vector<16x1xf32> to vector<1x16x1xf32>
    tpu.vector_store %arg7[%c3_80, %c0_81, %c0_82], %151 {strides = array<i32>} : memref<4x16x1xf32, #tpu.memory_space<vmem>>, vector<1x16x1xf32>,
    %c0_i32_83 = arith.constant 0 : i32
    %152 = arith.cmpi eq, %arg2, %c0_i32_83 : i32
    %153 = arith.extui %152 : i1 to i32
    %c0_i32_84 = arith.constant 0 : i32
    %154 = arith.cmpi ne, %153, %c0_i32_84 : i32
    scf.if %154 {
      %c0_85 = arith.constant 0 : index
      %c0_86 = arith.constant 0 : index
      %155 = vector.load %arg9[%c0_85, %c0_86] : memref<16x128xf32, #tpu.memory_space<vmem>>, vector<16x32xf32>
      %c0_87 = arith.constant 0 : index
      %c0_88 = arith.constant 0 : index
      %c0_89 = arith.constant 0 : index
      %156 = vector.load %arg8[%c0_87, %c0_88, %c0_89] : memref<4x16x1xf32, #tpu.memory_space<vmem>>, vector<1x16x1xf32>
      %157 = vector.shape_cast %156 : vector<1x16x1xf32> to vector<16x1xf32>
      %158 = vector.broadcast %157 : vector<16x1xf32> to vector<16x32xf32>
      %159 = arith.divf %155, %158 : vector<16x32xf32>
      %160 = arith.truncf %159 : vector<16x32xf32> to vector<16x32xbf16>
      %c0_90 = arith.constant 0 : index
      %c0_91 = arith.constant 0 : index
      %161 = vector.load %arg6[%c0_90, %c0_91] : memref<16x128xbf16, #tpu.memory_space<vmem>>, vector<16x32xbf16>
      tpu.vector_store %arg6[%c0_90, %c0_91], %160 {strides = array<i32>} : memref<16x128xbf16, #tpu.memory_space<vmem>>, vector<16x32xbf16>,
      %c0_92 = arith.constant 0 : index
      %c32_93 = arith.constant 32 : index
      %162 = vector.load %arg9[%c0_92, %c32_93] : memref<16x128xf32, #tpu.memory_space<vmem>>, vector<16x32xf32>
      %c1_94 = arith.constant 1 : index
      %c0_95 = arith.constant 0 : index
      %c0_96 = arith.constant 0 : index
      %163 = vector.load %arg8[%c1_94, %c0_95, %c0_96] : memref<4x16x1xf32, #tpu.memory_space<vmem>>, vector<1x16x1xf32>
      %164 = vector.shape_cast %163 : vector<1x16x1xf32> to vector<16x1xf32>
      %165 = vector.broadcast %164 : vector<16x1xf32> to vector<16x32xf32>
      %166 = arith.divf %162, %165 : vector<16x32xf32>
      %167 = arith.truncf %166 : vector<16x32xf32> to vector<16x32xbf16>
      %c0_97 = arith.constant 0 : index
      %c32_98 = arith.constant 32 : index
      %168 = vector.load %arg6[%c0_97, %c32_98] : memref<16x128xbf16, #tpu.memory_space<vmem>>, vector<16x32xbf16>
      tpu.vector_store %arg6[%c0_97, %c32_98], %167 {strides = array<i32>} : memref<16x128xbf16, #tpu.memory_space<vmem>>, vector<16x32xbf16>,
      %c0_99 = arith.constant 0 : index
      %c64_100 = arith.constant 64 : index
      %169 = vector.load %arg9[%c0_99, %c64_100] : memref<16x128xf32, #tpu.memory_space<vmem>>, vector<16x32xf32>
      %c2_101 = arith.constant 2 : index
      %c0_102 = arith.constant 0 : index
      %c0_103 = arith.constant 0 : index
      %170 = vector.load %arg8[%c2_101, %c0_102, %c0_103] : memref<4x16x1xf32, #tpu.memory_space<vmem>>, vector<1x16x1xf32>
      %171 = vector.shape_cast %170 : vector<1x16x1xf32> to vector<16x1xf32>
      %172 = vector.broadcast %171 : vector<16x1xf32> to vector<16x32xf32>
      %173 = arith.divf %169, %172 : vector<16x32xf32>
      %174 = arith.truncf %173 : vector<16x32xf32> to vector<16x32xbf16>
      %c0_104 = arith.constant 0 : index
      %c64_105 = arith.constant 64 : index
      %175 = vector.load %arg6[%c0_104, %c64_105] : memref<16x128xbf16, #tpu.memory_space<vmem>>, vector<16x32xbf16>
      tpu.vector_store %arg6[%c0_104, %c64_105], %174 {strides = array<i32>} : memref<16x128xbf16, #tpu.memory_space<vmem>>, vector<16x32xbf16>,
      %c0_106 = arith.constant 0 : index
      %c96_107 = arith.constant 96 : index
      %176 = vector.load %arg9[%c0_106, %c96_107] : memref<16x128xf32, #tpu.memory_space<vmem>>, vector<16x32xf32>
      %c3_108 = arith.constant 3 : index
      %c0_109 = arith.constant 0 : index
      %c0_110 = arith.constant 0 : index
      %177 = vector.load %arg8[%c3_108, %c0_109, %c0_110] : memref<4x16x1xf32, #tpu.memory_space<vmem>>, vector<1x16x1xf32>
      %178 = vector.shape_cast %177 : vector<1x16x1xf32> to vector<16x1xf32>
      %179 = vector.broadcast %178 : vector<16x1xf32> to vector<16x32xf32>
      %180 = arith.divf %176, %179 : vector<16x32xf32>
      %181 = arith.truncf %180 : vector<16x32xf32> to vector<16x32xbf16>
      %c0_111 = arith.constant 0 : index
      %c96_112 = arith.constant 96 : index
      %182 = vector.load %arg6[%c0_111, %c96_112] : memref<16x128xbf16, #tpu.memory_space<vmem>>, vector<16x32xbf16>
      tpu.vector_store %arg6[%c0_111, %c96_112], %181 {strides = array<i32>} : memref<16x128xbf16, #tpu.memory_space<vmem>>, vector<16x32xbf16>,
    } else {
    }
    return
  }
  func.func @transform_0(%arg0: i32, %arg1: i32, %arg2: i32) -> (i32, i32) {
    %c0_i32 = arith.constant 0 : i32
    return %arg0, %arg1 : i32, i32
  }
  func.func @transform_1(%arg0: i32, %arg1: i32, %arg2: i32) -> (i32, i32) {
    %c1_i32 = arith.constant 1 : i32
    %0 = arith.muli %arg0, %c1_i32 : i32
    %1 = arith.addi %0, %arg2 : i32
    %c1_i32_0 = arith.constant 1 : i32
    %2 = arith.addi %c1_i32_0, %arg1 : i32
    %c0_i32 = arith.constant 0 : i32
    return %1, %2 : i32, i32
  }
  func.func @transform_2(%arg0: i32, %arg1: i32, %arg2: i32) -> (i32, i32) {
    %c1_i32 = arith.constant 1 : i32
    %0 = arith.muli %arg0, %c1_i32 : i32
    %1 = arith.addi %0, %arg2 : i32
    %c2_i32 = arith.constant 2 : i32
    %2 = arith.addi %c2_i32, %arg1 : i32
    %c0_i32 = arith.constant 0 : i32
    return %1, %2 : i32, i32
  }
  func.func @transform_3(%arg0: i32, %arg1: i32, %arg2: i32) -> (i32, i32) {
    %c0_i32 = arith.constant 0 : i32
    return %arg0, %arg1 : i32, i32
  }
}

module attributes {stable_mosaic.version = 11 : i64} {
  func.func @_out_ffn_kernel(%arg0: i32, %arg1: i32, %arg2: memref<32x128xbf16, #tpu.memory_space<vmem>>, %arg3: memref<32x128xf32, #tpu.memory_space<vmem>>, %arg4: memref<128x128xbf16, #tpu.memory_space<vmem>>, %arg5: memref<1x128xf32, #tpu.memory_space<vmem>>, %arg6: memref<1x128xf32, #tpu.memory_space<vmem>>, %arg7: memref<1x128xf32, #tpu.memory_space<vmem>>, %arg8: memref<128x256xbf16, #tpu.memory_space<vmem>>, %arg9: memref<1x256xf32, #tpu.memory_space<vmem>>, %arg10: memref<256x128xbf16, #tpu.memory_space<vmem>>, %arg11: memref<1x128xf32, #tpu.memory_space<vmem>>, %arg12: memref<32x128xf32, #tpu.memory_space<vmem>>, %arg13: memref<32x128xf32, #tpu.memory_space<vmem>>) attributes {dimension_semantics = [#tpu.dimension_semantics<parallel>, #tpu.dimension_semantics<arbitrary>], iteration_bounds = array<i64: 1, 1>, scalar_prefetch = 0 : i64, scratch_operands = 1 : i64, tpu.core_type = #tpu.core_type<tc>, window_params = [{transform_indices = @transform_0, window_bounds = array<i64: 32, 128>}, {transform_indices = @transform_1, window_bounds = array<i64: 32, 128>}, {pipeline_mode = #tpu.pipeline_mode<synchronous>, transform_indices = @transform_2, window_bounds = array<i64: 128, 128>}, {pipeline_mode = #tpu.pipeline_mode<synchronous>, transform_indices = @transform_3, window_bounds = array<i64: 1, 128>}, {pipeline_mode = #tpu.pipeline_mode<synchronous>, transform_indices = @transform_4, window_bounds = array<i64: 1, 128>}, {pipeline_mode = #tpu.pipeline_mode<synchronous>, transform_indices = @transform_5, window_bounds = array<i64: 1, 128>}, {transform_indices = @transform_6, window_bounds = array<i64: 128, 256>}, {transform_indices = @transform_7, window_bounds = array<i64: 1, 256>}, {transform_indices = @transform_8, window_bounds = array<i64: 256, 128>}, {pipeline_mode = #tpu.pipeline_mode<synchronous>, transform_indices = @transform_9, window_bounds = array<i64: 1, 128>}, {transform_indices = @transform_10, window_bounds = array<i64: 32, 128>}]} {
    %c0_i32 = arith.constant 0 : i32
    %0 = arith.cmpi eq, %arg1, %c0_i32 : i32
    %1 = arith.extui %0 : i1 to i32
    %c0_i32_0 = arith.constant 0 : i32
    %2 = arith.cmpi ne, %1, %c0_i32_0 : i32
    scf.if %2 {
      %c0_14 = arith.constant 0 : index
      %c0_15 = arith.constant 0 : index
      %18 = vector.load %arg2[%c0_14, %c0_15] : memref<32x128xbf16, #tpu.memory_space<vmem>>, vector<32x128xbf16>
      %c0_16 = arith.constant 0 : index
      %c0_17 = arith.constant 0 : index
      %19 = vector.load %arg4[%c0_16, %c0_17] : memref<128x128xbf16, #tpu.memory_space<vmem>>, vector<128x128xbf16>
      %cst_18 = arith.constant dense<0.000000e+00> : vector<32x128xf32>
      %20 = tpu.matmul %18, %19, %cst_18 {dimension_numbers = #tpu.dot_dimension_numbers<[1], [0], [0], [1], [0, 0, 1, 1], [], []>} : vector<32x128xbf16>, vector<128x128xbf16>, vector<32x128xf32> -> vector<32x128xf32>
      %c0_19 = arith.constant 0 : index
      %c0_20 = arith.constant 0 : index
      %21 = vector.load %arg5[%c0_19, %c0_20] : memref<1x128xf32, #tpu.memory_space<vmem>>, vector<1x128xf32>
      %22 = vector.broadcast %21 : vector<1x128xf32> to vector<32x128xf32>
      %23 = arith.addf %20, %22 : vector<32x128xf32>
      %c0_21 = arith.constant 0 : index
      %c0_22 = arith.constant 0 : index
      %24 = vector.load %arg3[%c0_21, %c0_22] : memref<32x128xf32, #tpu.memory_space<vmem>>, vector<32x128xf32>
      %25 = arith.addf %23, %24 : vector<32x128xf32>
      %c0_23 = arith.constant 0 : index
      %c0_24 = arith.constant 0 : index
      %26 = vector.load %arg6[%c0_23, %c0_24] : memref<1x128xf32, #tpu.memory_space<vmem>>, vector<1x128xf32>
      %c0_25 = arith.constant 0 : index
      %c0_26 = arith.constant 0 : index
      %27 = vector.load %arg7[%c0_25, %c0_26] : memref<1x128xf32, #tpu.memory_space<vmem>>, vector<1x128xf32>
      %cst_27 = arith.constant dense<0.000000e+00> : vector<32xf32>
      %28 = vector.multi_reduction <add>, %25, %cst_27 [1] : vector<32x128xf32> to vector<32xf32>
      %29 = vector.shape_cast %28 : vector<32xf32> to vector<32x1xf32>
      %cst_28 = arith.constant 1.280000e+02 : f32
      %30 = vector.broadcast %cst_28 : f32 to vector<32x1xf32>
      %31 = arith.divf %29, %30 : vector<32x1xf32>
      %32 = vector.broadcast %31 : vector<32x1xf32> to vector<32x128xf32>
      %33 = arith.subf %25, %32 : vector<32x128xf32>
      %34 = arith.mulf %33, %33 : vector<32x128xf32>
      %cst_29 = arith.constant dense<0.000000e+00> : vector<32xf32>
      %35 = vector.multi_reduction <add>, %34, %cst_29 [1] : vector<32x128xf32> to vector<32xf32>
      %36 = vector.shape_cast %35 : vector<32xf32> to vector<32x1xf32>
      %cst_30 = arith.constant 1.280000e+02 : f32
      %37 = vector.broadcast %cst_30 : f32 to vector<32x1xf32>
      %38 = arith.divf %36, %37 : vector<32x1xf32>
      %39 = vector.broadcast %31 : vector<32x1xf32> to vector<32x128xf32>
      %40 = arith.subf %25, %39 : vector<32x128xf32>
      %cst_31 = arith.constant 9.99999996E-13 : f32
      %41 = vector.broadcast %cst_31 : f32 to vector<32x1xf32>
      %42 = arith.addf %38, %41 : vector<32x1xf32>
      %43 = math.rsqrt %42 : vector<32x1xf32>
      %44 = vector.broadcast %43 : vector<32x1xf32> to vector<32x128xf32>
      %45 = arith.mulf %40, %44 : vector<32x128xf32>
      %46 = vector.broadcast %26 : vector<1x128xf32> to vector<32x128xf32>
      %47 = arith.mulf %45, %46 : vector<32x128xf32>
      %48 = vector.broadcast %27 : vector<1x128xf32> to vector<32x128xf32>
      %49 = arith.addf %47, %48 : vector<32x128xf32>
      %c0_32 = arith.constant 0 : index
      %c0_33 = arith.constant 0 : index
      %50 = vector.load %arg13[%c0_32, %c0_33] : memref<32x128xf32, #tpu.memory_space<vmem>>, vector<32x128xf32>
      tpu.vector_store %arg13[%c0_32, %c0_33], %49 {strides = array<i32>} : memref<32x128xf32, #tpu.memory_space<vmem>>, vector<32x128xf32>,
      %c0_34 = arith.constant 0 : index
      %c0_35 = arith.constant 0 : index
      %51 = vector.load %arg11[%c0_34, %c0_35] : memref<1x128xf32, #tpu.memory_space<vmem>>, vector<1x128xf32>
      %52 = vector.broadcast %51 : vector<1x128xf32> to vector<32x128xf32>
      %53 = arith.addf %49, %52 : vector<32x128xf32>
      %c0_36 = arith.constant 0 : index
      %c0_37 = arith.constant 0 : index
      %54 = vector.load %arg12[%c0_36, %c0_37] : memref<32x128xf32, #tpu.memory_space<vmem>>, vector<32x128xf32>
      tpu.vector_store %arg12[%c0_36, %c0_37], %53 {strides = array<i32>} : memref<32x128xf32, #tpu.memory_space<vmem>>, vector<32x128xf32>,
    } else {
    }
    %c0 = arith.constant 0 : index
    %c0_1 = arith.constant 0 : index
    %3 = vector.load %arg13[%c0, %c0_1] : memref<32x128xf32, #tpu.memory_space<vmem>>, vector<32x128xf32>
    %4 = arith.truncf %3 : vector<32x128xf32> to vector<32x128xbf16>
    %c0_2 = arith.constant 0 : index
    %c0_3 = arith.constant 0 : index
    %5 = vector.load %arg8[%c0_2, %c0_3] : memref<128x256xbf16, #tpu.memory_space<vmem>>, vector<128x256xbf16>
    %cst = arith.constant dense<0.000000e+00> : vector<32x256xf32>
    %6 = tpu.matmul %4, %5, %cst {dimension_numbers = #tpu.dot_dimension_numbers<[1], [0], [0], [1], [0, 0, 1, 1], [], []>} : vector<32x128xbf16>, vector<128x256xbf16>, vector<32x256xf32> -> vector<32x256xf32>
    %c0_4 = arith.constant 0 : index
    %c0_5 = arith.constant 0 : index
    %7 = vector.load %arg9[%c0_4, %c0_5] : memref<1x256xf32, #tpu.memory_space<vmem>>, vector<1x256xf32>
    %8 = vector.broadcast %7 : vector<1x256xf32> to vector<32x256xf32>
    %9 = arith.addf %6, %8 : vector<32x256xf32>
    %cst_6 = arith.constant 0.000000e+00 : f32
    %10 = vector.broadcast %cst_6 : f32 to vector<32x256xf32>
    %11 = arith.maximumf %9, %10 : vector<32x256xf32>
    %c0_7 = arith.constant 0 : index
    %c0_8 = arith.constant 0 : index
    %12 = vector.load %arg12[%c0_7, %c0_8] : memref<32x128xf32, #tpu.memory_space<vmem>>, vector<32x128xf32>
    %13 = arith.truncf %11 : vector<32x256xf32> to vector<32x256xbf16>
    %c0_9 = arith.constant 0 : index
    %c0_10 = arith.constant 0 : index
    %14 = vector.load %arg10[%c0_9, %c0_10] : memref<256x128xbf16, #tpu.memory_space<vmem>>, vector<256x128xbf16>
    %cst_11 = arith.constant dense<0.000000e+00> : vector<32x128xf32>
    %15 = tpu.matmul %13, %14, %cst_11 {dimension_numbers = #tpu.dot_dimension_numbers<[1], [0], [0], [1], [0, 0, 1, 1], [], []>} : vector<32x256xbf16>, vector<256x128xbf16>, vector<32x128xf32> -> vector<32x128xf32>
    %16 = arith.addf %12, %15 : vector<32x128xf32>
    %c0_12 = arith.constant 0 : index
    %c0_13 = arith.constant 0 : index
    %17 = vector.load %arg12[%c0_12, %c0_13] : memref<32x128xf32, #tpu.memory_space<vmem>>, vector<32x128xf32>
    tpu.vector_store %arg12[%c0_12, %c0_13], %16 {strides = array<i32>} : memref<32x128xf32, #tpu.memory_space<vmem>>, vector<32x128xf32>,
    return
  }
  func.func @transform_0(%arg0: i32, %arg1: i32) -> (i32, i32) {
    %c0_i32 = arith.constant 0 : i32
    %c0_i32_0 = arith.constant 0 : i32
    return %arg0, %c0_i32 : i32, i32
  }
  func.func @transform_1(%arg0: i32, %arg1: i32) -> (i32, i32) {
    %c0_i32 = arith.constant 0 : i32
    %c0_i32_0 = arith.constant 0 : i32
    return %arg0, %c0_i32 : i32, i32
  }
  func.func @transform_2(%arg0: i32, %arg1: i32) -> (i32, i32) {
    %c0_i32 = arith.constant 0 : i32
    %c0_i32_0 = arith.constant 0 : i32
    %c0_i32_1 = arith.constant 0 : i32
    return %c0_i32, %c0_i32_0 : i32, i32
  }
  func.func @transform_3(%arg0: i32, %arg1: i32) -> (i32, i32) {
    %c0_i32 = arith.constant 0 : i32
    %c0_i32_0 = arith.constant 0 : i32
    %c0_i32_1 = arith.constant 0 : i32
    return %c0_i32, %c0_i32_0 : i32, i32
  }
  func.func @transform_4(%arg0: i32, %arg1: i32) -> (i32, i32) {
    %c0_i32 = arith.constant 0 : i32
    %c0_i32_0 = arith.constant 0 : i32
    %c0_i32_1 = arith.constant 0 : i32
    return %c0_i32, %c0_i32_0 : i32, i32
  }
  func.func @transform_5(%arg0: i32, %arg1: i32) -> (i32, i32) {
    %c0_i32 = arith.constant 0 : i32
    %c0_i32_0 = arith.constant 0 : i32
    %c0_i32_1 = arith.constant 0 : i32
    return %c0_i32, %c0_i32_0 : i32, i32
  }
  func.func @transform_6(%arg0: i32, %arg1: i32) -> (i32, i32) {
    %c0_i32 = arith.constant 0 : i32
    %c0_i32_0 = arith.constant 0 : i32
    return %c0_i32, %arg1 : i32, i32
  }
  func.func @transform_7(%arg0: i32, %arg1: i32) -> (i32, i32) {
    %c0_i32 = arith.constant 0 : i32
    %c0_i32_0 = arith.constant 0 : i32
    return %c0_i32, %arg1 : i32, i32
  }
  func.func @transform_8(%arg0: i32, %arg1: i32) -> (i32, i32) {
    %c0_i32 = arith.constant 0 : i32
    %c0_i32_0 = arith.constant 0 : i32
    return %arg1, %c0_i32 : i32, i32
  }
  func.func @transform_9(%arg0: i32, %arg1: i32) -> (i32, i32) {
    %c0_i32 = arith.constant 0 : i32
    %c0_i32_0 = arith.constant 0 : i32
    %c0_i32_1 = arith.constant 0 : i32
    return %c0_i32, %c0_i32_0 : i32, i32
  }
  func.func @transform_10(%arg0: i32, %arg1: i32) -> (i32, i32) {
    %c0_i32 = arith.constant 0 : i32
    %c0_i32_0 = arith.constant 0 : i32
    return %arg0, %c0_i32 : i32, i32
  }
}

module attributes {stable_mosaic.version = 11 : i64} {
  func.func @_lm_head_kernel(%arg0: i32, %arg1: i32, %arg2: memref<32x128xf32, #tpu.memory_space<vmem>>, %arg3: memref<128x512xbf16, #tpu.memory_space<vmem>>, %arg4: memref<1x512xf32, #tpu.memory_space<vmem>>, %arg5: memref<32x512xf32, #tpu.memory_space<vmem>>) attributes {dimension_semantics = [#tpu.dimension_semantics<parallel>, #tpu.dimension_semantics<parallel>], iteration_bounds = array<i64: 1, 1>, scalar_prefetch = 0 : i64, scratch_operands = 0 : i64, tpu.core_type = #tpu.core_type<tc>, window_params = [{transform_indices = @transform_0, window_bounds = array<i64: 32, 128>}, {transform_indices = @transform_1, window_bounds = array<i64: 128, 512>}, {transform_indices = @transform_2, window_bounds = array<i64: 1, 512>}, {transform_indices = @transform_3, window_bounds = array<i64: 32, 512>}]} {
    %c0 = arith.constant 0 : index
    %c0_0 = arith.constant 0 : index
    %0 = vector.load %arg2[%c0, %c0_0] : memref<32x128xf32, #tpu.memory_space<vmem>>, vector<32x128xf32>
    %1 = arith.truncf %0 : vector<32x128xf32> to vector<32x128xbf16>
    %c0_1 = arith.constant 0 : index
    %c0_2 = arith.constant 0 : index
    %2 = vector.load %arg3[%c0_1, %c0_2] : memref<128x512xbf16, #tpu.memory_space<vmem>>, vector<128x512xbf16>
    %cst = arith.constant dense<0.000000e+00> : vector<32x512xf32>
    %3 = tpu.matmul %1, %2, %cst {dimension_numbers = #tpu.dot_dimension_numbers<[1], [0], [0], [1], [0, 0, 1, 1], [], []>} : vector<32x128xbf16>, vector<128x512xbf16>, vector<32x512xf32> -> vector<32x512xf32>
    %c0_3 = arith.constant 0 : index
    %c0_4 = arith.constant 0 : index
    %4 = vector.load %arg4[%c0_3, %c0_4] : memref<1x512xf32, #tpu.memory_space<vmem>>, vector<1x512xf32>
    %5 = vector.broadcast %4 : vector<1x512xf32> to vector<32x512xf32>
    %6 = arith.addf %3, %5 : vector<32x512xf32>
    %c0_5 = arith.constant 0 : index
    %c0_6 = arith.constant 0 : index
    %7 = vector.load %arg5[%c0_5, %c0_6] : memref<32x512xf32, #tpu.memory_space<vmem>>, vector<32x512xf32>
    tpu.vector_store %arg5[%c0_5, %c0_6], %6 {strides = array<i32>} : memref<32x512xf32, #tpu.memory_space<vmem>>, vector<32x512xf32>,
    return
  }
  func.func @transform_0(%arg0: i32, %arg1: i32) -> (i32, i32) {
    %c0_i32 = arith.constant 0 : i32
    %c0_i32_0 = arith.constant 0 : i32
    return %arg0, %c0_i32 : i32, i32
  }
  func.func @transform_1(%arg0: i32, %arg1: i32) -> (i32, i32) {
    %c0_i32 = arith.constant 0 : i32
    %c0_i32_0 = arith.constant 0 : i32
    return %c0_i32, %arg1 : i32, i32
  }
  func.func @transform_2(%arg0: i32, %arg1: i32) -> (i32, i32) {
    %c0_i32 = arith.constant 0 : i32
    %c0_i32_0 = arith.constant 0 : i32
    return %c0_i32, %arg1 : i32, i32
  }
  func.func @transform_3(%arg0: i32, %arg1: i32) -> (i32, i32) {
    %c0_i32 = arith.constant 0 : i32
    return %arg0, %arg1 : i32, i32
  }
}

</mosaic_0001>

<llo_original>
// kernel: transformer_lm_forward.8
$region0: #{transformer_lm_forward.8}
  #allocation0 [shape = 'u32[]', space=smem, size = 0x4, offset = 0x4, fixed_abs, tag = 'smem constant byte address 0x4 - core index']
  #allocation1 [shape = 'u32[72,128]{1,0:T(1,128)}', space=vmem, size = 0x9000, scoped, tag = 'internal scratch']
  #allocation2 [shape = 'f32[4,16,1]{2,1,0:T(8,128)}', space=vmem, size = 0x8000, scoped, tag = 'scratch operand']
  #allocation3 [shape = 'f32[4,16,1]{2,1,0:T(8,128)}', space=vmem, size = 0x8000, scoped, tag = 'scratch operand']
  #allocation4 [shape = 'f32[16,128]{1,0:T(8,128)}', space=vmem, size = 0x2000, scoped, tag = 'scratch operand']
  %s0 = inlined_call_operand.vmem [shape: bf16[32,384], index: 0, kind: input, shape index: {}, may-alias: {0,1,2}]
  %s1 = inlined_call_operand.vmem [shape: bf16[32,384], index: 1, kind: input, shape index: {}, may-alias: {0,1,2}]
  %s2 = inlined_call_operand.vmem [shape: bf16[32,384], index: 2, kind: input, shape index: {}, may-alias: {0,1,2}]
  %s3 = inlined_call_operand.vmem [shape: bf16[32,128], index: 3, kind: output, shape index: {}]
  %s4 = sld [smem:[#allocation0]]
  $region176: #{transformer_lm_forward.8} parent=0
    _
  %s6 = ssub.s32 1, %s4
  %s7 = scalar_select 0, %s6, %s4
  $region1: #{transformer_lm_forward.8} parent=0
    #allocation5 [shape = 'u8[8192]{0}', space=vmem, size = 0x2000, scoped, tag = 'input window, operand 0']
    #allocation6 [shape = 'u8[8192]{0}', space=vmem, size = 0x2000, scoped, tag = 'input window, operand 1']
    #allocation7 [shape = 'u8[8192]{0}', space=vmem, size = 0x2000, scoped, tag = 'input window, operand 2']
    loop: start=0, step=1, limit=4
    $region2: #{transformer_lm_forward.8} parent=1 // loop_pre_header
      _
    $region3: #{transformer_lm_forward.8} parent=1 // loop_header
      %s9 = sphi 0, %s13
      %p10 = scmp.ge.s32.totalorder %s9, 4
      %s16 = sphi 0, %s35
      %s17 = sphi 0, %s31
      %s18 = sphi 0, %s27
      %s19 = sphi 0, %s16
      %s20 = sphi 0, %s17
      %s21 = sphi 0, %s18
      %s22 = sphi 0, %s19
      %s23 = sphi 0, %s20
      %s24 = sphi 0, %s21
      %s40 = sphi 0, %s42
      %s43 = sphi 0, %s40
      %s44 = sphi 0, %s43
      %s60 = sphi 0, %s44
      %s72 = sphi 0, %s74
      %s75 = sphi 0, %s72
      %s76 = sphi 0, %s75
      %s92 = sphi 0, %s76
      %s104 = sphi 0, %s106
      %s107 = sphi 0, %s104
      %s108 = sphi 0, %s107
      %s124 = sphi 0, %s108
      %s132 = sphi 0, %s134
      %s135 = sphi 0, %s132
      %s136 = sphi 0, %s135
      %s152 = sphi 0, %s136
    $region4: #{transformer_lm_forward.8} parent=1 // loop_header_branch
      %12 = sbr.rel (%p10) target = $region8
    $region5: #{transformer_lm_forward.8} parent=1 // loop_body
      %s14 = ssub.s32 %s9, 1
      %s15 = ssub.s32 %s9, 2
      %s25 = sadd.s32 1, %s18
      %p26 = scmp.ge.s32.totalorder %s25, 1
      %s27 = scalar_select %p26, 0, %s25
      %s28 = sadd.s32 1, %s17
      %s29 = scalar_select %p26, %s28, %s17
      %p30 = scmp.ge.s32.totalorder %s29, 1
      %s31 = scalar_select %p30, 0, %s29
      %s32 = sadd.s32 1, %s16
      %s33 = scalar_select %p30, %s32, %s16
      %p34 = scmp.ge.s32.totalorder %s33, 2
      %s35 = scalar_select %p34, 0, %s33
      %s36 = ssub.s32 %s16, %s35
      %s37 = ssub.s32 %s17, %s31
      %s38 = sor.u32 %s36, %s37
      %p39 = scmp.eq.s32.totalorder %s38, 0
      %s41 = sadd.s32 %s40, 1
      %s42 = scalar_select %p39, %s40, %s41
      %p45 = pneg %p39
      %p46 = scmp.eq.s32.totalorder %s9, 1
      %p47 = por %p45, %p46
      %p48 = scmp.ne.s32.totalorder %s40, %s43
      %p49 = scmp.eq.s32.totalorder %s9, 0
      %p50 = por %p48, %p49
      %p51 = scmp.ne.s32.totalorder %s40, %s43
      %p52 = scmp.eq.s32.totalorder %s14, 1
      %p53 = por %p51, %p52
      %p54 = scmp.ne.s32.totalorder %s43, %s44
      %p55 = scmp.eq.s32.totalorder %s14, 0
      %p56 = por %p54, %p55
      %p57 = scmp.ne.s32.totalorder %s43, %s44
      %p58 = scmp.eq.s32.totalorder %s15, 1
      %p59 = por %p57, %p58
      %p61 = scmp.ne.s32.totalorder %s44, %s60
      %p62 = scmp.eq.s32.totalorder %s15, 0
      %p63 = por %p61, %p62
      %s64 = sadd.s32 %s16, %s18
      %s65 = sadd.s32 %s17, 1
      %s66 = sadd.s32 %s35, %s27
      %s67 = sadd.s32 %s31, 1
      %s68 = ssub.s32 %s64, %s66
      %s69 = ssub.s32 %s65, %s67
      %s70 = sor.u32 %s68, %s69
      %p71 = scmp.eq.s32.totalorder %s70, 0
      %s73 = sadd.s32 %s72, 1
      %s74 = scalar_select %p71, %s72, %s73
      %p77 = pneg %p71
      %p78 = scmp.eq.s32.totalorder %s9, 1
      %p79 = por %p77, %p78
      %p80 = scmp.ne.s32.totalorder %s72, %s75
      %p81 = scmp.eq.s32.totalorder %s9, 0
      %p82 = por %p80, %p81
      %p83 = scmp.ne.s32.totalorder %s72, %s75
      %p84 = scmp.eq.s32.totalorder %s14, 1
      %p85 = por %p83, %p84
      %p86 = scmp.ne.s32.totalorder %s75, %s76
      %p87 = scmp.eq.s32.totalorder %s14, 0
      %p88 = por %p86, %p87
      %p89 = scmp.ne.s32.totalorder %s75, %s76
      %p90 = scmp.eq.s32.totalorder %s15, 1
      %p91 = por %p89, %p90
      %p93 = scmp.ne.s32.totalorder %s76, %s92
      %p94 = scmp.eq.s32.totalorder %s15, 0
      %p95 = por %p93, %p94
      %s96 = sadd.s32 %s16, %s18
      %s97 = sadd.s32 %s17, 2
      %s98 = sadd.s32 %s35, %s27
      %s99 = sadd.s32 %s31, 2
      %s100 = ssub.s32 %s96, %s98
      %s101 = ssub.s32 %s97, %s99
      %s102 = sor.u32 %s100, %s101
      %p103 = scmp.eq.s32.totalorder %s102, 0
      %s105 = sadd.s32 %s104, 1
      %s106 = scalar_select %p103, %s104, %s105
      %p109 = pneg %p103
      %p110 = scmp.eq.s32.totalorder %s9, 1
      %p111 = por %p109, %p110
      %p112 = scmp.ne.s32.totalorder %s104, %s107
      %p113 = scmp.eq.s32.totalorder %s9, 0
      %p114 = por %p112, %p113
      %p115 = scmp.ne.s32.totalorder %s104, %s107
      %p116 = scmp.eq.s32.totalorder %s14, 1
      %p117 = por %p115, %p116
      %p118 = scmp.ne.s32.totalorder %s107, %s108
      %p119 = scmp.eq.s32.totalorder %s14, 0
      %p120 = por %p118, %p119
      %p121 = scmp.ne.s32.totalorder %s107, %s108
      %p122 = scmp.eq.s32.totalorder %s15, 1
      %p123 = por %p121, %p122
      %p125 = scmp.ne.s32.totalorder %s108, %s124
      %p126 = scmp.eq.s32.totalorder %s15, 0
      %p127 = por %p125, %p126
      %s128 = ssub.s32 %s16, %s35
      %s129 = ssub.s32 %s17, %s31
      %s130 = sor.u32 %s128, %s129
      %p131 = scmp.eq.s32.totalorder %s130, 0
      %s133 = sadd.s32 %s132, 1
      %s134 = scalar_select %p131, %s132, %s133
      %p137 = pneg %p131
      %p138 = scmp.eq.s32.totalorder %s9, 1
      %p139 = por %p137, %p138
      %p140 = scmp.ne.s32.totalorder %s132, %s135
      %p141 = scmp.eq.s32.totalorder %s9, 0
      %p142 = por %p140, %p141
      %p143 = scmp.ne.s32.totalorder %s132, %s135
      %p144 = scmp.eq.s32.totalorder %s14, 1
      %p145 = por %p143, %p144
      %p146 = scmp.ne.s32.totalorder %s135, %s136
      %p147 = scmp.eq.s32.totalorder %s14, 0
      %p148 = por %p146, %p147
      %p149 = scmp.ne.s32.totalorder %s135, %s136
      %p150 = scmp.eq.s32.totalorder %s15, 1
      %p151 = por %p149, %p150
      %p153 = scmp.ne.s32.totalorder %s136, %s152
      %p154 = scmp.eq.s32.totalorder %s15, 0
      %p155 = por %p153, %p154
      %p156 = scmp.le.s32.totalorder 1, %s9
      %p157 = scmp.lt.s32.totalorder %s9, 3
      %p158 = pnand %p156, %p157
      %p159 = pneg %p158
      // Predicated region
      $region9: #{transformer_lm_forward.8} parent=5 // pred_check
        _
      $region10: #{transformer_lm_forward.8} parent=5 // pred_check_branch
        %161 = sbr.rel (%p158) target = $region12
      $region11: #{transformer_lm_forward.8} parent=5 // pred_region
        %s162 = ssub.s32 %s9, 1
      $region12: #{transformer_lm_forward.8} parent=5 // pred_fallthru
        _
      %p163 = scmp.lt.s32.totalorder %s9, 2
      // Predicated region
      $region13: #{transformer_lm_forward.8} parent=5 // pred_check
        %p164 = pneg %p163
      $region14: #{transformer_lm_forward.8} parent=5 // pred_check_branch
        %166 = sbr.rel (%p164) target = $region16
      $region15: #{transformer_lm_forward.8} parent=5 // pred_region
        // Predicated region
        $region17: #{transformer_lm_forward.8} parent=15 // pred_check
          %p167 = pneg %p50
        $region18: #{transformer_lm_forward.8} parent=15 // pred_check_branch
          %169 = sbr.rel (%p167) target = $region20
        $region19: #{transformer_lm_forward.8} parent=15 // pred_region
          %s170 = sand.u32 %s40, 1
          %s171 = sand.u32 %s40, 1
          %s172 = smul.addr %s171, 8
          %s173 = scalar_lea.vmem [#allocation5], %s172
          %s174 = smul.u32 2, %s16
          %s175 = smul.addr %s174, 3
          %s176 = sadd.s32 %s17, %s175
          %s177 = smul.addr %s176, 4
          %s178 = scalar_lea.vmem %s0, %s177
          // Predicated region
          $region21: #{transformer_lm_forward.8} parent=19 // pred_check
            _
          $region22: #{transformer_lm_forward.8} parent=19 // pred_check_branch
            %180 = sbr.rel (0) target = $region24
          $region23: #{transformer_lm_forward.8} parent=19 // pred_region
            // Predicated region
            $region25: #{transformer_lm_forward.8} parent=23 // pred_check
              _
            $region26: #{transformer_lm_forward.8} parent=23 // pred_check_branch
              %182 = sbr.rel target = $region28
            $region27: #{transformer_lm_forward.8} parent=23 // pred_region
              // Predicated region
              $region40: #{transformer_lm_forward.8} parent=27 // pred_check
                _
              $region41: #{transformer_lm_forward.8} parent=27 // pred_check_branch
                %200 = sbr.rel (0) target = $region43
              $region42: #{transformer_lm_forward.8} parent=27 // pred_region
                loop: start=0, step=1, limit=1
                $region44: #{transformer_lm_forward.8} parent=42 // loop_pre_header
                  _
                $region45: #{transformer_lm_forward.8} parent=42 // loop_header
                  %s202 = sphi 0, %s206
                  %p203 = scmp.ge.s32.totalorder %s202, 1
                  %s207 = sphi %s178, %s178
                  %s208 = sphi %s173, %s173
                $region46: #{transformer_lm_forward.8} parent=42 // loop_header_branch
                  %205 = sbr.rel (%p203) target = $region50
                $region47: #{transformer_lm_forward.8} parent=42 // loop_body
                  _
                $region48: #{transformer_lm_forward.8} parent=42 // loop_footer
                  %s206 = sadd.s32 1, %s202
                $region49: #{transformer_lm_forward.8} parent=42 // loop_footer_branch
                  %201 = sbr.rel target = $region45
                $region50: #{transformer_lm_forward.8} parent=42 // loop_exit
                  _
                %s210 = ssub.s32 16, 1
                loop: start=0, step=1, limit=1
                $region51: #{transformer_lm_forward.8} parent=42 // loop_pre_header
                  _
                $region52: #{transformer_lm_forward.8} parent=42 // loop_header
                  %s212 = sphi 0, %s216
                  %p213 = scmp.ge.s32.totalorder %s212, 1
                  %s217 = sphi %s178, %s178
                  %s218 = sphi %s173, %s173
                $region53: #{transformer_lm_forward.8} parent=42 // loop_header_branch
                  %215 = sbr.rel (%p213) target = $region57
                $region54: #{transformer_lm_forward.8} parent=42 // loop_body
                  %v219 = vld [vmem:[%s217] sm:%s210]
                  %220 = vst [vmem:[%s218] sm:%s210] %v219
                  %v221 = vld [vmem:[%s217 + $0xc] sm:%s210]
                  %222 = vst [vmem:[%s218 + $0x4] sm:%s210] %v221
                $region55: #{transformer_lm_forward.8} parent=42 // loop_footer
                  %s216 = sadd.s32 1, %s212
                $region56: #{transformer_lm_forward.8} parent=42 // loop_footer_branch
                  %211 = sbr.rel target = $region52
                $region57: #{transformer_lm_forward.8} parent=42 // loop_exit
                  _
              $region43: #{transformer_lm_forward.8} parent=27 // pred_fallthru
                _
            $region28: #{transformer_lm_forward.8} parent=23 // pred_fallthru
              _
            // Predicated region
            $region29: #{transformer_lm_forward.8} parent=23 // pred_check
              _
            $region30: #{transformer_lm_forward.8} parent=23 // pred_check_branch
              %184 = sbr.rel (0) target = $region32
            $region31: #{transformer_lm_forward.8} parent=23 // pred_region
              %s186 = ssub.s32 16, 1
              loop: start=0, step=1, limit=1
              $region33: #{transformer_lm_forward.8} parent=31 // loop_pre_header
                _
              $region34: #{transformer_lm_forward.8} parent=31 // loop_header
                %s188 = sphi 0, %s192
                %p189 = scmp.ge.s32.totalorder %s188, 1
                %s193 = sphi %s178, %s178
                %s194 = sphi %s173, %s173
              $region35: #{transformer_lm_forward.8} parent=31 // loop_header_branch
                %191 = sbr.rel (%p189) target = $region39
              $region36: #{transformer_lm_forward.8} parent=31 // loop_body
                %v195 = vld [vmem:[%s193] sm:%s186]
                %196 = vst [vmem:[%s194] sm:%s186] %v195
                %v197 = vld [vmem:[%s193 + $0xc] sm:%s186]
                %198 = vst [vmem:[%s194 + $0x4] sm:%s186] %v197
              $region37: #{transformer_lm_forward.8} parent=31 // loop_footer
                %s192 = sadd.s32 1, %s188
              $region38: #{transformer_lm_forward.8} parent=31 // loop_footer_branch
                %187 = sbr.rel target = $region34
              $region39: #{transformer_lm_forward.8} parent=31 // loop_exit
                _
            $region32: #{transformer_lm_forward.8} parent=23 // pred_fallthru
              _
          $region24: #{transformer_lm_forward.8} parent=19 // pred_fallthru
            _
          %223 = vnop
        $region20: #{transformer_lm_forward.8} parent=15 // pred_fallthru
          _
        // Predicated region
        $region58: #{transformer_lm_forward.8} parent=15 // pred_check
          %p224 = pneg %p82
        $region59: #{transformer_lm_forward.8} parent=15 // pred_check_branch
          %226 = sbr.rel (%p224) target = $region61
        $region60: #{transformer_lm_forward.8} parent=15 // pred_region
          %s227 = sand.u32 %s72, 1
          %s228 = sand.u32 %s72, 1
          %s229 = smul.addr %s228, 8
          %s230 = scalar_lea.vmem [#allocation6], %s229
          %s231 = sadd.s32 %s16, %s18
          %s232 = sadd.s32 %s17, 1
          %s233 = smul.u32 2, %s231
          %s234 = smul.addr %s233, 3
          %s235 = sadd.s32 %s232, %s234
          %s236 = smul.addr %s235, 4
          %s237 = scalar_lea.vmem %s1, %s236
          // Predicated region
          $region62: #{transformer_lm_forward.8} parent=60 // pred_check
            _
          $region63: #{transformer_lm_forward.8} parent=60 // pred_check_branch
            %239 = sbr.rel (0) target = $region65
          $region64: #{transformer_lm_forward.8} parent=60 // pred_region
            // Predicated region
            $region66: #{transformer_lm_forward.8} parent=64 // pred_check
              _
            $region67: #{transformer_lm_forward.8} parent=64 // pred_check_branch
              %241 = sbr.rel target = $region69
            $region68: #{transformer_lm_forward.8} parent=64 // pred_region
              // Predicated region
              $region81: #{transformer_lm_forward.8} parent=68 // pred_check
                _
              $region82: #{transformer_lm_forward.8} parent=68 // pred_check_branch
                %259 = sbr.rel (0) target = $region84
              $region83: #{transformer_lm_forward.8} parent=68 // pred_region
                loop: start=0, step=1, limit=1
                $region85: #{transformer_lm_forward.8} parent=83 // loop_pre_header
                  _
                $region86: #{transformer_lm_forward.8} parent=83 // loop_header
                  %s261 = sphi 0, %s265
                  %p262 = scmp.ge.s32.totalorder %s261, 1
                  %s266 = sphi %s237, %s237
                  %s267 = sphi %s230, %s230
                $region87: #{transformer_lm_forward.8} parent=83 // loop_header_branch
                  %264 = sbr.rel (%p262) target = $region91
                $region88: #{transformer_lm_forward.8} parent=83 // loop_body
                  _
                $region89: #{transformer_lm_forward.8} parent=83 // loop_footer
                  %s265 = sadd.s32 1, %s261
                $region90: #{transformer_lm_forward.8} parent=83 // loop_footer_branch
                  %260 = sbr.rel target = $region86
                $region91: #{transformer_lm_forward.8} parent=83 // loop_exit
                  _
                %s269 = ssub.s32 16, 1
                loop: start=0, step=1, limit=1
                $region92: #{transformer_lm_forward.8} parent=83 // loop_pre_header
                  _
                $region93: #{transformer_lm_forward.8} parent=83 // loop_header
                  %s271 = sphi 0, %s275
                  %p272 = scmp.ge.s32.totalorder %s271, 1
                  %s276 = sphi %s237, %s237
                  %s277 = sphi %s230, %s230
                $region94: #{transformer_lm_forward.8} parent=83 // loop_header_branch
                  %274 = sbr.rel (%p272) target = $region98
                $region95: #{transformer_lm_forward.8} parent=83 // loop_body
                  %v278 = vld [vmem:[%s276] sm:%s269]
                  %279 = vst [vmem:[%s277] sm:%s269] %v278
                  %v280 = vld [vmem:[%s276 + $0xc] sm:%s269]
                  %281 = vst [vmem:[%s277 + $0x4] sm:%s269] %v280
                $region96: #{transformer_lm_forward.8} parent=83 // loop_footer
                  %s275 = sadd.s32 1, %s271
                $region97: #{transformer_lm_forward.8} parent=83 // loop_footer_branch
                  %270 = sbr.rel target = $region93
                $region98: #{transformer_lm_forward.8} parent=83 // loop_exit
                  _
              $region84: #{transformer_lm_forward.8} parent=68 // pred_fallthru
                _
            $region69: #{transformer_lm_forward.8} parent=64 // pred_fallthru
              _
            // Predicated region
            $region70: #{transformer_lm_forward.8} parent=64 // pred_check
              _
            $region71: #{transformer_lm_forward.8} parent=64 // pred_check_branch
              %243 = sbr.rel (0) target = $region73
            $region72: #{transformer_lm_forward.8} parent=64 // pred_region
              %s245 = ssub.s32 16, 1
              loop: start=0, step=1, limit=1
              $region74: #{transformer_lm_forward.8} parent=72 // loop_pre_header
                _
              $region75: #{transformer_lm_forward.8} parent=72 // loop_header
                %s247 = sphi 0, %s251
                %p248 = scmp.ge.s32.totalorder %s247, 1
                %s252 = sphi %s237, %s237
                %s253 = sphi %s230, %s230
              $region76: #{transformer_lm_forward.8} parent=72 // loop_header_branch
                %250 = sbr.rel (%p248) target = $region80
              $region77: #{transformer_lm_forward.8} parent=72 // loop_body
                %v254 = vld [vmem:[%s252] sm:%s245]
                %255 = vst [vmem:[%s253] sm:%s245] %v254
                %v256 = vld [vmem:[%s252 + $0xc] sm:%s245]
                %257 = vst [vmem:[%s253 + $0x4] sm:%s245] %v256
              $region78: #{transformer_lm_forward.8} parent=72 // loop_footer
                %s251 = sadd.s32 1, %s247
              $region79: #{transformer_lm_forward.8} parent=72 // loop_footer_branch
                %246 = sbr.rel target = $region75
              $region80: #{transformer_lm_forward.8} parent=72 // loop_exit
                _
            $region73: #{transformer_lm_forward.8} parent=64 // pred_fallthru
              _
          $region65: #{transformer_lm_forward.8} parent=60 // pred_fallthru
            _
          %282 = vnop
        $region61: #{transformer_lm_forward.8} parent=15 // pred_fallthru
          _
        // Predicated region
        $region99: #{transformer_lm_forward.8} parent=15 // pred_check
          %p283 = pneg %p114
        $region100: #{transformer_lm_forward.8} parent=15 // pred_check_branch
          %285 = sbr.rel (%p283) target = $region102
        $region101: #{transformer_lm_forward.8} parent=15 // pred_region
          %s286 = sand.u32 %s104, 1
          %s287 = sand.u32 %s104, 1
          %s288 = smul.addr %s287, 8
          %s289 = scalar_lea.vmem [#allocation7], %s288
          %s290 = sadd.s32 %s16, %s18
          %s291 = sadd.s32 %s17, 2
          %s292 = smul.u32 2, %s290
          %s293 = smul.addr %s292, 3
          %s294 = sadd.s32 %s291, %s293
          %s295 = smul.addr %s294, 4
          %s296 = scalar_lea.vmem %s2, %s295
          // Predicated region
          $region103: #{transformer_lm_forward.8} parent=101 // pred_check
            _
          $region104: #{transformer_lm_forward.8} parent=101 // pred_check_branch
            %298 = sbr.rel (0) target = $region106
          $region105: #{transformer_lm_forward.8} parent=101 // pred_region
            // Predicated region
            $region107: #{transformer_lm_forward.8} parent=105 // pred_check
              _
            $region108: #{transformer_lm_forward.8} parent=105 // pred_check_branch
              %300 = sbr.rel target = $region110
            $region109: #{transformer_lm_forward.8} parent=105 // pred_region
              // Predicated region
              $region122: #{transformer_lm_forward.8} parent=109 // pred_check
                _
              $region123: #{transformer_lm_forward.8} parent=109 // pred_check_branch
                %318 = sbr.rel (0) target = $region125
              $region124: #{transformer_lm_forward.8} parent=109 // pred_region
                loop: start=0, step=1, limit=1
                $region126: #{transformer_lm_forward.8} parent=124 // loop_pre_header
                  _
                $region127: #{transformer_lm_forward.8} parent=124 // loop_header
                  %s320 = sphi 0, %s324
                  %p321 = scmp.ge.s32.totalorder %s320, 1
                  %s325 = sphi %s296, %s296
                  %s326 = sphi %s289, %s289
                $region128: #{transformer_lm_forward.8} parent=124 // loop_header_branch
                  %323 = sbr.rel (%p321) target = $region132
                $region129: #{transformer_lm_forward.8} parent=124 // loop_body
                  _
                $region130: #{transformer_lm_forward.8} parent=124 // loop_footer
                  %s324 = sadd.s32 1, %s320
                $region131: #{transformer_lm_forward.8} parent=124 // loop_footer_branch
                  %319 = sbr.rel target = $region127
                $region132: #{transformer_lm_forward.8} parent=124 // loop_exit
                  _
                %s328 = ssub.s32 16, 1
                loop: start=0, step=1, limit=1
                $region133: #{transformer_lm_forward.8} parent=124 // loop_pre_header
                  _
                $region134: #{transformer_lm_forward.8} parent=124 // loop_header
                  %s330 = sphi 0, %s334
                  %p331 = scmp.ge.s32.totalorder %s330, 1
                  %s335 = sphi %s296, %s296
                  %s336 = sphi %s289, %s289
                $region135: #{transformer_lm_forward.8} parent=124 // loop_header_branch
                  %333 = sbr.rel (%p331) target = $region139
                $region136: #{transformer_lm_forward.8} parent=124 // loop_body
                  %v337 = vld [vmem:[%s335] sm:%s328]
                  %338 = vst [vmem:[%s336] sm:%s328] %v337
                  %v339 = vld [vmem:[%s335 + $0xc] sm:%s328]
                  %340 = vst [vmem:[%s336 + $0x4] sm:%s328] %v339
                $region137: #{transformer_lm_forward.8} parent=124 // loop_footer
                  %s334 = sadd.s32 1, %s330
                $region138: #{transformer_lm_forward.8} parent=124 // loop_footer_branch
                  %329 = sbr.rel target = $region134
                $region139: #{transformer_lm_forward.8} parent=124 // loop_exit
                  _
              $region125: #{transformer_lm_forward.8} parent=109 // pred_fallthru
                _
            $region110: #{transformer_lm_forward.8} parent=105 // pred_fallthru
              _
            // Predicated region
            $region111: #{transformer_lm_forward.8} parent=105 // pred_check
              _
            $region112: #{transformer_lm_forward.8} parent=105 // pred_check_branch
              %302 = sbr.rel (0) target = $region114
            $region113: #{transformer_lm_forward.8} parent=105 // pred_region
              %s304 = ssub.s32 16, 1
              loop: start=0, step=1, limit=1
              $region115: #{transformer_lm_forward.8} parent=113 // loop_pre_header
                _
              $region116: #{transformer_lm_forward.8} parent=113 // loop_header
                %s306 = sphi 0, %s310
                %p307 = scmp.ge.s32.totalorder %s306, 1
                %s311 = sphi %s296, %s296
                %s312 = sphi %s289, %s289
              $region117: #{transformer_lm_forward.8} parent=113 // loop_header_branch
                %309 = sbr.rel (%p307) target = $region121
              $region118: #{transformer_lm_forward.8} parent=113 // loop_body
                %v313 = vld [vmem:[%s311] sm:%s304]
                %314 = vst [vmem:[%s312] sm:%s304] %v313
                %v315 = vld [vmem:[%s311 + $0xc] sm:%s304]
                %316 = vst [vmem:[%s312 + $0x4] sm:%s304] %v315
              $region119: #{transformer_lm_forward.8} parent=113 // loop_footer
                %s310 = sadd.s32 1, %s306
              $region120: #{transformer_lm_forward.8} parent=113 // loop_footer_branch
                %305 = sbr.rel target = $region116
              $region121: #{transformer_lm_forward.8} parent=113 // loop_exit
                _
            $region114: #{transformer_lm_forward.8} parent=105 // pred_fallthru
              _
          $region106: #{transformer_lm_forward.8} parent=101 // pred_fallthru
            _
          %341 = vnop
        $region102: #{transformer_lm_forward.8} parent=15 // pred_fallthru
          _
      $region16: #{transformer_lm_forward.8} parent=5 // pred_fallthru
        _
      %p342 = scmp.le.s32.totalorder 1, %s9
      %p343 = scmp.lt.s32.totalorder %s9, 3
      %p344 = pnand %p342, %p343
      %p345 = pneg %p344
      // Predicated region
      $region140: #{transformer_lm_forward.8} parent=5 // pred_check
        _
      $region141: #{transformer_lm_forward.8} parent=5 // pred_check_branch
        %347 = sbr.rel (%p344) target = $region143
      $region142: #{transformer_lm_forward.8} parent=5 // pred_region
        %s348 = ssub.s32 %s9, 1
        %s349 = sand.u32 %s43, 1
        %s350 = sand.u32 %s43, 1
        %s351 = smul.addr %s350, 8
        %s352 = scalar_lea.vmem [#allocation5], %s351
        // Predicated region
        $region144: #{transformer_lm_forward.8} parent=142 // pred_check
          %p353 = pneg %p56
        $region145: #{transformer_lm_forward.8} parent=142 // pred_check_branch
          %355 = sbr.rel (%p353) target = $region147
        $region146: #{transformer_lm_forward.8} parent=142 // pred_region
          _
        $region147: #{transformer_lm_forward.8} parent=142 // pred_fallthru
          _
        %s356 = sand.u32 %s75, 1
        %s357 = sand.u32 %s75, 1
        %s358 = smul.addr %s357, 8
        %s359 = scalar_lea.vmem [#allocation6], %s358
        // Predicated region
        $region148: #{transformer_lm_forward.8} parent=142 // pred_check
          %p360 = pneg %p88
        $region149: #{transformer_lm_forward.8} parent=142 // pred_check_branch
          %362 = sbr.rel (%p360) target = $region151
        $region150: #{transformer_lm_forward.8} parent=142 // pred_region
          _
        $region151: #{transformer_lm_forward.8} parent=142 // pred_fallthru
          _
        %s363 = sand.u32 %s107, 1
        %s364 = sand.u32 %s107, 1
        %s365 = smul.addr %s364, 8
        %s366 = scalar_lea.vmem [#allocation7], %s365
        // Predicated region
        $region152: #{transformer_lm_forward.8} parent=142 // pred_check
          %p367 = pneg %p120
        $region153: #{transformer_lm_forward.8} parent=142 // pred_check_branch
          %369 = sbr.rel (%p367) target = $region155
        $region154: #{transformer_lm_forward.8} parent=142 // pred_region
          _
        $region155: #{transformer_lm_forward.8} parent=142 // pred_fallthru
          _
        %s370 = sand.u32 %s43, 1
        %s371 = sand.u32 %s43, 1
        %s372 = smul.addr %s371, 8
        %s373 = scalar_lea.vmem [#allocation5], %s372
        %p374 = pneg %p56
        %p375 = pneg %p53
        %s376 = sand.u32 %s75, 1
        %s377 = sand.u32 %s75, 1
        %s378 = smul.addr %s377, 8
        %s379 = scalar_lea.vmem [#allocation6], %s378
        %p380 = pneg %p88
        %p381 = pneg %p85
        %s382 = sand.u32 %s107, 1
        %s383 = sand.u32 %s107, 1
        %s384 = smul.addr %s383, 8
        %s385 = scalar_lea.vmem [#allocation7], %s384
        %p386 = pneg %p120
        %p387 = pneg %p117
        %p388 = pneg %p148
        %p389 = pneg %p145
        %s390 = smul.u32 2, %s19
        %p391 = scmp.lt.s32.totalorder %s390, 3
        %s392 = scalar_select %p391, %s390, 3
        %p393 = scmp.lt.s32.totalorder %s20, 0
        %s394 = scalar_select %p393, %s20, 0
        %s395 = sadd.s32 %s394, %s392
        %s396 = smul.addr %s395, 4
        %s397 = scalar_lea.vmem %s3, %s396
        %s398 = smul.u32 2, %s19
        %s399 = sadd.s32 %s19, %s21
        %s400 = sadd.s32 %s20, 1
        %s401 = smul.u32 2, %s399
        %s402 = sadd.s32 %s19, %s21
        %s403 = sadd.s32 %s20, 2
        %s404 = smul.u32 2, %s402
        %s405 = smul.u32 2, %s19
        %p406 = scmp.lt.s32.totalorder %s405, 3
        %s407 = scalar_select %p406, %s405, 3
        %p408 = scmp.lt.s32.totalorder %s20, 0
        %s409 = scalar_select %p408, %s20, 0
        %s410 = sadd.s32 %s409, %s407
        %s411 = smul.addr %s410, 4
        %s412 = scalar_lea.vmem %s3, %s411
        %s413 = smul.u32 2, %s19
        %p415 = scmp.eq.s32.totalorder %s21, 0
        // Predicated region
        $region156: #{transformer_lm_forward.8} parent=142 // pred_check
          %p416 = pneg %p415
        $region157: #{transformer_lm_forward.8} parent=142 // pred_check_branch
          %418 = sbr.rel (%p416) target = $region159
        $region158: #{transformer_lm_forward.8} parent=142 // pred_region
          %vm419 = vcmask 7168
          %420 = vst.msk [vmem:[#allocation2] sm:$0xff] %vm419, -inf
          %421 = vst.msk [vmem:[#allocation2 + $0x8] sm:$0xff] %vm419, -inf
          %422 = vst.msk [vmem:[#allocation2 + $0x10] sm:$0xff] %vm419, -inf
          %423 = vst.msk [vmem:[#allocation2 + $0x18] sm:$0xff] %vm419, -inf
          %424 = vst.msk [vmem:[#allocation2 + $0x20] sm:$0xff] %vm419, -inf
          %425 = vst.msk [vmem:[#allocation2 + $0x28] sm:$0xff] %vm419, -inf
          %426 = vst.msk [vmem:[#allocation2 + $0x30] sm:$0xff] %vm419, -inf
          %427 = vst.msk [vmem:[#allocation2 + $0x38] sm:$0xff] %vm419, -inf
          %428 = vst.msk [vmem:[#allocation3] sm:$0xff] %vm419, 0.0
          %429 = vst.msk [vmem:[#allocation3 + $0x8] sm:$0xff] %vm419, 0.0
          %430 = vst.msk [vmem:[#allocation3 + $0x10] sm:$0xff] %vm419, 0.0
          %431 = vst.msk [vmem:[#allocation3 + $0x18] sm:$0xff] %vm419, 0.0
          %432 = vst.msk [vmem:[#allocation3 + $0x20] sm:$0xff] %vm419, 0.0
          %433 = vst.msk [vmem:[#allocation3 + $0x28] sm:$0xff] %vm419, 0.0
          %434 = vst.msk [vmem:[#allocation3 + $0x30] sm:$0xff] %vm419, 0.0
          %435 = vst.msk [vmem:[#allocation3 + $0x38] sm:$0xff] %vm419, 0.0
          %436 = vst [vmem:[#allocation4] sm:$0xff] 0.0
          %437 = vst [vmem:[#allocation4 + $0x8] sm:$0xff] 0.0
        $region159: #{transformer_lm_forward.8} parent=142 // pred_fallthru
          _
        %v438 = vlaneseq
        %v439 = vshrl.u32 %v438, 7
        %v440 = vadd.s32 %v439, 8
        %v441 = vlaneseq
        %v442 = vand.u32 %v441, 127
        %s443 = smul.u32 %s21, 16
        %v444 = vstv %s443
        %v445 = vadd.s32 %v442, %v444
        %vm446 = vcmp.le.s32.totalorder %v445, %v439
        %vm447 = vcmp.le.s32.totalorder %v445, %v440
        %v448 = vld [vmem:[%s352] sm:$0xf]
        %v449 = vld [vmem:[%s352 + $0x4] sm:$0xf]
        %v450 = vld [vmem:[%s359] sm:$0xf]
        %v451 = vld [vmem:[%s359 + $0x4] sm:$0xf]
        %v452 = vld [vmem:[%s366] sm:$0xf]
        %v453 = vld [vmem:[%s366 + $0x4] sm:$0xf]
        %v456 = vunpack.c.l.b16 %v448
        %v457 = vunpack.c.l.b16 %v449
        %v458 = vpack.c.b16 %v457, %v456
        %v461 = vunpack.c.l.b16 %v450
        %v462 = vunpack.c.l.b16 %v451
        %v463 = vpack.c.b16 %v462, %v461
        %vm464 = vcmask 261120
        %v466 = vsel %vm464, %v458, 0
        %v469 = vsel %vm464, %v463, 0
        %471 = vmatpush.bf16.xpose.msra.mxu0 0
        %472 = vmatpush.bf16.xpose.msra.mxu0 0
        %473 = vmatpush.bf16.xpose.msra.mxu0 0
        %474 = vmatpush.bf16.xpose.msra.mxu0 0
        %475 = vmatpush.bf16.xpose.msra.mxu0 0
        %476 = vmatpush.bf16.xpose.msra.mxu0 0
        %477 = vmatpush.bf16.xpose.msra.mxu0 0
        %478 = vmatpush.bf16.xpose.msra.mxu0 %v469
        %479 = vmatmul.bf16.gmra.mxu0 %v466
        %v480 = vpop.f32.mrf.mxu0
        %v481 = vadd.f32 0.0, %v480
        %v482 = vpop.f32.mrf.mxu0
        %v483 = vadd.f32 0.0, %v482
        %484 = vdwg.mxu0
        %v485 = vsel %vm446, %v481, -1e+30
        %v486 = vsel %vm447, %v483, -1e+30
        %v487 = vld [vmem:[#allocation2] sm:$0xff]
        %v488 = vld [vmem:[#allocation2 + $0x8] sm:$0xff]
        %vm489 = vcmask 130048
        %v490 = vsel %vm489, %v485, -inf
        %491 = vmax.xlane.f32.xlu0 %v490
        %v492 = vpop.xlane.xlu0 %491
        %v493 = vsel %vm489, %v486, -inf
        %494 = vmax.xlane.f32.xlu0 %v493
        %v495 = vpop.xlane.xlu0 %494
        %v496 = vmax.f32 %v487, %v492
        %v497 = vmax.f32 %v488, %v495
        %v498 = vsub.f32 %v487, %v496
        %v499 = vsub.f32 %v488, %v497
        %v500 = vmul.f32 %v498, 1.442695
        %v501 = vpow.pop %v500
        %v502 = vmul.f32 %v499, 1.442695
        %v503 = vpow.pop %v502
        %505 = vset.pattern.permute.xlu0 0
        %506 = vperm.xlu0 %505, %v496
        %v507 = vpop.permute.xlu0 %506
        %510 = vset.pattern.permute.xlu0 0
        %511 = vperm.xlu0 %510, %v497
        %v512 = vpop.permute.xlu0 %511
        %v514 = vsub.f32 %v485, %v507
        %v515 = vsub.f32 %v486, %v512
        %v516 = vmul.f32 %v514, 1.442695
        %v517 = vpow.pop %v516
        %v518 = vmul.f32 %v515, 1.442695
        %v519 = vpow.pop %v518
        %v520 = vld [vmem:[#allocation3] sm:$0xff]
        %v521 = vld [vmem:[#allocation3 + $0x8] sm:$0xff]
        %v522 = vmul.f32 %v501, %v520
        %v523 = vmul.f32 %v503, %v521
        %v524 = vsel %vm489, %v517, 0.0
        %525 = vadd.xlane.f32.xlu0 %v524
        %v526 = vpop.xlane.xlu0 %525
        %v527 = vsel %vm489, %v519, 0.0
        %528 = vadd.xlane.f32.xlu0 %v527
        %v529 = vpop.xlane.xlu0 %528
        %v530 = vadd.f32 %v522, %v526
        %v531 = vadd.f32 %v523, %v529
        %vm532 = vcmask 7168
        %533 = vst.msk [vmem:[#allocation3] sm:$0xff] %vm532, %v530
        %534 = vst.msk [vmem:[#allocation3 + $0x8] sm:$0xff] %vm532, %v531
        %v535 = vld [vmem:[#allocation4] sm:$0xff]
        %v536 = vld [vmem:[#allocation4 + $0x8] sm:$0xff]
        %538 = vset.pattern.permute.xlu0 0
        %539 = vperm.xlu0 %538, %v501
        %v540 = vpop.permute.xlu0 %539
        %543 = vset.pattern.permute.xlu0 0
        %544 = vperm.xlu0 %543, %v503
        %v545 = vpop.permute.xlu0 %544
        %v547 = vmul.f32 %v540, %v535
        %v548 = vmul.f32 %v545, %v536
        %v549 = vpack.c.bf16 %v519, %v517
        %v552 = vunpack.c.l.b16 %v452
        %v553 = vunpack.c.l.b16 %v453
        %v554 = vpack.c.b16 %v553, %v552
        %v557 = vsel %vm489, %v549, 0
        %559 = vmatpush.bf16.msra.mxu0 0
        %560 = vmatpush.bf16.msra.mxu0 0
        %561 = vmatpush.bf16.msra.mxu0 0
        %562 = vmatpush.bf16.msra.mxu0 0
        %563 = vmatpush.bf16.msra.mxu0 0
        %564 = vmatpush.bf16.msra.mxu0 0
        %565 = vmatpush.bf16.msra.mxu0 0
        %566 = vmatpush.bf16.msra.mxu0 %v554
        %567 = vmatmul.bf16.gmra.mxu0 %v557
        %v568 = vpop.f32.mrf.mxu0
        %v569 = vadd.f32 0.0, %v568
        %v570 = vpop.f32.mrf.mxu0
        %v571 = vadd.f32 0.0, %v570
        %572 = vdwg.mxu0
        %v573 = vadd.f32 %v547, %v569
        %v574 = vadd.f32 %v548, %v571
        %575 = vst.msk [vmem:[#allocation4] sm:$0xff] %vm464, %v573
        %576 = vst.msk [vmem:[#allocation4 + $0x8] sm:$0xff] %vm464, %v574
        %577 = vst.msk [vmem:[#allocation2] sm:$0xff] %vm532, %v496
        %578 = vst.msk [vmem:[#allocation2 + $0x8] sm:$0xff] %vm532, %v497
        %579 = vrot.lane.b32.xlu0 %v458, 96
        %v580 = vpop.permute.xlu0 %579
        %581 = vrot.lane.b32.xlu0 %v463, 96
        %v582 = vpop.permute.xlu0 %581
        %v584 = vsel %vm464, %v580, 0
        %v587 = vsel %vm464, %v582, 0
        %589 = vmatpush.bf16.xpose.msra.mxu0 0
        %590 = vmatpush.bf16.xpose.msra.mxu0 0
        %591 = vmatpush.bf16.xpose.msra.mxu0 0
        %592 = vmatpush.bf16.xpose.msra.mxu0 0
        %593 = vmatpush.bf16.xpose.msra.mxu0 0
        %594 = vmatpush.bf16.xpose.msra.mxu0 0
        %595 = vmatpush.bf16.xpose.msra.mxu0 0
        %596 = vmatpush.bf16.xpose.msra.mxu0 %v587
        %597 = vmatmul.bf16.gmra.mxu0 %v584
        %v598 = vpop.f32.mrf.mxu0
        %v599 = vadd.f32 0.0, %v598
        %v600 = vpop.f32.mrf.mxu0
        %v601 = vadd.f32 0.0, %v600
        %602 = vdwg.mxu0
        %v603 = vsel %vm446, %v599, -1e+30
        %v604 = vsel %vm447, %v601, -1e+30
        %s605 = scalar_lea.vmem [#allocation2], 16
        %v606 = vld [vmem:[%s605] sm:$0xff]
        %v607 = vld [vmem:[%s605 + $0x8] sm:$0xff]
        %v608 = vsel %vm489, %v603, -inf
        %609 = vmax.xlane.f32.xlu0 %v608
        %v610 = vpop.xlane.xlu0 %609
        %v611 = vsel %vm489, %v604, -inf
        %612 = vmax.xlane.f32.xlu0 %v611
        %v613 = vpop.xlane.xlu0 %612
        %v614 = vmax.f32 %v606, %v610
        %v615 = vmax.f32 %v607, %v613
        %v616 = vsub.f32 %v606, %v614
        %v617 = vsub.f32 %v607, %v615
        %v618 = vmul.f32 %v616, 1.442695
        %v619 = vpow.pop %v618
        %v620 = vmul.f32 %v617, 1.442695
        %v621 = vpow.pop %v620
        %623 = vset.pattern.permute.xlu0 0
        %624 = vperm.xlu0 %623, %v614
        %v625 = vpop.permute.xlu0 %624
        %628 = vset.pattern.permute.xlu0 0
        %629 = vperm.xlu0 %628, %v615
        %v630 = vpop.permute.xlu0 %629
        %v632 = vsub.f32 %v603, %v625
        %v633 = vsub.f32 %v604, %v630
        %v634 = vmul.f32 %v632, 1.442695
        %v635 = vpow.pop %v634
        %v636 = vmul.f32 %v633, 1.442695
        %v637 = vpow.pop %v636
        %s638 = scalar_lea.vmem [#allocation3], 16
        %v639 = vld [vmem:[%s638] sm:$0xff]
        %v640 = vld [vmem:[%s638 + $0x8] sm:$0xff]
        %v641 = vmul.f32 %v619, %v639
        %v642 = vmul.f32 %v621, %v640
        %v643 = vsel %vm489, %v635, 0.0
        %644 = vadd.xlane.f32.xlu0 %v643
        %v645 = vpop.xlane.xlu0 %644
        %v646 = vsel %vm489, %v637, 0.0
        %647 = vadd.xlane.f32.xlu0 %v646
        %v648 = vpop.xlane.xlu0 %647
        %v649 = vadd.f32 %v641, %v645
        %v650 = vadd.f32 %v642, %v648
        %651 = vst.msk [vmem:[%s638] sm:$0xff] %vm532, %v649
        %652 = vst.msk [vmem:[%s638 + $0x8] sm:$0xff] %vm532, %v650
        %v653 = vld [vmem:[#allocation4] sm:$0xff]
        %v654 = vld [vmem:[#allocation4 + $0x8] sm:$0xff]
        %656 = vset.pattern.permute.xlu0 0
        %657 = vperm.xlu0 %656, %v619
        %v658 = vpop.permute.xlu0 %657
        %661 = vset.pattern.permute.xlu0 0
        %662 = vperm.xlu0 %661, %v621
        %v663 = vpop.permute.xlu0 %662
        %v665 = vmul.f32 %v658, %v653
        %v666 = vmul.f32 %v663, %v654
        %v667 = vpack.c.bf16 %v637, %v635
        %668 = vrot.lane.b32.xlu0 %v554, 96
        %v669 = vpop.permute.xlu0 %668
        %v672 = vsel %vm489, %v667, 0
        %674 = vmatpush.bf16.msra.mxu0 0
        %675 = vmatpush.bf16.msra.mxu0 0
        %676 = vmatpush.bf16.msra.mxu0 0
        %677 = vmatpush.bf16.msra.mxu0 0
        %678 = vmatpush.bf16.msra.mxu0 0
        %679 = vmatpush.bf16.msra.mxu0 0
        %680 = vmatpush.bf16.msra.mxu0 0
        %681 = vmatpush.bf16.msra.mxu0 %v669
        %682 = vmatmul.bf16.gmra.mxu0 %v672
        %v683 = vpop.f32.mrf.mxu0
        %v684 = vadd.f32 0.0, %v683
        %v685 = vpop.f32.mrf.mxu0
        %v686 = vadd.f32 0.0, %v685
        %687 = vdwg.mxu0
        %690 = vrot.lane.b32.xlu0 %v684, 32
        %v691 = vpop.permute.xlu0 %690
        %692 = vrot.lane.b32.xlu0 %v686, 32
        %v693 = vpop.permute.xlu0 %692
        %v696 = vadd.f32 %v665, %v691
        %v697 = vadd.f32 %v666, %v693
        %vm698 = vcmask 523520
        %699 = vst.msk [vmem:[#allocation4] sm:$0xff] %vm698, %v696
        %700 = vst.msk [vmem:[#allocation4 + $0x8] sm:$0xff] %vm698, %v697
        %701 = vst.msk [vmem:[%s605] sm:$0xff] %vm532, %v614
        %702 = vst.msk [vmem:[%s605 + $0x8] sm:$0xff] %vm532, %v615
        %703 = vrot.lane.b32.xlu0 %v458, 64
        %v704 = vpop.permute.xlu0 %703
        %705 = vrot.lane.b32.xlu0 %v463, 64
        %v706 = vpop.permute.xlu0 %705
        %v708 = vsel %vm464, %v704, 0
        %v711 = vsel %vm464, %v706, 0
        %713 = vmatpush.bf16.xpose.msra.mxu0 0
        %714 = vmatpush.bf16.xpose.msra.mxu0 0
        %715 = vmatpush.bf16.xpose.msra.mxu0 0
        %716 = vmatpush.bf16.xpose.msra.mxu0 0
        %717 = vmatpush.bf16.xpose.msra.mxu0 0
        %718 = vmatpush.bf16.xpose.msra.mxu0 0
        %719 = vmatpush.bf16.xpose.msra.mxu0 0
        %720 = vmatpush.bf16.xpose.msra.mxu0 %v711
        %721 = vmatmul.bf16.gmra.mxu0 %v708
        %v722 = vpop.f32.mrf.mxu0
        %v723 = vadd.f32 0.0, %v722
        %v724 = vpop.f32.mrf.mxu0
        %v725 = vadd.f32 0.0, %v724
        %726 = vdwg.mxu0
        %v727 = vsel %vm446, %v723, -1e+30
        %v728 = vsel %vm447, %v725, -1e+30
        %s729 = scalar_lea.vmem [#allocation2], 32
        %v730 = vld [vmem:[%s729] sm:$0xff]
        %v731 = vld [vmem:[%s729 + $0x8] sm:$0xff]
        %v732 = vsel %vm489, %v727, -inf
        %733 = vmax.xlane.f32.xlu0 %v732
        %v734 = vpop.xlane.xlu0 %733
        %v735 = vsel %vm489, %v728, -inf
        %736 = vmax.xlane.f32.xlu0 %v735
        %v737 = vpop.xlane.xlu0 %736
        %v738 = vmax.f32 %v730, %v734
        %v739 = vmax.f32 %v731, %v737
        %v740 = vsub.f32 %v730, %v738
        %v741 = vsub.f32 %v731, %v739
        %v742 = vmul.f32 %v740, 1.442695
        %v743 = vpow.pop %v742
        %v744 = vmul.f32 %v741, 1.442695
        %v745 = vpow.pop %v744
        %747 = vset.pattern.permute.xlu0 0
        %748 = vperm.xlu0 %747, %v738
        %v749 = vpop.permute.xlu0 %748
        %752 = vset.pattern.permute.xlu0 0
        %753 = vperm.xlu0 %752, %v739
        %v754 = vpop.permute.xlu0 %753
        %v756 = vsub.f32 %v727, %v749
        %v757 = vsub.f32 %v728, %v754
        %v758 = vmul.f32 %v756, 1.442695
        %v759 = vpow.pop %v758
        %v760 = vmul.f32 %v757, 1.442695
        %v761 = vpow.pop %v760
        %s762 = scalar_lea.vmem [#allocation3], 32
        %v763 = vld [vmem:[%s762] sm:$0xff]
        %v764 = vld [vmem:[%s762 + $0x8] sm:$0xff]
        %v765 = vmul.f32 %v743, %v763
        %v766 = vmul.f32 %v745, %v764
        %v767 = vsel %vm489, %v759, 0.0
        %768 = vadd.xlane.f32.xlu0 %v767
        %v769 = vpop.xlane.xlu0 %768
        %v770 = vsel %vm489, %v761, 0.0
        %771 = vadd.xlane.f32.xlu0 %v770
        %v772 = vpop.xlane.xlu0 %771
        %v773 = vadd.f32 %v765, %v769
        %v774 = vadd.f32 %v766, %v772
        %775 = vst.msk [vmem:[%s762] sm:$0xff] %vm532, %v773
        %776 = vst.msk [vmem:[%s762 + $0x8] sm:$0xff] %vm532, %v774
        %v777 = vld [vmem:[#allocation4] sm:$0xff]
        %v778 = vld [vmem:[#allocation4 + $0x8] sm:$0xff]
        %780 = vset.pattern.permute.xlu0 0
        %781 = vperm.xlu0 %780, %v743
        %v782 = vpop.permute.xlu0 %781
        %785 = vset.pattern.permute.xlu0 0
        %786 = vperm.xlu0 %785, %v745
        %v787 = vpop.permute.xlu0 %786
        %v789 = vmul.f32 %v782, %v777
        %v790 = vmul.f32 %v787, %v778
        %v791 = vpack.c.bf16 %v761, %v759
        %792 = vrot.lane.b32.xlu0 %v554, 64
        %v793 = vpop.permute.xlu0 %792
        %v796 = vsel %vm489, %v791, 0
        %798 = vmatpush.bf16.msra.mxu0 0
        %799 = vmatpush.bf16.msra.mxu0 0
        %800 = vmatpush.bf16.msra.mxu0 0
        %801 = vmatpush.bf16.msra.mxu0 0
        %802 = vmatpush.bf16.msra.mxu0 0
        %803 = vmatpush.bf16.msra.mxu0 0
        %804 = vmatpush.bf16.msra.mxu0 0
        %805 = vmatpush.bf16.msra.mxu0 %v793
        %806 = vmatmul.bf16.gmra.mxu0 %v796
        %v807 = vpop.f32.mrf.mxu0
        %v808 = vadd.f32 0.0, %v807
        %v809 = vpop.f32.mrf.mxu0
        %v810 = vadd.f32 0.0, %v809
        %811 = vdwg.mxu0
        %814 = vrot.lane.b32.xlu0 %v808, 64
        %v815 = vpop.permute.xlu0 %814
        %816 = vrot.lane.b32.xlu0 %v810, 64
        %v817 = vpop.permute.xlu0 %816
        %v820 = vadd.f32 %v789, %v815
        %v821 = vadd.f32 %v790, %v817
        %vm822 = vcmask 785920
        %823 = vst.msk [vmem:[#allocation4] sm:$0xff] %vm822, %v820
        %824 = vst.msk [vmem:[#allocation4 + $0x8] sm:$0xff] %vm822, %v821
        %825 = vst.msk [vmem:[%s729] sm:$0xff] %vm532, %v738
        %826 = vst.msk [vmem:[%s729 + $0x8] sm:$0xff] %vm532, %v739
        %827 = vrot.lane.b32.xlu0 %v458, 32
        %v828 = vpop.permute.xlu0 %827
        %829 = vrot.lane.b32.xlu0 %v463, 32
        %v830 = vpop.permute.xlu0 %829
        %v832 = vsel %vm464, %v828, 0
        %v835 = vsel %vm464, %v830, 0
        %837 = vmatpush.bf16.xpose.msra.mxu0 0
        %838 = vmatpush.bf16.xpose.msra.mxu0 0
        %839 = vmatpush.bf16.xpose.msra.mxu0 0
        %840 = vmatpush.bf16.xpose.msra.mxu0 0
        %841 = vmatpush.bf16.xpose.msra.mxu0 0
        %842 = vmatpush.bf16.xpose.msra.mxu0 0
        %843 = vmatpush.bf16.xpose.msra.mxu0 0
        %844 = vmatpush.bf16.xpose.msra.mxu0 %v835
        %845 = vmatmul.bf16.gmra.mxu0 %v832
        %v846 = vpop.f32.mrf.mxu0
        %v847 = vadd.f32 0.0, %v846
        %v848 = vpop.f32.mrf.mxu0
        %v849 = vadd.f32 0.0, %v848
        %850 = vdwg.mxu0
        %v851 = vsel %vm446, %v847, -1e+30
        %v852 = vsel %vm447, %v849, -1e+30
        %s853 = scalar_lea.vmem [#allocation2], 48
        %v854 = vld [vmem:[%s853] sm:$0xff]
        %v855 = vld [vmem:[%s853 + $0x8] sm:$0xff]
        %v856 = vsel %vm489, %v851, -inf
        %857 = vmax.xlane.f32.xlu0 %v856
        %v858 = vpop.xlane.xlu0 %857
        %v859 = vsel %vm489, %v852, -inf
        %860 = vmax.xlane.f32.xlu0 %v859
        %v861 = vpop.xlane.xlu0 %860
        %v862 = vmax.f32 %v854, %v858
        %v863 = vmax.f32 %v855, %v861
        %v864 = vsub.f32 %v854, %v862
        %v865 = vsub.f32 %v855, %v863
        %v866 = vmul.f32 %v864, 1.442695
        %v867 = vpow.pop %v866
        %v868 = vmul.f32 %v865, 1.442695
        %v869 = vpow.pop %v868
        %871 = vset.pattern.permute.xlu0 0
        %872 = vperm.xlu0 %871, %v862
        %v873 = vpop.permute.xlu0 %872
        %876 = vset.pattern.permute.xlu0 0
        %877 = vperm.xlu0 %876, %v863
        %v878 = vpop.permute.xlu0 %877
        %v880 = vsub.f32 %v851, %v873
        %v881 = vsub.f32 %v852, %v878
        %v882 = vmul.f32 %v880, 1.442695
        %v883 = vpow.pop %v882
        %v884 = vmul.f32 %v881, 1.442695
        %v885 = vpow.pop %v884
        %s886 = scalar_lea.vmem [#allocation3], 48
        %v887 = vld [vmem:[%s886] sm:$0xff]
        %v888 = vld [vmem:[%s886 + $0x8] sm:$0xff]
        %v889 = vmul.f32 %v867, %v887
        %v890 = vmul.f32 %v869, %v888
        %v891 = vsel %vm489, %v883, 0.0
        %892 = vadd.xlane.f32.xlu0 %v891
        %v893 = vpop.xlane.xlu0 %892
        %v894 = vsel %vm489, %v885, 0.0
        %895 = vadd.xlane.f32.xlu0 %v894
        %v896 = vpop.xlane.xlu0 %895
        %v897 = vadd.f32 %v889, %v893
        %v898 = vadd.f32 %v890, %v896
        %899 = vst.msk [vmem:[%s886] sm:$0xff] %vm532, %v897
        %900 = vst.msk [vmem:[%s886 + $0x8] sm:$0xff] %vm532, %v898
        %v901 = vld [vmem:[#allocation4] sm:$0xff]
        %v902 = vld [vmem:[#allocation4 + $0x8] sm:$0xff]
        %904 = vset.pattern.permute.xlu0 0
        %905 = vperm.xlu0 %904, %v867
        %v906 = vpop.permute.xlu0 %905
        %909 = vset.pattern.permute.xlu0 0
        %910 = vperm.xlu0 %909, %v869
        %v911 = vpop.permute.xlu0 %910
        %v913 = vmul.f32 %v906, %v901
        %v914 = vmul.f32 %v911, %v902
        %v915 = vpack.c.bf16 %v885, %v883
        %916 = vrot.lane.b32.xlu0 %v554, 32
        %v917 = vpop.permute.xlu0 %916
        %v920 = vsel %vm489, %v915, 0
        %922 = vmatpush.bf16.msra.mxu0 0
        %923 = vmatpush.bf16.msra.mxu0 0
        %924 = vmatpush.bf16.msra.mxu0 0
        %925 = vmatpush.bf16.msra.mxu0 0
        %926 = vmatpush.bf16.msra.mxu0 0
        %927 = vmatpush.bf16.msra.mxu0 0
        %928 = vmatpush.bf16.msra.mxu0 0
        %929 = vmatpush.bf16.msra.mxu0 %v917
        %930 = vmatmul.bf16.gmra.mxu0 %v920
        %v931 = vpop.f32.mrf.mxu0
        %v932 = vadd.f32 0.0, %v931
        %v933 = vpop.f32.mrf.mxu0
        %v934 = vadd.f32 0.0, %v933
        %935 = vdwg.mxu0
        %938 = vrot.lane.b32.xlu0 %v932, 96
        %v939 = vpop.permute.xlu0 %938
        %940 = vrot.lane.b32.xlu0 %v934, 96
        %v941 = vpop.permute.xlu0 %940
        %v944 = vadd.f32 %v913, %v939
        %v945 = vadd.f32 %v914, %v941
        %vm946 = vcmask 1048320
        %947 = vst.msk [vmem:[#allocation4] sm:$0xff] %vm946, %v944
        %948 = vst.msk [vmem:[#allocation4 + $0x8] sm:$0xff] %vm946, %v945
        %949 = vst.msk [vmem:[%s853] sm:$0xff] %vm532, %v862
        %950 = vst.msk [vmem:[%s853 + $0x8] sm:$0xff] %vm532, %v863
        // Predicated region
        $region160: #{transformer_lm_forward.8} parent=142 // pred_check
          %p951 = pneg %p415
        $region161: #{transformer_lm_forward.8} parent=142 // pred_check_branch
          %953 = sbr.rel (%p951) target = $region163
        $region162: #{transformer_lm_forward.8} parent=142 // pred_region
          %v954 = vld [vmem:[#allocation4] sm:$0xff]
          %v955 = vld [vmem:[#allocation4 + $0x8] sm:$0xff]
          %v956 = vld [vmem:[#allocation3] sm:$0xff]
          %v957 = vld [vmem:[#allocation3 + $0x8] sm:$0xff]
          %959 = vset.pattern.permute.xlu0 0
          %960 = vperm.xlu0 %959, %v956
          %v961 = vpop.permute.xlu0 %960
          %964 = vset.pattern.permute.xlu0 0
          %965 = vperm.xlu0 %964, %v957
          %v966 = vpop.permute.xlu0 %965
          %v968 = vrcp.pop %v961
          %v969 = vmul.f32 %v961, %v968
          %v970 = vsub.f32 1.0, %v969
          %v971 = vmul.f32 %v968, %v970
          %v972 = vadd.f32 %v968, %v971
          %vm973 = vweird.f32 %v961
          %vm974 = vweird.f32 %v968
          %vm975 = vmor %vm973, %vm974
          %v976 = vsel %vm975, %v968, %v972
          %v977 = vand.u32 2147483647, %v961
          %vm978 = vcmp.eq.f32.partialorder %v977, 8.507059e+37
          %v979 = vand.u32 %v961, 2147483648
          %v980 = vor.u32 1.1754944e-38, %v979
          %v981 = vsel %vm978, %v980, %v976
          %v982 = vmul.f32 %v954, %v981
          %v983 = vrcp.pop %v966
          %v984 = vmul.f32 %v966, %v983
          %v985 = vsub.f32 1.0, %v984
          %v986 = vmul.f32 %v983, %v985
          %v987 = vadd.f32 %v983, %v986
          %vm988 = vweird.f32 %v966
          %vm989 = vweird.f32 %v983
          %vm990 = vmor %vm988, %vm989
          %v991 = vsel %vm990, %v983, %v987
          %v992 = vand.u32 2147483647, %v966
          %vm993 = vcmp.eq.f32.partialorder %v992, 8.507059e+37
          %v994 = vand.u32 %v966, 2147483648
          %v995 = vor.u32 1.1754944e-38, %v994
          %v996 = vsel %vm993, %v995, %v991
          %v997 = vmul.f32 %v955, %v996
          %v998 = vpack.c.bf16 %v982, %v982
          %v999 = vpack.c.bf16 %v997, %v997
          %vm1000 = vcmask 257024
          %1001 = vst.msk [vmem:[%s412] sm:$0xf] %vm1000, %v998
          %1002 = vst.msk [vmem:[%s412 + $0x4] sm:$0xf] %vm1000, %v999
          %v1003 = vld [vmem:[#allocation4] sm:$0xff]
          %v1004 = vld [vmem:[#allocation4 + $0x8] sm:$0xff]
          %v1005 = vld [vmem:[%s638] sm:$0xff]
          %v1006 = vld [vmem:[%s638 + $0x8] sm:$0xff]
          %1008 = vset.pattern.permute.xlu0 0
          %1009 = vperm.xlu0 %1008, %v1005
          %v1010 = vpop.permute.xlu0 %1009
          %1013 = vset.pattern.permute.xlu0 0
          %1014 = vperm.xlu0 %1013, %v1006
          %v1015 = vpop.permute.xlu0 %1014
          %v1017 = vrcp.pop %v1010
          %v1018 = vmul.f32 %v1010, %v1017
          %v1019 = vsub.f32 1.0, %v1018
          %v1020 = vmul.f32 %v1017, %v1019
          %v1021 = vadd.f32 %v1017, %v1020
          %vm1022 = vweird.f32 %v1010
          %vm1023 = vweird.f32 %v1017
          %vm1024 = vmor %vm1022, %vm1023
          %v1025 = vsel %vm1024, %v1017, %v1021
          %v1026 = vand.u32 2147483647, %v1010
          %vm1027 = vcmp.eq.f32.partialorder %v1026, 8.507059e+37
          %v1028 = vand.u32 %v1010, 2147483648
          %v1029 = vor.u32 1.1754944e-38, %v1028
          %v1030 = vsel %vm1027, %v1029, %v1025
          %v1031 = vmul.f32 %v1003, %v1030
          %v1032 = vrcp.pop %v1015
          %v1033 = vmul.f32 %v1015, %v1032
          %v1034 = vsub.f32 1.0, %v1033
          %v1035 = vmul.f32 %v1032, %v1034
          %v1036 = vadd.f32 %v1032, %v1035
          %vm1037 = vweird.f32 %v1015
          %vm1038 = vweird.f32 %v1032
          %vm1039 = vmor %vm1037, %vm1038
          %v1040 = vsel %vm1039, %v1032, %v1036
          %v1041 = vand.u32 2147483647, %v1015
          %vm1042 = vcmp.eq.f32.partialorder %v1041, 8.507059e+37
          %v1043 = vand.u32 %v1015, 2147483648
          %v1044 = vor.u32 1.1754944e-38, %v1043
          %v1045 = vsel %vm1042, %v1044, %v1040
          %v1046 = vmul.f32 %v1004, %v1045
          %v1047 = vpack.c.bf16 %v1031, %v1031
          %v1048 = vpack.c.bf16 %v1046, %v1046
          %vm1049 = vcmask 519424
          %1050 = vst.msk [vmem:[%s412] sm:$0xf] %vm1049, %v1047
          %1051 = vst.msk [vmem:[%s412 + $0x4] sm:$0xf] %vm1049, %v1048
          %v1052 = vld [vmem:[#allocation4] sm:$0xff]
          %v1053 = vld [vmem:[#allocation4 + $0x8] sm:$0xff]
          %v1054 = vld [vmem:[%s762] sm:$0xff]
          %v1055 = vld [vmem:[%s762 + $0x8] sm:$0xff]
          %1057 = vset.pattern.permute.xlu0 0
          %1058 = vperm.xlu0 %1057, %v1054
          %v1059 = vpop.permute.xlu0 %1058
          %1062 = vset.pattern.permute.xlu0 0
          %1063 = vperm.xlu0 %1062, %v1055
          %v1064 = vpop.permute.xlu0 %1063
          %v1066 = vrcp.pop %v1059
          %v1067 = vmul.f32 %v1059, %v1066
          %v1068 = vsub.f32 1.0, %v1067
          %v1069 = vmul.f32 %v1066, %v1068
          %v1070 = vadd.f32 %v1066, %v1069
          %vm1071 = vweird.f32 %v1059
          %vm1072 = vweird.f32 %v1066
          %vm1073 = vmor %vm1071, %vm1072
          %v1074 = vsel %vm1073, %v1066, %v1070
          %v1075 = vand.u32 2147483647, %v1059
          %vm1076 = vcmp.eq.f32.partialorder %v1075, 8.507059e+37
          %v1077 = vand.u32 %v1059, 2147483648
          %v1078 = vor.u32 1.1754944e-38, %v1077
          %v1079 = vsel %vm1076, %v1078, %v1074
          %v1080 = vmul.f32 %v1052, %v1079
          %v1081 = vrcp.pop %v1064
          %v1082 = vmul.f32 %v1064, %v1081
          %v1083 = vsub.f32 1.0, %v1082
          %v1084 = vmul.f32 %v1081, %v1083
          %v1085 = vadd.f32 %v1081, %v1084
          %vm1086 = vweird.f32 %v1064
          %vm1087 = vweird.f32 %v1081
          %vm1088 = vmor %vm1086, %vm1087
          %v1089 = vsel %vm1088, %v1081, %v1085
          %v1090 = vand.u32 2147483647, %v1064
          %vm1091 = vcmp.eq.f32.partialorder %v1090, 8.507059e+37
          %v1092 = vand.u32 %v1064, 2147483648
          %v1093 = vor.u32 1.1754944e-38, %v1092
          %v1094 = vsel %vm1091, %v1093, %v1089
          %v1095 = vmul.f32 %v1053, %v1094
          %v1096 = vpack.c.bf16 %v1080, %v1080
          %v1097 = vpack.c.bf16 %v1095, %v1095
          %vm1098 = vcmask 781824
          %1099 = vst.msk [vmem:[%s412] sm:$0xf] %vm1098, %v1096
          %1100 = vst.msk [vmem:[%s412 + $0x4] sm:$0xf] %vm1098, %v1097
          %v1101 = vld [vmem:[#allocation4] sm:$0xff]
          %v1102 = vld [vmem:[#allocation4 + $0x8] sm:$0xff]
          %v1103 = vld [vmem:[%s886] sm:$0xff]
          %v1104 = vld [vmem:[%s886 + $0x8] sm:$0xff]
          %1106 = vset.pattern.permute.xlu0 0
          %1107 = vperm.xlu0 %1106, %v1103
          %v1108 = vpop.permute.xlu0 %1107
          %1111 = vset.pattern.permute.xlu0 0
          %1112 = vperm.xlu0 %1111, %v1104
          %v1113 = vpop.permute.xlu0 %1112
          %v1115 = vrcp.pop %v1108
          %v1116 = vmul.f32 %v1108, %v1115
          %v1117 = vsub.f32 1.0, %v1116
          %v1118 = vmul.f32 %v1115, %v1117
          %v1119 = vadd.f32 %v1115, %v1118
          %vm1120 = vweird.f32 %v1108
          %vm1121 = vweird.f32 %v1115
          %vm1122 = vmor %vm1120, %vm1121
          %v1123 = vsel %vm1122, %v1115, %v1119
          %v1124 = vand.u32 2147483647, %v1108
          %vm1125 = vcmp.eq.f32.partialorder %v1124, 8.507059e+37
          %v1126 = vand.u32 %v1108, 2147483648
          %v1127 = vor.u32 1.1754944e-38, %v1126
          %v1128 = vsel %vm1125, %v1127, %v1123
          %v1129 = vmul.f32 %v1101, %v1128
          %v1130 = vrcp.pop %v1113
          %v1131 = vmul.f32 %v1113, %v1130
          %v1132 = vsub.f32 1.0, %v1131
          %v1133 = vmul.f32 %v1130, %v1132
          %v1134 = vadd.f32 %v1130, %v1133
          %vm1135 = vweird.f32 %v1113
          %vm1136 = vweird.f32 %v1130
          %vm1137 = vmor %vm1135, %vm1136
          %v1138 = vsel %vm1137, %v1130, %v1134
          %v1139 = vand.u32 2147483647, %v1113
          %vm1140 = vcmp.eq.f32.partialorder %v1139, 8.507059e+37
          %v1141 = vand.u32 %v1113, 2147483648
          %v1142 = vor.u32 1.1754944e-38, %v1141
          %v1143 = vsel %vm1140, %v1142, %v1138
          %v1144 = vmul.f32 %v1102, %v1143
          %v1145 = vpack.c.bf16 %v1129, %v1129
          %v1146 = vpack.c.bf16 %v1144, %v1144
          %vm1147 = vcmask 1044224
          %1148 = vst.msk [vmem:[%s412] sm:$0xf] %vm1147, %v1145
          %1149 = vst.msk [vmem:[%s412 + $0x4] sm:$0xf] %vm1147, %v1146
        $region163: #{transformer_lm_forward.8} parent=142 // pred_fallthru
          _
        %s1150 = smul.u32 2, %s19
        %p1151 = scmp.lt.s32.totalorder %s1150, 3
        %s1152 = scalar_select %p1151, %s1150, 3
        %p1153 = scmp.lt.s32.totalorder %s20, 0
        %s1154 = scalar_select %p1153, %s20, 0
        %s1155 = sadd.s32 %s1154, %s1152
        %s1156 = smul.addr %s1155, 4
        %s1157 = scalar_lea.vmem %s3, %s1156
        // Predicated region
        $region164: #{transformer_lm_forward.8} parent=142 // pred_check
          %p1158 = pneg %p145
        $region165: #{transformer_lm_forward.8} parent=142 // pred_check_branch
          %1160 = sbr.rel (%p1158) target = $region167
        $region166: #{transformer_lm_forward.8} parent=142 // pred_region
          %s1161 = smul.u32 2, %s19
        $region167: #{transformer_lm_forward.8} parent=142 // pred_fallthru
          _
      $region143: #{transformer_lm_forward.8} parent=5 // pred_fallthru
        _
      %p1162 = scmp.le.s32.totalorder 2, %s9
      // Predicated region
      $region168: #{transformer_lm_forward.8} parent=5 // pred_check
        %p1163 = pneg %p1162
      $region169: #{transformer_lm_forward.8} parent=5 // pred_check_branch
        %1165 = sbr.rel (%p1163) target = $region171
      $region170: #{transformer_lm_forward.8} parent=5 // pred_region
        %s1166 = ssub.s32 %s9, 2
        // Predicated region
        $region172: #{transformer_lm_forward.8} parent=170 // pred_check
          %p1167 = pneg %p151
        $region173: #{transformer_lm_forward.8} parent=170 // pred_check_branch
          %1169 = sbr.rel (%p1167) target = $region175
        $region174: #{transformer_lm_forward.8} parent=170 // pred_region
          %s1170 = smul.u32 2, %s22
          %p1171 = scmp.lt.s32.totalorder %s1170, 3
          %s1172 = scalar_select %p1171, %s1170, 3
          %p1173 = scmp.lt.s32.totalorder %s23, 0
          %s1174 = scalar_select %p1173, %s23, 0
          %s1175 = sadd.s32 %s1174, %s1172
          %s1176 = smul.addr %s1175, 4
          %s1177 = scalar_lea.vmem %s3, %s1176
        $region175: #{transformer_lm_forward.8} parent=170 // pred_fallthru
          _
      $region171: #{transformer_lm_forward.8} parent=5 // pred_fallthru
        _
    $region6: #{transformer_lm_forward.8} parent=1 // loop_footer
      %s13 = sadd.s32 1, %s9
    $region7: #{transformer_lm_forward.8} parent=1 // loop_footer_branch
      %8 = sbr.rel target = $region3
    $region8: #{transformer_lm_forward.8} parent=1 // loop_exit
      _

// kernel: transformer_lm_forward.9
$region0: #{transformer_lm_forward.9}
  #allocation0 [shape = 'u32[]', space=smem, size = 0x4, offset = 0x4, fixed_abs, tag = 'smem constant byte address 0x4 - core index']
  #allocation1 [shape = 'u32[72,128]{1,0:T(1,128)}', space=vmem, size = 0x9000, scoped, tag = 'internal scratch']
  #allocation2 [shape = 'f32[32,128]{1,0:T(8,128)}', space=vmem, size = 0x4000, scoped, tag = 'scratch operand']
  %s0 = inlined_call_operand.vmem [shape: bf16[32,128], index: 0, kind: input, shape index: {}]
  %s1 = inlined_call_operand.vmem [shape: f32[32,128], index: 1, kind: input, shape index: {}]
  %s2 = inlined_call_operand.hbm [shape: bf16[128,128], index: 2, kind: input, shape index: {}]
  %s3 = inlined_call_operand.vmem [shape: f32[1,128], index: 3, kind: input, shape index: {}]
  %s4 = inlined_call_operand.vmem [shape: f32[1,128], index: 4, kind: input, shape index: {}]
  %s5 = inlined_call_operand.vmem [shape: f32[1,128], index: 5, kind: input, shape index: {}]
  %s6 = inlined_call_operand.vmem [shape: bf16[128,256], index: 6, kind: input, shape index: {}]
  %s7 = inlined_call_operand.vmem [shape: f32[1,256], index: 7, kind: input, shape index: {}]
  %s8 = inlined_call_operand.hbm [shape: bf16[256,128], index: 8, kind: input, shape index: {}]
  %s9 = inlined_call_operand.vmem [shape: f32[1,128], index: 9, kind: input, shape index: {}]
  %s10 = inlined_call_operand.vmem [shape: f32[32,128], index: 10, kind: output, shape index: {}]
  %s11 = sld [smem:[#allocation0]]
  $region62: #{transformer_lm_forward.9} parent=0
    _
  %s13 = ssub.s32 1, %s11
  %s14 = scalar_select 0, %s13, %s11
  $region1: #{transformer_lm_forward.9} parent=0
    #allocation3 [shape = 'u8[32768]{0}', space=vmem, size = 0x8000, scoped, tag = 'input window, operand 2, single buffered']
    #allocation4 [shape = 's32[1]{0}', space=sflag, size = 0x4, scoped, tag = 'scoped memory for transformer_lm_forward.9']
    #allocation5 [shape = 'u8[65536]{0}', space=vmem, size = 0x10000, scoped, tag = 'input window, operand 8, single buffered']
    #allocation6 [shape = 's32[1]{0}', space=sflag, size = 0x4, scoped, tag = 'scoped memory for transformer_lm_forward.9']
    %15 = vsyncpa [#allocation4], 0
    %16 = vsyncpa [#allocation6], 0
    // Predicated region
    $region2: #{transformer_lm_forward.9} parent=1 // pred_check
      _
    $region3: #{transformer_lm_forward.9} parent=1 // pred_check_branch
      %18 = sbr.rel (0) target = $region5
    $region4: #{transformer_lm_forward.9} parent=1 // pred_region
      _
    $region5: #{transformer_lm_forward.9} parent=1 // pred_fallthru
      _
    // Predicated region
    $region6: #{transformer_lm_forward.9} parent=1 // pred_check
      _
    $region7: #{transformer_lm_forward.9} parent=1 // pred_check_branch
      %20 = sbr.rel (0) target = $region9
    $region8: #{transformer_lm_forward.9} parent=1 // pred_region
      _
    $region9: #{transformer_lm_forward.9} parent=1 // pred_fallthru
      _
    // Predicated region
    $region10: #{transformer_lm_forward.9} parent=1 // pred_check
      _
    $region11: #{transformer_lm_forward.9} parent=1 // pred_check_branch
      %22 = sbr.rel (0) target = $region13
    $region12: #{transformer_lm_forward.9} parent=1 // pred_region
      %24 = vsyncadd [#allocation4], 0
      %s25 = sshll.u32 %s2, 4
      %s26 = int_to_ptr.hbm [resolvable:$true] %s25
      %s27 = sshll.u32 [#allocation3], 4
      %s28 = int_to_ptr.vmem [resolvable:$true] %s27
      %33 = dma.hbm_to_vmem [thread:$0]  %s26, 1024, %s28, [#allocation4], 64, 64, 4
    $region13: #{transformer_lm_forward.9} parent=1 // pred_fallthru
      _
    // Predicated region
    $region14: #{transformer_lm_forward.9} parent=1 // pred_check
      _
    $region15: #{transformer_lm_forward.9} parent=1 // pred_check_branch
      %35 = sbr.rel (0) target = $region17
    $region16: #{transformer_lm_forward.9} parent=1 // pred_region
      _
    $region17: #{transformer_lm_forward.9} parent=1 // pred_fallthru
      _
    // Predicated region
    $region18: #{transformer_lm_forward.9} parent=1 // pred_check
      _
    $region19: #{transformer_lm_forward.9} parent=1 // pred_check_branch
      %37 = sbr.rel (0) target = $region21
    $region20: #{transformer_lm_forward.9} parent=1 // pred_region
      _
    $region21: #{transformer_lm_forward.9} parent=1 // pred_fallthru
      _
    // Predicated region
    $region22: #{transformer_lm_forward.9} parent=1 // pred_check
      _
    $region23: #{transformer_lm_forward.9} parent=1 // pred_check_branch
      %39 = sbr.rel (0) target = $region25
    $region24: #{transformer_lm_forward.9} parent=1 // pred_region
      _
    $region25: #{transformer_lm_forward.9} parent=1 // pred_fallthru
      _
    // Predicated region
    $region26: #{transformer_lm_forward.9} parent=1 // pred_check
      _
    $region27: #{transformer_lm_forward.9} parent=1 // pred_check_branch
      %41 = sbr.rel (0) target = $region29
    $region28: #{transformer_lm_forward.9} parent=1 // pred_region
      _
    $region29: #{transformer_lm_forward.9} parent=1 // pred_fallthru
      _
    // Predicated region
    $region30: #{transformer_lm_forward.9} parent=1 // pred_check
      _
    $region31: #{transformer_lm_forward.9} parent=1 // pred_check_branch
      %43 = sbr.rel (0) target = $region33
    $region32: #{transformer_lm_forward.9} parent=1 // pred_region
      _
    $region33: #{transformer_lm_forward.9} parent=1 // pred_fallthru
      _
    // Predicated region
    $region34: #{transformer_lm_forward.9} parent=1 // pred_check
      _
    $region35: #{transformer_lm_forward.9} parent=1 // pred_check_branch
      %45 = sbr.rel (0) target = $region37
    $region36: #{transformer_lm_forward.9} parent=1 // pred_region
      %47 = vsyncadd [#allocation6], 0
      %s48 = sshll.u32 %s8, 4
      %s49 = int_to_ptr.hbm [resolvable:$true] %s48
      %s50 = sshll.u32 [#allocation5], 4
      %s51 = int_to_ptr.vmem [resolvable:$true] %s50
      %56 = dma.hbm_to_vmem [thread:$0]  %s49, 2048, %s51, [#allocation6], 64, 64, 4
    $region37: #{transformer_lm_forward.9} parent=1 // pred_fallthru
      _
    // Predicated region
    $region38: #{transformer_lm_forward.9} parent=1 // pred_check
      _
    $region39: #{transformer_lm_forward.9} parent=1 // pred_check_branch
      %58 = sbr.rel (0) target = $region41
    $region40: #{transformer_lm_forward.9} parent=1 // pred_region
      _
    $region41: #{transformer_lm_forward.9} parent=1 // pred_fallthru
      _
    // Predicated region
    $region42: #{transformer_lm_forward.9} parent=1 // pred_check
      _
    $region43: #{transformer_lm_forward.9} parent=1 // pred_check_branch
      %60 = sbr.rel (0) target = $region45
    $region44: #{transformer_lm_forward.9} parent=1 // pred_region
      %62 = dma.done [#allocation4], 1024
    $region45: #{transformer_lm_forward.9} parent=1 // pred_fallthru
      _
    // Predicated region
    $region46: #{transformer_lm_forward.9} parent=1 // pred_check
      _
    $region47: #{transformer_lm_forward.9} parent=1 // pred_check_branch
      %64 = sbr.rel (0) target = $region49
    $region48: #{transformer_lm_forward.9} parent=1 // pred_region
      %66 = dma.done [#allocation6], 2048
    $region49: #{transformer_lm_forward.9} parent=1 // pred_fallthru
      _
    %p67 = scmp.eq.s32.totalorder 0, 0
    // Predicated region
    $region50: #{transformer_lm_forward.9} parent=1 // pred_check
      %p68 = pneg %p67
    $region51: #{transformer_lm_forward.9} parent=1 // pred_check_branch
      %70 = sbr.rel (%p68) target = $region53
    $region52: #{transformer_lm_forward.9} parent=1 // pred_region
      %v71 = vld [vmem:[%s0] sm:$0xf]
      %v72 = vld [vmem:[%s0 + $0x4] sm:$0xf]
      %v73 = vld [vmem:[%s0 + $0x8] sm:$0xf]
      %v74 = vld [vmem:[%s0 + $0xc] sm:$0xf]
      %v75 = vld [vmem:[#allocation3] sm:$0xf]
      %v76 = vld [vmem:[#allocation3 + $0x4] sm:$0xf]
      %v77 = vld [vmem:[#allocation3 + $0x8] sm:$0xf]
      %v78 = vld [vmem:[#allocation3 + $0xc] sm:$0xf]
      %v79 = vld [vmem:[#allocation3 + $0x10] sm:$0xf]
      %v80 = vld [vmem:[#allocation3 + $0x14] sm:$0xf]
      %v81 = vld [vmem:[#allocation3 + $0x18] sm:$0xf]
      %v82 = vld [vmem:[#allocation3 + $0x1c] sm:$0xf]
      %v83 = vld [vmem:[#allocation3 + $0x20] sm:$0xf]
      %v84 = vld [vmem:[#allocation3 + $0x24] sm:$0xf]
      %v85 = vld [vmem:[#allocation3 + $0x28] sm:$0xf]
      %v86 = vld [vmem:[#allocation3 + $0x2c] sm:$0xf]
      %v87 = vld [vmem:[#allocation3 + $0x30] sm:$0xf]
      %v88 = vld [vmem:[#allocation3 + $0x34] sm:$0xf]
      %v89 = vld [vmem:[#allocation3 + $0x38] sm:$0xf]
      %v90 = vld [vmem:[#allocation3 + $0x3c] sm:$0xf]
      %v91 = vld [vmem:[%s3] sm:$0x1]
      %v93 = vperm.slane %v91, 0
      %v99 = vunpack.c.l.b16 %v71
      %v100 = vunpack.c.l.b16 %v72
      %v101 = vunpack.c.l.b16 %v73
      %v102 = vunpack.c.l.b16 %v74
      %v103 = vpack.c.b16 %v100, %v99
      %v104 = vpack.c.b16 %v102, %v101
      %v123 = vunpack.c.l.b16 %v75
      %v124 = vunpack.c.l.b16 %v76
      %v125 = vunpack.c.l.b16 %v77
      %v126 = vunpack.c.l.b16 %v78
      %v127 = vunpack.c.l.b16 %v79
      %v128 = vunpack.c.l.b16 %v80
      %v129 = vunpack.c.l.b16 %v81
      %v130 = vunpack.c.l.b16 %v82
      %v131 = vunpack.c.l.b16 %v83
      %v132 = vunpack.c.l.b16 %v84
      %v133 = vunpack.c.l.b16 %v85
      %v134 = vunpack.c.l.b16 %v86
      %v135 = vunpack.c.l.b16 %v87
      %v136 = vunpack.c.l.b16 %v88
      %v137 = vunpack.c.l.b16 %v89
      %v138 = vunpack.c.l.b16 %v90
      %v139 = vpack.c.b16 %v124, %v123
      %v140 = vpack.c.b16 %v126, %v125
      %v141 = vpack.c.b16 %v128, %v127
      %v142 = vpack.c.b16 %v130, %v129
      %v143 = vpack.c.b16 %v132, %v131
      %v144 = vpack.c.b16 %v134, %v133
      %v145 = vpack.c.b16 %v136, %v135
      %v146 = vpack.c.b16 %v138, %v137
      %155 = vmatpush.bf16.msra.mxu0 %v146
      %156 = vmatpush.bf16.msra.mxu0 %v145
      %157 = vmatpush.bf16.msra.mxu0 %v144
      %158 = vmatpush.bf16.msra.mxu0 %v143
      %159 = vmatpush.bf16.msra.mxu0 %v142
      %160 = vmatpush.bf16.msra.mxu0 %v141
      %161 = vmatpush.bf16.msra.mxu0 %v140
      %162 = vmatpush.bf16.msra.mxu0 %v139
      %163 = vmatmul.bf16.gmra.mxu0 %v103
      %v164 = vpop.f32.mrf.mxu0
      %v165 = vadd.f32 %v93, %v164
      %v166 = vpop.f32.mrf.mxu0
      %v167 = vadd.f32 %v93, %v166
      %168 = vmatmul.bf16.gmra.mxu0 %v104
      %v169 = vpop.f32.mrf.mxu0
      %v170 = vadd.f32 %v93, %v169
      %v171 = vpop.f32.mrf.mxu0
      %v172 = vadd.f32 %v93, %v171
      %173 = vdwg.mxu0
      %v174 = vld [vmem:[%s1] sm:$0xff]
      %v175 = vld [vmem:[%s1 + $0x8] sm:$0xff]
      %v176 = vld [vmem:[%s1 + $0x10] sm:$0xff]
      %v177 = vld [vmem:[%s1 + $0x18] sm:$0xff]
      %v178 = vadd.f32 %v165, %v174
      %v179 = vadd.f32 %v167, %v175
      %v180 = vadd.f32 %v170, %v176
      %v181 = vadd.f32 %v172, %v177
      %v182 = vld [vmem:[%s4] sm:$0x1]
      %v183 = vld [vmem:[%s5] sm:$0x1]
      %184 = vadd.xlane.f32.xlu0 %v178
      %v185 = vpop.xlane.xlu0 %184
      %186 = vadd.xlane.f32.xlu0 %v179
      %v187 = vpop.xlane.xlu0 %186
      %188 = vadd.xlane.f32.xlu0 %v180
      %v189 = vpop.xlane.xlu0 %188
      %190 = vadd.xlane.f32.xlu0 %v181
      %v191 = vpop.xlane.xlu0 %190
      %v192 = vrcp.pop 128.0
      %v193 = vmul.f32 128.0, %v192
      %v194 = vsub.f32 1.0, %v193
      %v195 = vmul.f32 %v192, %v194
      %v196 = vadd.f32 %v192, %v195
      %vm197 = vweird.f32 %v192
      %v198 = vsel %vm197, %v192, %v196
      %v199 = vmul.f32 %v185, %v198
      %v200 = vmul.f32 %v187, %v198
      %v201 = vmul.f32 %v189, %v198
      %v202 = vmul.f32 %v191, %v198
      %v203 = vsub.f32 %v178, %v199
      %v204 = vsub.f32 %v179, %v200
      %v205 = vsub.f32 %v180, %v201
      %v206 = vsub.f32 %v181, %v202
      %v207 = vmul.f32 %v203, %v203
      %v208 = vmul.f32 %v204, %v204
      %v209 = vmul.f32 %v205, %v205
      %v210 = vmul.f32 %v206, %v206
      %211 = vadd.xlane.f32.xlu0 %v207
      %v212 = vpop.xlane.xlu0 %211
      %213 = vadd.xlane.f32.xlu0 %v208
      %v214 = vpop.xlane.xlu0 %213
      %215 = vadd.xlane.f32.xlu0 %v209
      %v216 = vpop.xlane.xlu0 %215
      %217 = vadd.xlane.f32.xlu0 %v210
      %v218 = vpop.xlane.xlu0 %217
      %v219 = vmul.f32 %v212, %v198
      %v220 = vmul.f32 %v214, %v198
      %v221 = vmul.f32 %v216, %v198
      %v222 = vmul.f32 %v218, %v198
      %v223 = vadd.f32 %v219, 1e-12
      %v224 = vadd.f32 %v220, 1e-12
      %v225 = vadd.f32 %v221, 1e-12
      %v226 = vadd.f32 %v222, 1e-12
      %v227 = vrsqrt.pop %v223
      %v228 = vmul.f32 %v227, %v223
      %v229 = vmul.f32 %v228, %v227
      %v230 = vmul.f32 0.5, %v229
      %v231 = vsub.f32 1.5, %v230
      %v232 = vmul.f32 %v227, %v231
      %vm233 = vweird.f32 %v223
      %vm234 = vweird.f32 %v227
      %vm235 = vmor %vm233, %vm234
      %v236 = vsel %vm235, %v227, %v232
      %v237 = vrsqrt.pop %v224
      %v238 = vmul.f32 %v237, %v224
      %v239 = vmul.f32 %v238, %v237
      %v240 = vmul.f32 0.5, %v239
      %v241 = vsub.f32 1.5, %v240
      %v242 = vmul.f32 %v237, %v241
      %vm243 = vweird.f32 %v224
      %vm244 = vweird.f32 %v237
      %vm245 = vmor %vm243, %vm244
      %v246 = vsel %vm245, %v237, %v242
      %v247 = vrsqrt.pop %v225
      %v248 = vmul.f32 %v247, %v225
      %v249 = vmul.f32 %v248, %v247
      %v250 = vmul.f32 0.5, %v249
      %v251 = vsub.f32 1.5, %v250
      %v252 = vmul.f32 %v247, %v251
      %vm253 = vweird.f32 %v225
      %vm254 = vweird.f32 %v247
      %vm255 = vmor %vm253, %vm254
      %v256 = vsel %vm255, %v247, %v252
      %v257 = vrsqrt.pop %v226
      %v258 = vmul.f32 %v257, %v226
      %v259 = vmul.f32 %v258, %v257
      %v260 = vmul.f32 0.5, %v259
      %v261 = vsub.f32 1.5, %v260
      %v262 = vmul.f32 %v257, %v261
      %vm263 = vweird.f32 %v226
      %vm264 = vweird.f32 %v257
      %vm265 = vmor %vm263, %vm264
      %v266 = vsel %vm265, %v257, %v262
      %v267 = vmul.f32 %v203, %v236
      %v268 = vmul.f32 %v204, %v246
      %v269 = vmul.f32 %v205, %v256
      %v270 = vmul.f32 %v206, %v266
      %v272 = vperm.slane %v182, 0
      %v274 = vmul.f32 %v267, %v272
      %v275 = vmul.f32 %v268, %v272
      %v276 = vmul.f32 %v269, %v272
      %v277 = vmul.f32 %v270, %v272
      %v279 = vperm.slane %v183, 0
      %v281 = vadd.f32 %v274, %v279
      %v282 = vadd.f32 %v275, %v279
      %v283 = vadd.f32 %v276, %v279
      %v284 = vadd.f32 %v277, %v279
      %285 = vst [vmem:[#allocation2] sm:$0xff] %v281
      %286 = vst [vmem:[#allocation2 + $0x8] sm:$0xff] %v282
      %287 = vst [vmem:[#allocation2 + $0x10] sm:$0xff] %v283
      %288 = vst [vmem:[#allocation2 + $0x18] sm:$0xff] %v284
      %v289 = vld [vmem:[%s9] sm:$0x1]
      %v291 = vperm.slane %v289, 0
      %v293 = vadd.f32 %v281, %v291
      %v294 = vadd.f32 %v282, %v291
      %v295 = vadd.f32 %v283, %v291
      %v296 = vadd.f32 %v284, %v291
      %297 = vst [vmem:[%s10] sm:$0xff] %v293
      %298 = vst [vmem:[%s10 + $0x8] sm:$0xff] %v294
      %299 = vst [vmem:[%s10 + $0x10] sm:$0xff] %v295
      %300 = vst [vmem:[%s10 + $0x18] sm:$0xff] %v296
    $region53: #{transformer_lm_forward.9} parent=1 // pred_fallthru
      _
    %v301 = vld [vmem:[#allocation2] sm:$0xff]
    %v302 = vld [vmem:[#allocation2 + $0x8] sm:$0xff]
    %v303 = vld [vmem:[#allocation2 + $0x10] sm:$0xff]
    %v304 = vld [vmem:[#allocation2 + $0x18] sm:$0xff]
    %v305 = vpack.c.bf16 %v302, %v301
    %v306 = vpack.c.bf16 %v304, %v303
    %v307 = vld [vmem:[%s6] sm:$0xff]
    %v308 = vld [vmem:[%s6 + $0x8] sm:$0xff]
    %v309 = vld [vmem:[%s6 + $0x10] sm:$0xff]
    %v310 = vld [vmem:[%s6 + $0x18] sm:$0xff]
    %v311 = vld [vmem:[%s6 + $0x20] sm:$0xff]
    %v312 = vld [vmem:[%s6 + $0x28] sm:$0xff]
    %v313 = vld [vmem:[%s6 + $0x30] sm:$0xff]
    %v314 = vld [vmem:[%s6 + $0x38] sm:$0xff]
    %v315 = vld [vmem:[%s6 + $0x40] sm:$0xff]
    %v316 = vld [vmem:[%s6 + $0x48] sm:$0xff]
    %v317 = vld [vmem:[%s6 + $0x50] sm:$0xff]
    %v318 = vld [vmem:[%s6 + $0x58] sm:$0xff]
    %v319 = vld [vmem:[%s6 + $0x60] sm:$0xff]
    %v320 = vld [vmem:[%s6 + $0x68] sm:$0xff]
    %v321 = vld [vmem:[%s6 + $0x70] sm:$0xff]
    %v322 = vld [vmem:[%s6 + $0x78] sm:$0xff]
    %v323 = vld [vmem:[%s7] sm:$0x3]
    %v325 = vperm.slane %v323, 0
    %v326 = vperm.slane %v323, 1
    %v345 = vunpack.c.l.b16 %v307
    %v346 = vunpack.c.h.b16 %v307
    %v347 = vunpack.c.l.b16 %v308
    %v348 = vunpack.c.h.b16 %v308
    %v349 = vunpack.c.l.b16 %v309
    %v350 = vunpack.c.h.b16 %v309
    %v351 = vunpack.c.l.b16 %v310
    %v352 = vunpack.c.h.b16 %v310
    %v353 = vunpack.c.l.b16 %v311
    %v354 = vunpack.c.h.b16 %v311
    %v355 = vunpack.c.l.b16 %v312
    %v356 = vunpack.c.h.b16 %v312
    %v357 = vunpack.c.l.b16 %v313
    %v358 = vunpack.c.h.b16 %v313
    %v359 = vunpack.c.l.b16 %v314
    %v360 = vunpack.c.h.b16 %v314
    %v361 = vunpack.c.l.b16 %v315
    %v362 = vunpack.c.h.b16 %v315
    %v363 = vunpack.c.l.b16 %v316
    %v364 = vunpack.c.h.b16 %v316
    %v365 = vunpack.c.l.b16 %v317
    %v366 = vunpack.c.h.b16 %v317
    %v367 = vunpack.c.l.b16 %v318
    %v368 = vunpack.c.h.b16 %v318
    %v369 = vunpack.c.l.b16 %v319
    %v370 = vunpack.c.h.b16 %v319
    %v371 = vunpack.c.l.b16 %v320
    %v372 = vunpack.c.h.b16 %v320
    %v373 = vunpack.c.l.b16 %v321
    %v374 = vunpack.c.h.b16 %v321
    %v375 = vunpack.c.l.b16 %v322
    %v376 = vunpack.c.h.b16 %v322
    %v377 = vpack.c.b16 %v347, %v345
    %v378 = vpack.c.b16 %v348, %v346
    %v379 = vpack.c.b16 %v351, %v349
    %v380 = vpack.c.b16 %v352, %v350
    %v381 = vpack.c.b16 %v355, %v353
    %v382 = vpack.c.b16 %v356, %v354
    %v383 = vpack.c.b16 %v359, %v357
    %v384 = vpack.c.b16 %v360, %v358
    %v385 = vpack.c.b16 %v363, %v361
    %v386 = vpack.c.b16 %v364, %v362
    %v387 = vpack.c.b16 %v367, %v365
    %v388 = vpack.c.b16 %v368, %v366
    %v389 = vpack.c.b16 %v371, %v369
    %v390 = vpack.c.b16 %v372, %v370
    %v391 = vpack.c.b16 %v375, %v373
    %v392 = vpack.c.b16 %v376, %v374
    %409 = vmatpush.bf16.msra.mxu0 %v391
    %410 = vmatpush.bf16.msra.mxu0 %v389
    %411 = vmatpush.bf16.msra.mxu0 %v387
    %412 = vmatpush.bf16.msra.mxu0 %v385
    %413 = vmatpush.bf16.msra.mxu0 %v383
    %414 = vmatpush.bf16.msra.mxu0 %v381
    %415 = vmatpush.bf16.msra.mxu0 %v379
    %416 = vmatpush.bf16.msra.mxu0 %v377
    %417 = vmatmul.bf16.gmra.mxu0 %v305
    %v418 = vpop.f32.mrf.mxu0
    %v419 = vadd.f32 %v325, %v418
    %v420 = vpop.f32.mrf.mxu0
    %v421 = vadd.f32 %v325, %v420
    %422 = vmatmul.bf16.gmra.mxu0 %v306
    %v423 = vpop.f32.mrf.mxu0
    %v424 = vadd.f32 %v325, %v423
    %v425 = vpop.f32.mrf.mxu0
    %v426 = vadd.f32 %v325, %v425
    %427 = vdwg.mxu0
    %428 = vmatpush.bf16.msra.mxu0 %v392
    %429 = vmatpush.bf16.msra.mxu0 %v390
    %430 = vmatpush.bf16.msra.mxu0 %v388
    %431 = vmatpush.bf16.msra.mxu0 %v386
    %432 = vmatpush.bf16.msra.mxu0 %v384
    %433 = vmatpush.bf16.msra.mxu0 %v382
    %434 = vmatpush.bf16.msra.mxu0 %v380
    %435 = vmatpush.bf16.msra.mxu0 %v378
    %436 = vmatmul.bf16.gmra.mxu0 %v305
    %v437 = vpop.f32.mrf.mxu0
    %v438 = vadd.f32 %v326, %v437
    %v439 = vpop.f32.mrf.mxu0
    %v440 = vadd.f32 %v326, %v439
    %441 = vmatmul.bf16.gmra.mxu0 %v306
    %v442 = vpop.f32.mrf.mxu0
    %v443 = vadd.f32 %v326, %v442
    %v444 = vpop.f32.mrf.mxu0
    %v445 = vadd.f32 %v326, %v444
    %446 = vdwg.mxu0
    %v447 = vmax.f32 %v419, 0.0
    %v448 = vmax.f32 %v438, 0.0
    %v449 = vmax.f32 %v421, 0.0
    %v450 = vmax.f32 %v440, 0.0
    %v451 = vmax.f32 %v424, 0.0
    %v452 = vmax.f32 %v443, 0.0
    %v453 = vmax.f32 %v426, 0.0
    %v454 = vmax.f32 %v445, 0.0
    %v455 = vld [vmem:[%s10] sm:$0xff]
    %v456 = vld [vmem:[%s10 + $0x8] sm:$0xff]
    %v457 = vld [vmem:[%s10 + $0x10] sm:$0xff]
    %v458 = vld [vmem:[%s10 + $0x18] sm:$0xff]
    %v459 = vpack.c.bf16 %v449, %v447
    %v460 = vpack.c.bf16 %v450, %v448
    %v461 = vpack.c.bf16 %v453, %v451
    %v462 = vpack.c.bf16 %v454, %v452
    %v463 = vld [vmem:[#allocation5] sm:$0xf]
    %v464 = vld [vmem:[#allocation5 + $0x4] sm:$0xf]
    %v465 = vld [vmem:[#allocation5 + $0x8] sm:$0xf]
    %v466 = vld [vmem:[#allocation5 + $0xc] sm:$0xf]
    %v467 = vld [vmem:[#allocation5 + $0x10] sm:$0xf]
    %v468 = vld [vmem:[#allocation5 + $0x14] sm:$0xf]
    %v469 = vld [vmem:[#allocation5 + $0x18] sm:$0xf]
    %v470 = vld [vmem:[#allocation5 + $0x1c] sm:$0xf]
    %v471 = vld [vmem:[#allocation5 + $0x20] sm:$0xf]
    %v472 = vld [vmem:[#allocation5 + $0x24] sm:$0xf]
    %v473 = vld [vmem:[#allocation5 + $0x28] sm:$0xf]
    %v474 = vld [vmem:[#allocation5 + $0x2c] sm:$0xf]
    %v475 = vld [vmem:[#allocation5 + $0x30] sm:$0xf]
    %v476 = vld [vmem:[#allocation5 + $0x34] sm:$0xf]
    %v477 = vld [vmem:[#allocation5 + $0x38] sm:$0xf]
    %v478 = vld [vmem:[#allocation5 + $0x3c] sm:$0xf]
    %v479 = vld [vmem:[#allocation5 + $0x40] sm:$0xf]
    %v480 = vld [vmem:[#allocation5 + $0x44] sm:$0xf]
    %v481 = vld [vmem:[#allocation5 + $0x48] sm:$0xf]
    %v482 = vld [vmem:[#allocation5 + $0x4c] sm:$0xf]
    %v483 = vld [vmem:[#allocation5 + $0x50] sm:$0xf]
    %v484 = vld [vmem:[#allocation5 + $0x54] sm:$0xf]
    %v485 = vld [vmem:[#allocation5 + $0x58] sm:$0xf]
    %v486 = vld [vmem:[#allocation5 + $0x5c] sm:$0xf]
    %v487 = vld [vmem:[#allocation5 + $0x60] sm:$0xf]
    %v488 = vld [vmem:[#allocation5 + $0x64] sm:$0xf]
    %v489 = vld [vmem:[#allocation5 + $0x68] sm:$0xf]
    %v490 = vld [vmem:[#allocation5 + $0x6c] sm:$0xf]
    %v491 = vld [vmem:[#allocation5 + $0x70] sm:$0xf]
    %v492 = vld [vmem:[#allocation5 + $0x74] sm:$0xf]
    %v493 = vld [vmem:[#allocation5 + $0x78] sm:$0xf]
    %v494 = vld [vmem:[#allocation5 + $0x7c] sm:$0xf]
    %v527 = vunpack.c.l.b16 %v463
    %v528 = vunpack.c.l.b16 %v464
    %v529 = vunpack.c.l.b16 %v465
    %v530 = vunpack.c.l.b16 %v466
    %v531 = vunpack.c.l.b16 %v467
    %v532 = vunpack.c.l.b16 %v468
    %v533 = vunpack.c.l.b16 %v469
    %v534 = vunpack.c.l.b16 %v470
    %v535 = vunpack.c.l.b16 %v471
    %v536 = vunpack.c.l.b16 %v472
    %v537 = vunpack.c.l.b16 %v473
    %v538 = vunpack.c.l.b16 %v474
    %v539 = vunpack.c.l.b16 %v475
    %v540 = vunpack.c.l.b16 %v476
    %v541 = vunpack.c.l.b16 %v477
    %v542 = vunpack.c.l.b16 %v478
    %v543 = vunpack.c.l.b16 %v479
    %v544 = vunpack.c.l.b16 %v480
    %v545 = vunpack.c.l.b16 %v481
    %v546 = vunpack.c.l.b16 %v482
    %v547 = vunpack.c.l.b16 %v483
    %v548 = vunpack.c.l.b16 %v484
    %v549 = vunpack.c.l.b16 %v485
    %v550 = vunpack.c.l.b16 %v486
    %v551 = vunpack.c.l.b16 %v487
    %v552 = vunpack.c.l.b16 %v488
    %v553 = vunpack.c.l.b16 %v489
    %v554 = vunpack.c.l.b16 %v490
    %v555 = vunpack.c.l.b16 %v491
    %v556 = vunpack.c.l.b16 %v492
    %v557 = vunpack.c.l.b16 %v493
    %v558 = vunpack.c.l.b16 %v494
    %v559 = vpack.c.b16 %v528, %v527
    %v560 = vpack.c.b16 %v530, %v529
    %v561 = vpack.c.b16 %v532, %v531
    %v562 = vpack.c.b16 %v534, %v533
    %v563 = vpack.c.b16 %v536, %v535
    %v564 = vpack.c.b16 %v538, %v537
    %v565 = vpack.c.b16 %v540, %v539
    %v566 = vpack.c.b16 %v542, %v541
    %v567 = vpack.c.b16 %v544, %v543
    %v568 = vpack.c.b16 %v546, %v545
    %v569 = vpack.c.b16 %v548, %v547
    %v570 = vpack.c.b16 %v550, %v549
    %v571 = vpack.c.b16 %v552, %v551
    %v572 = vpack.c.b16 %v554, %v553
    %v573 = vpack.c.b16 %v556, %v555
    %v574 = vpack.c.b16 %v558, %v557
    %591 = vmatpush.bf16.msra.mxu0 %v566
    %592 = vmatpush.bf16.msra.mxu0 %v565
    %593 = vmatpush.bf16.msra.mxu0 %v564
    %594 = vmatpush.bf16.msra.mxu0 %v563
    %595 = vmatpush.bf16.msra.mxu0 %v562
    %596 = vmatpush.bf16.msra.mxu0 %v561
    %597 = vmatpush.bf16.msra.mxu0 %v560
    %598 = vmatpush.bf16.msra.mxu0 %v559
    %599 = vmatmul.bf16.gmra.mxu0 %v459
    %v600 = vpop.f32.mrf.mxu0
    %v601 = vadd.f32 0.0, %v600
    %v602 = vpop.f32.mrf.mxu0
    %v603 = vadd.f32 0.0, %v602
    %604 = vmatmul.bf16.gmra.mxu0 %v461
    %v605 = vpop.f32.mrf.mxu0
    %v606 = vadd.f32 0.0, %v605
    %v607 = vpop.f32.mrf.mxu0
    %v608 = vadd.f32 0.0, %v607
    %609 = vdwg.mxu0
    %610 = vmatpush.bf16.msra.mxu0 %v574
    %611 = vmatpush.bf16.msra.mxu0 %v573
    %612 = vmatpush.bf16.msra.mxu0 %v572
    %613 = vmatpush.bf16.msra.mxu0 %v571
    %614 = vmatpush.bf16.msra.mxu0 %v570
    %615 = vmatpush.bf16.msra.mxu0 %v569
    %616 = vmatpush.bf16.msra.mxu0 %v568
    %617 = vmatpush.bf16.msra.mxu0 %v567
    %618 = vmatmul.bf16.gmra.mxu0 %v460
    %v619 = vpop.f32.mrf.mxu0
    %v620 = vadd.f32 %v601, %v619
    %v621 = vpop.f32.mrf.mxu0
    %v622 = vadd.f32 %v603, %v621
    %623 = vmatmul.bf16.gmra.mxu0 %v462
    %v624 = vpop.f32.mrf.mxu0
    %v625 = vadd.f32 %v606, %v624
    %v626 = vpop.f32.mrf.mxu0
    %v627 = vadd.f32 %v608, %v626
    %628 = vdwg.mxu0
    %v629 = vadd.f32 %v455, %v620
    %v630 = vadd.f32 %v456, %v622
    %v631 = vadd.f32 %v457, %v625
    %v632 = vadd.f32 %v458, %v627
    %633 = vst [vmem:[%s10] sm:$0xff] %v629
    %634 = vst [vmem:[%s10 + $0x8] sm:$0xff] %v630
    %635 = vst [vmem:[%s10 + $0x10] sm:$0xff] %v631
    %636 = vst [vmem:[%s10 + $0x18] sm:$0xff] %v632
    // Predicated region
    $region54: #{transformer_lm_forward.9} parent=1 // pred_check
      _
    $region55: #{transformer_lm_forward.9} parent=1 // pred_check_branch
      %638 = sbr.rel (0) target = $region57
    $region56: #{transformer_lm_forward.9} parent=1 // pred_region
      _
    $region57: #{transformer_lm_forward.9} parent=1 // pred_fallthru
      _
    // Predicated region
    $region58: #{transformer_lm_forward.9} parent=1 // pred_check
      _
    $region59: #{transformer_lm_forward.9} parent=1 // pred_check_branch
      %640 = sbr.rel (0) target = $region61
    $region60: #{transformer_lm_forward.9} parent=1 // pred_region
      _
    $region61: #{transformer_lm_forward.9} parent=1 // pred_fallthru
      _
    %641 = vsyncpa [#allocation4], 1
    %642 = vsyncpa [#allocation6], 1

// kernel: transformer_lm_forward.12
$region0: #{transformer_lm_forward.12}
  #allocation0 [shape = 'u32[]', space=smem, size = 0x4, offset = 0x4, fixed_abs, tag = 'smem constant byte address 0x4 - core index']
  #allocation1 [shape = 'u32[72,128]{1,0:T(1,128)}', space=vmem, size = 0x9000, scoped, tag = 'internal scratch']
  #allocation2 [shape = 'f32[32,128]{1,0:T(8,128)}', space=vmem, size = 0x4000, scoped, tag = 'scratch operand']
  %s0 = inlined_call_operand.vmem [shape: bf16[32,128], index: 0, kind: input, shape index: {}]
  %s1 = inlined_call_operand.vmem [shape: f32[32,128], index: 1, kind: input, shape index: {}]
  %s2 = inlined_call_operand.hbm [shape: bf16[128,128], index: 2, kind: input, shape index: {}]
  %s3 = inlined_call_operand.vmem [shape: f32[1,128], index: 3, kind: input, shape index: {}]
  %s4 = inlined_call_operand.vmem [shape: f32[1,128], index: 4, kind: input, shape index: {}]
  %s5 = inlined_call_operand.vmem [shape: f32[1,128], index: 5, kind: input, shape index: {}]
  %s6 = inlined_call_operand.hbm [shape: bf16[128,256], index: 6, kind: input, shape index: {}]
  %s7 = inlined_call_operand.vmem [shape: f32[1,256], index: 7, kind: input, shape index: {}]
  %s8 = inlined_call_operand.hbm [shape: bf16[256,128], index: 8, kind: input, shape index: {}]
  %s9 = inlined_call_operand.vmem [shape: f32[1,128], index: 9, kind: input, shape index: {}]
  %s10 = inlined_call_operand.vmem [shape: f32[32,128], index: 10, kind: output, shape index: {}]
  %s11 = sld [smem:[#allocation0]]
  $region66: #{transformer_lm_forward.12} parent=0
    _
  %s13 = ssub.s32 1, %s11
  %s14 = scalar_select 0, %s13, %s11
  $region1: #{transformer_lm_forward.12} parent=0
    #allocation3 [shape = 'u8[32768]{0}', space=vmem, size = 0x8000, scoped, tag = 'input window, operand 2, single buffered']
    #allocation4 [shape = 's32[1]{0}', space=sflag, size = 0x4, scoped, tag = 'scoped memory for transformer_lm_forward.12']
    #allocation5 [shape = 'u8[65536]{0}', space=vmem, size = 0x10000, scoped, tag = 'input window, operand 6, single buffered']
    #allocation6 [shape = 's32[1]{0}', space=sflag, size = 0x4, scoped, tag = 'scoped memory for transformer_lm_forward.12']
    #allocation7 [shape = 'u8[65536]{0}', space=vmem, size = 0x10000, scoped, tag = 'input window, operand 8, single buffered']
    %15 = vsyncpa [#allocation4], 0
    %16 = vsyncpa [#allocation6], 0
    // Predicated region
    $region2: #{transformer_lm_forward.12} parent=1 // pred_check
      _
    $region3: #{transformer_lm_forward.12} parent=1 // pred_check_branch
      %18 = sbr.rel (0) target = $region5
    $region4: #{transformer_lm_forward.12} parent=1 // pred_region
      _
    $region5: #{transformer_lm_forward.12} parent=1 // pred_fallthru
      _
    // Predicated region
    $region6: #{transformer_lm_forward.12} parent=1 // pred_check
      _
    $region7: #{transformer_lm_forward.12} parent=1 // pred_check_branch
      %20 = sbr.rel (0) target = $region9
    $region8: #{transformer_lm_forward.12} parent=1 // pred_region
      _
    $region9: #{transformer_lm_forward.12} parent=1 // pred_fallthru
      _
    // Predicated region
    $region10: #{transformer_lm_forward.12} parent=1 // pred_check
      _
    $region11: #{transformer_lm_forward.12} parent=1 // pred_check_branch
      %22 = sbr.rel (0) target = $region13
    $region12: #{transformer_lm_forward.12} parent=1 // pred_region
      %24 = vsyncadd [#allocation4], 0
      %s25 = sshll.u32 %s2, 4
      %s26 = int_to_ptr.hbm [resolvable:$true] %s25
      %s27 = sshll.u32 [#allocation3], 4
      %s28 = int_to_ptr.vmem [resolvable:$true] %s27
      %33 = dma.hbm_to_vmem [thread:$0]  %s26, 1024, %s28, [#allocation4], 64, 64, 4
    $region13: #{transformer_lm_forward.12} parent=1 // pred_fallthru
      _
    // Predicated region
    $region14: #{transformer_lm_forward.12} parent=1 // pred_check
      _
    $region15: #{transformer_lm_forward.12} parent=1 // pred_check_branch
      %35 = sbr.rel (0) target = $region17
    $region16: #{transformer_lm_forward.12} parent=1 // pred_region
      _
    $region17: #{transformer_lm_forward.12} parent=1 // pred_fallthru
      _
    // Predicated region
    $region18: #{transformer_lm_forward.12} parent=1 // pred_check
      _
    $region19: #{transformer_lm_forward.12} parent=1 // pred_check_branch
      %37 = sbr.rel (0) target = $region21
    $region20: #{transformer_lm_forward.12} parent=1 // pred_region
      _
    $region21: #{transformer_lm_forward.12} parent=1 // pred_fallthru
      _
    // Predicated region
    $region22: #{transformer_lm_forward.12} parent=1 // pred_check
      _
    $region23: #{transformer_lm_forward.12} parent=1 // pred_check_branch
      %39 = sbr.rel (0) target = $region25
    $region24: #{transformer_lm_forward.12} parent=1 // pred_region
      _
    $region25: #{transformer_lm_forward.12} parent=1 // pred_fallthru
      _
    // Predicated region
    $region26: #{transformer_lm_forward.12} parent=1 // pred_check
      _
    $region27: #{transformer_lm_forward.12} parent=1 // pred_check_branch
      %41 = sbr.rel (0) target = $region29
    $region28: #{transformer_lm_forward.12} parent=1 // pred_region
      %43 = vsyncadd [#allocation6], 0
      %s44 = sshll.u32 %s6, 4
      %s45 = int_to_ptr.hbm [resolvable:$true] %s44
      %s46 = sshll.u32 [#allocation5], 4
      %s47 = int_to_ptr.vmem [resolvable:$true] %s46
      %52 = dma.hbm_to_vmem [thread:$0]  %s45, 2048, %s47, [#allocation6], 128, 128, 8
    $region29: #{transformer_lm_forward.12} parent=1 // pred_fallthru
      _
    // Predicated region
    $region30: #{transformer_lm_forward.12} parent=1 // pred_check
      _
    $region31: #{transformer_lm_forward.12} parent=1 // pred_check_branch
      %54 = sbr.rel (0) target = $region33
    $region32: #{transformer_lm_forward.12} parent=1 // pred_region
      _
    $region33: #{transformer_lm_forward.12} parent=1 // pred_fallthru
      _
    // Predicated region
    $region34: #{transformer_lm_forward.12} parent=1 // pred_check
      _
    $region35: #{transformer_lm_forward.12} parent=1 // pred_check_branch
      %56 = sbr.rel (0) target = $region37
    $region36: #{transformer_lm_forward.12} parent=1 // pred_region
      %58 = vsyncadd [#allocation6], 0
      %s59 = sshll.u32 %s8, 4
      %s60 = int_to_ptr.hbm [resolvable:$true] %s59
      %s61 = sshll.u32 [#allocation7], 4
      %s62 = int_to_ptr.vmem [resolvable:$true] %s61
      %67 = dma.hbm_to_vmem [thread:$0]  %s60, 2048, %s62, [#allocation6], 64, 64, 4
    $region37: #{transformer_lm_forward.12} parent=1 // pred_fallthru
      _
    // Predicated region
    $region38: #{transformer_lm_forward.12} parent=1 // pred_check
      _
    $region39: #{transformer_lm_forward.12} parent=1 // pred_check_branch
      %69 = sbr.rel (0) target = $region41
    $region40: #{transformer_lm_forward.12} parent=1 // pred_region
      _
    $region41: #{transformer_lm_forward.12} parent=1 // pred_fallthru
      _
    // Predicated region
    $region42: #{transformer_lm_forward.12} parent=1 // pred_check
      _
    $region43: #{transformer_lm_forward.12} parent=1 // pred_check_branch
      %71 = sbr.rel (0) target = $region45
    $region44: #{transformer_lm_forward.12} parent=1 // pred_region
      %73 = dma.done [#allocation4], 1024
    $region45: #{transformer_lm_forward.12} parent=1 // pred_fallthru
      _
    // Predicated region
    $region46: #{transformer_lm_forward.12} parent=1 // pred_check
      _
    $region47: #{transformer_lm_forward.12} parent=1 // pred_check_branch
      %75 = sbr.rel (0) target = $region49
    $region48: #{transformer_lm_forward.12} parent=1 // pred_region
      %77 = dma.done [#allocation6], 2048
    $region49: #{transformer_lm_forward.12} parent=1 // pred_fallthru
      _
    // Predicated region
    $region50: #{transformer_lm_forward.12} parent=1 // pred_check
      _
    $region51: #{transformer_lm_forward.12} parent=1 // pred_check_branch
      %79 = sbr.rel (0) target = $region53
    $region52: #{transformer_lm_forward.12} parent=1 // pred_region
      %81 = dma.done [#allocation6], 2048
    $region53: #{transformer_lm_forward.12} parent=1 // pred_fallthru
      _
    %p82 = scmp.eq.s32.totalorder 0, 0
    // Predicated region
    $region54: #{transformer_lm_forward.12} parent=1 // pred_check
      %p83 = pneg %p82
    $region55: #{transformer_lm_forward.12} parent=1 // pred_check_branch
      %85 = sbr.rel (%p83) target = $region57
    $region56: #{transformer_lm_forward.12} parent=1 // pred_region
      %v86 = vld [vmem:[%s0] sm:$0xf]
      %v87 = vld [vmem:[%s0 + $0x4] sm:$0xf]
      %v88 = vld [vmem:[%s0 + $0x8] sm:$0xf]
      %v89 = vld [vmem:[%s0 + $0xc] sm:$0xf]
      %v90 = vld [vmem:[#allocation3] sm:$0xf]
      %v91 = vld [vmem:[#allocation3 + $0x4] sm:$0xf]
      %v92 = vld [vmem:[#allocation3 + $0x8] sm:$0xf]
      %v93 = vld [vmem:[#allocation3 + $0xc] sm:$0xf]
      %v94 = vld [vmem:[#allocation3 + $0x10] sm:$0xf]
      %v95 = vld [vmem:[#allocation3 + $0x14] sm:$0xf]
      %v96 = vld [vmem:[#allocation3 + $0x18] sm:$0xf]
      %v97 = vld [vmem:[#allocation3 + $0x1c] sm:$0xf]
      %v98 = vld [vmem:[#allocation3 + $0x20] sm:$0xf]
      %v99 = vld [vmem:[#allocation3 + $0x24] sm:$0xf]
      %v100 = vld [vmem:[#allocation3 + $0x28] sm:$0xf]
      %v101 = vld [vmem:[#allocation3 + $0x2c] sm:$0xf]
      %v102 = vld [vmem:[#allocation3 + $0x30] sm:$0xf]
      %v103 = vld [vmem:[#allocation3 + $0x34] sm:$0xf]
      %v104 = vld [vmem:[#allocation3 + $0x38] sm:$0xf]
      %v105 = vld [vmem:[#allocation3 + $0x3c] sm:$0xf]
      %v106 = vld [vmem:[%s3] sm:$0x1]
      %v108 = vperm.slane %v106, 0
      %v114 = vunpack.c.l.b16 %v86
      %v115 = vunpack.c.l.b16 %v87
      %v116 = vunpack.c.l.b16 %v88
      %v117 = vunpack.c.l.b16 %v89
      %v118 = vpack.c.b16 %v115, %v114
      %v119 = vpack.c.b16 %v117, %v116
      %v138 = vunpack.c.l.b16 %v90
      %v139 = vunpack.c.l.b16 %v91
      %v140 = vunpack.c.l.b16 %v92
      %v141 = vunpack.c.l.b16 %v93
      %v142 = vunpack.c.l.b16 %v94
      %v143 = vunpack.c.l.b16 %v95
      %v144 = vunpack.c.l.b16 %v96
      %v145 = vunpack.c.l.b16 %v97
      %v146 = vunpack.c.l.b16 %v98
      %v147 = vunpack.c.l.b16 %v99
      %v148 = vunpack.c.l.b16 %v100
      %v149 = vunpack.c.l.b16 %v101
      %v150 = vunpack.c.l.b16 %v102
      %v151 = vunpack.c.l.b16 %v103
      %v152 = vunpack.c.l.b16 %v104
      %v153 = vunpack.c.l.b16 %v105
      %v154 = vpack.c.b16 %v139, %v138
      %v155 = vpack.c.b16 %v141, %v140
      %v156 = vpack.c.b16 %v143, %v142
      %v157 = vpack.c.b16 %v145, %v144
      %v158 = vpack.c.b16 %v147, %v146
      %v159 = vpack.c.b16 %v149, %v148
      %v160 = vpack.c.b16 %v151, %v150
      %v161 = vpack.c.b16 %v153, %v152
      %170 = vmatpush.bf16.msra.mxu0 %v161
      %171 = vmatpush.bf16.msra.mxu0 %v160
      %172 = vmatpush.bf16.msra.mxu0 %v159
      %173 = vmatpush.bf16.msra.mxu0 %v158
      %174 = vmatpush.bf16.msra.mxu0 %v157
      %175 = vmatpush.bf16.msra.mxu0 %v156
      %176 = vmatpush.bf16.msra.mxu0 %v155
      %177 = vmatpush.bf16.msra.mxu0 %v154
      %178 = vmatmul.bf16.gmra.mxu0 %v118
      %v179 = vpop.f32.mrf.mxu0
      %v180 = vadd.f32 %v108, %v179
      %v181 = vpop.f32.mrf.mxu0
      %v182 = vadd.f32 %v108, %v181
      %183 = vmatmul.bf16.gmra.mxu0 %v119
      %v184 = vpop.f32.mrf.mxu0
      %v185 = vadd.f32 %v108, %v184
      %v186 = vpop.f32.mrf.mxu0
      %v187 = vadd.f32 %v108, %v186
      %188 = vdwg.mxu0
      %v189 = vld [vmem:[%s1] sm:$0xff]
      %v190 = vld [vmem:[%s1 + $0x8] sm:$0xff]
      %v191 = vld [vmem:[%s1 + $0x10] sm:$0xff]
      %v192 = vld [vmem:[%s1 + $0x18] sm:$0xff]
      %v193 = vadd.f32 %v180, %v189
      %v194 = vadd.f32 %v182, %v190
      %v195 = vadd.f32 %v185, %v191
      %v196 = vadd.f32 %v187, %v192
      %v197 = vld [vmem:[%s4] sm:$0x1]
      %v198 = vld [vmem:[%s5] sm:$0x1]
      %199 = vadd.xlane.f32.xlu0 %v193
      %v200 = vpop.xlane.xlu0 %199
      %201 = vadd.xlane.f32.xlu0 %v194
      %v202 = vpop.xlane.xlu0 %201
      %203 = vadd.xlane.f32.xlu0 %v195
      %v204 = vpop.xlane.xlu0 %203
      %205 = vadd.xlane.f32.xlu0 %v196
      %v206 = vpop.xlane.xlu0 %205
      %v207 = vrcp.pop 128.0
      %v208 = vmul.f32 128.0, %v207
      %v209 = vsub.f32 1.0, %v208
      %v210 = vmul.f32 %v207, %v209
      %v211 = vadd.f32 %v207, %v210
      %vm212 = vweird.f32 %v207
      %v213 = vsel %vm212, %v207, %v211
      %v214 = vmul.f32 %v200, %v213
      %v215 = vmul.f32 %v202, %v213
      %v216 = vmul.f32 %v204, %v213
      %v217 = vmul.f32 %v206, %v213
      %v218 = vsub.f32 %v193, %v214
      %v219 = vsub.f32 %v194, %v215
      %v220 = vsub.f32 %v195, %v216
      %v221 = vsub.f32 %v196, %v217
      %v222 = vmul.f32 %v218, %v218
      %v223 = vmul.f32 %v219, %v219
      %v224 = vmul.f32 %v220, %v220
      %v225 = vmul.f32 %v221, %v221
      %226 = vadd.xlane.f32.xlu0 %v222
      %v227 = vpop.xlane.xlu0 %226
      %228 = vadd.xlane.f32.xlu0 %v223
      %v229 = vpop.xlane.xlu0 %228
      %230 = vadd.xlane.f32.xlu0 %v224
      %v231 = vpop.xlane.xlu0 %230
      %232 = vadd.xlane.f32.xlu0 %v225
      %v233 = vpop.xlane.xlu0 %232
      %v234 = vmul.f32 %v227, %v213
      %v235 = vmul.f32 %v229, %v213
      %v236 = vmul.f32 %v231, %v213
      %v237 = vmul.f32 %v233, %v213
      %v238 = vadd.f32 %v234, 1e-12
      %v239 = vadd.f32 %v235, 1e-12
      %v240 = vadd.f32 %v236, 1e-12
      %v241 = vadd.f32 %v237, 1e-12
      %v242 = vrsqrt.pop %v238
      %v243 = vmul.f32 %v242, %v238
      %v244 = vmul.f32 %v243, %v242
      %v245 = vmul.f32 0.5, %v244
      %v246 = vsub.f32 1.5, %v245
      %v247 = vmul.f32 %v242, %v246
      %vm248 = vweird.f32 %v238
      %vm249 = vweird.f32 %v242
      %vm250 = vmor %vm248, %vm249
      %v251 = vsel %vm250, %v242, %v247
      %v252 = vrsqrt.pop %v239
      %v253 = vmul.f32 %v252, %v239
      %v254 = vmul.f32 %v253, %v252
      %v255 = vmul.f32 0.5, %v254
      %v256 = vsub.f32 1.5, %v255
      %v257 = vmul.f32 %v252, %v256
      %vm258 = vweird.f32 %v239
      %vm259 = vweird.f32 %v252
      %vm260 = vmor %vm258, %vm259
      %v261 = vsel %vm260, %v252, %v257
      %v262 = vrsqrt.pop %v240
      %v263 = vmul.f32 %v262, %v240
      %v264 = vmul.f32 %v263, %v262
      %v265 = vmul.f32 0.5, %v264
      %v266 = vsub.f32 1.5, %v265
      %v267 = vmul.f32 %v262, %v266
      %vm268 = vweird.f32 %v240
      %vm269 = vweird.f32 %v262
      %vm270 = vmor %vm268, %vm269
      %v271 = vsel %vm270, %v262, %v267
      %v272 = vrsqrt.pop %v241
      %v273 = vmul.f32 %v272, %v241
      %v274 = vmul.f32 %v273, %v272
      %v275 = vmul.f32 0.5, %v274
      %v276 = vsub.f32 1.5, %v275
      %v277 = vmul.f32 %v272, %v276
      %vm278 = vweird.f32 %v241
      %vm279 = vweird.f32 %v272
      %vm280 = vmor %vm278, %vm279
      %v281 = vsel %vm280, %v272, %v277
      %v282 = vmul.f32 %v218, %v251
      %v283 = vmul.f32 %v219, %v261
      %v284 = vmul.f32 %v220, %v271
      %v285 = vmul.f32 %v221, %v281
      %v287 = vperm.slane %v197, 0
      %v289 = vmul.f32 %v282, %v287
      %v290 = vmul.f32 %v283, %v287
      %v291 = vmul.f32 %v284, %v287
      %v292 = vmul.f32 %v285, %v287
      %v294 = vperm.slane %v198, 0
      %v296 = vadd.f32 %v289, %v294
      %v297 = vadd.f32 %v290, %v294
      %v298 = vadd.f32 %v291, %v294
      %v299 = vadd.f32 %v292, %v294
      %300 = vst [vmem:[#allocation2] sm:$0xff] %v296
      %301 = vst [vmem:[#allocation2 + $0x8] sm:$0xff] %v297
      %302 = vst [vmem:[#allocation2 + $0x10] sm:$0xff] %v298
      %303 = vst [vmem:[#allocation2 + $0x18] sm:$0xff] %v299
      %v304 = vld [vmem:[%s9] sm:$0x1]
      %v306 = vperm.slane %v304, 0
      %v308 = vadd.f32 %v296, %v306
      %v309 = vadd.f32 %v297, %v306
      %v310 = vadd.f32 %v298, %v306
      %v311 = vadd.f32 %v299, %v306
      %312 = vst [vmem:[%s10] sm:$0xff] %v308
      %313 = vst [vmem:[%s10 + $0x8] sm:$0xff] %v309
      %314 = vst [vmem:[%s10 + $0x10] sm:$0xff] %v310
      %315 = vst [vmem:[%s10 + $0x18] sm:$0xff] %v311
    $region57: #{transformer_lm_forward.12} parent=1 // pred_fallthru
      _
    %v316 = vld [vmem:[#allocation2] sm:$0xff]
    %v317 = vld [vmem:[#allocation2 + $0x8] sm:$0xff]
    %v318 = vld [vmem:[#allocation2 + $0x10] sm:$0xff]
    %v319 = vld [vmem:[#allocation2 + $0x18] sm:$0xff]
    %v320 = vpack.c.bf16 %v317, %v316
    %v321 = vpack.c.bf16 %v319, %v318
    %v322 = vld [vmem:[#allocation5] sm:$0xff]
    %v323 = vld [vmem:[#allocation5 + $0x8] sm:$0xff]
    %v324 = vld [vmem:[#allocation5 + $0x10] sm:$0xff]
    %v325 = vld [vmem:[#allocation5 + $0x18] sm:$0xff]
    %v326 = vld [vmem:[#allocation5 + $0x20] sm:$0xff]
    %v327 = vld [vmem:[#allocation5 + $0x28] sm:$0xff]
    %v328 = vld [vmem:[#allocation5 + $0x30] sm:$0xff]
    %v329 = vld [vmem:[#allocation5 + $0x38] sm:$0xff]
    %v330 = vld [vmem:[#allocation5 + $0x40] sm:$0xff]
    %v331 = vld [vmem:[#allocation5 + $0x48] sm:$0xff]
    %v332 = vld [vmem:[#allocation5 + $0x50] sm:$0xff]
    %v333 = vld [vmem:[#allocation5 + $0x58] sm:$0xff]
    %v334 = vld [vmem:[#allocation5 + $0x60] sm:$0xff]
    %v335 = vld [vmem:[#allocation5 + $0x68] sm:$0xff]
    %v336 = vld [vmem:[#allocation5 + $0x70] sm:$0xff]
    %v337 = vld [vmem:[#allocation5 + $0x78] sm:$0xff]
    %v338 = vld [vmem:[%s7] sm:$0x3]
    %v340 = vperm.slane %v338, 0
    %v341 = vperm.slane %v338, 1
    %v360 = vunpack.c.l.b16 %v322
    %v361 = vunpack.c.h.b16 %v322
    %v362 = vunpack.c.l.b16 %v323
    %v363 = vunpack.c.h.b16 %v323
    %v364 = vunpack.c.l.b16 %v324
    %v365 = vunpack.c.h.b16 %v324
    %v366 = vunpack.c.l.b16 %v325
    %v367 = vunpack.c.h.b16 %v325
    %v368 = vunpack.c.l.b16 %v326
    %v369 = vunpack.c.h.b16 %v326
    %v370 = vunpack.c.l.b16 %v327
    %v371 = vunpack.c.h.b16 %v327
    %v372 = vunpack.c.l.b16 %v328
    %v373 = vunpack.c.h.b16 %v328
    %v374 = vunpack.c.l.b16 %v329
    %v375 = vunpack.c.h.b16 %v329
    %v376 = vunpack.c.l.b16 %v330
    %v377 = vunpack.c.h.b16 %v330
    %v378 = vunpack.c.l.b16 %v331
    %v379 = vunpack.c.h.b16 %v331
    %v380 = vunpack.c.l.b16 %v332
    %v381 = vunpack.c.h.b16 %v332
    %v382 = vunpack.c.l.b16 %v333
    %v383 = vunpack.c.h.b16 %v333
    %v384 = vunpack.c.l.b16 %v334
    %v385 = vunpack.c.h.b16 %v334
    %v386 = vunpack.c.l.b16 %v335
    %v387 = vunpack.c.h.b16 %v335
    %v388 = vunpack.c.l.b16 %v336
    %v389 = vunpack.c.h.b16 %v336
    %v390 = vunpack.c.l.b16 %v337
    %v391 = vunpack.c.h.b16 %v337
    %v392 = vpack.c.b16 %v362, %v360
    %v393 = vpack.c.b16 %v363, %v361
    %v394 = vpack.c.b16 %v366, %v364
    %v395 = vpack.c.b16 %v367, %v365
    %v396 = vpack.c.b16 %v370, %v368
    %v397 = vpack.c.b16 %v371, %v369
    %v398 = vpack.c.b16 %v374, %v372
    %v399 = vpack.c.b16 %v375, %v373
    %v400 = vpack.c.b16 %v378, %v376
    %v401 = vpack.c.b16 %v379, %v377
    %v402 = vpack.c.b16 %v382, %v380
    %v403 = vpack.c.b16 %v383, %v381
    %v404 = vpack.c.b16 %v386, %v384
    %v405 = vpack.c.b16 %v387, %v385
    %v406 = vpack.c.b16 %v390, %v388
    %v407 = vpack.c.b16 %v391, %v389
    %424 = vmatpush.bf16.msra.mxu0 %v406
    %425 = vmatpush.bf16.msra.mxu0 %v404
    %426 = vmatpush.bf16.msra.mxu0 %v402
    %427 = vmatpush.bf16.msra.mxu0 %v400
    %428 = vmatpush.bf16.msra.mxu0 %v398
    %429 = vmatpush.bf16.msra.mxu0 %v396
    %430 = vmatpush.bf16.msra.mxu0 %v394
    %431 = vmatpush.bf16.msra.mxu0 %v392
    %432 = vmatmul.bf16.gmra.mxu0 %v320
    %v433 = vpop.f32.mrf.mxu0
    %v434 = vadd.f32 %v340, %v433
    %v435 = vpop.f32.mrf.mxu0
    %v436 = vadd.f32 %v340, %v435
    %437 = vmatmul.bf16.gmra.mxu0 %v321
    %v438 = vpop.f32.mrf.mxu0
    %v439 = vadd.f32 %v340, %v438
    %v440 = vpop.f32.mrf.mxu0
    %v441 = vadd.f32 %v340, %v440
    %442 = vdwg.mxu0
    %443 = vmatpush.bf16.msra.mxu0 %v407
    %444 = vmatpush.bf16.msra.mxu0 %v405
    %445 = vmatpush.bf16.msra.mxu0 %v403
    %446 = vmatpush.bf16.msra.mxu0 %v401
    %447 = vmatpush.bf16.msra.mxu0 %v399
    %448 = vmatpush.bf16.msra.mxu0 %v397
    %449 = vmatpush.bf16.msra.mxu0 %v395
    %450 = vmatpush.bf16.msra.mxu0 %v393
    %451 = vmatmul.bf16.gmra.mxu0 %v320
    %v452 = vpop.f32.mrf.mxu0
    %v453 = vadd.f32 %v341, %v452
    %v454 = vpop.f32.mrf.mxu0
    %v455 = vadd.f32 %v341, %v454
    %456 = vmatmul.bf16.gmra.mxu0 %v321
    %v457 = vpop.f32.mrf.mxu0
    %v458 = vadd.f32 %v341, %v457
    %v459 = vpop.f32.mrf.mxu0
    %v460 = vadd.f32 %v341, %v459
    %461 = vdwg.mxu0
    %v462 = vmax.f32 %v434, 0.0
    %v463 = vmax.f32 %v453, 0.0
    %v464 = vmax.f32 %v436, 0.0
    %v465 = vmax.f32 %v455, 0.0
    %v466 = vmax.f32 %v439, 0.0
    %v467 = vmax.f32 %v458, 0.0
    %v468 = vmax.f32 %v441, 0.0
    %v469 = vmax.f32 %v460, 0.0
    %v470 = vld [vmem:[%s10] sm:$0xff]
    %v471 = vld [vmem:[%s10 + $0x8] sm:$0xff]
    %v472 = vld [vmem:[%s10 + $0x10] sm:$0xff]
    %v473 = vld [vmem:[%s10 + $0x18] sm:$0xff]
    %v474 = vpack.c.bf16 %v464, %v462
    %v475 = vpack.c.bf16 %v465, %v463
    %v476 = vpack.c.bf16 %v468, %v466
    %v477 = vpack.c.bf16 %v469, %v467
    %v478 = vld [vmem:[#allocation7] sm:$0xf]
    %v479 = vld [vmem:[#allocation7 + $0x4] sm:$0xf]
    %v480 = vld [vmem:[#allocation7 + $0x8] sm:$0xf]
    %v481 = vld [vmem:[#allocation7 + $0xc] sm:$0xf]
    %v482 = vld [vmem:[#allocation7 + $0x10] sm:$0xf]
    %v483 = vld [vmem:[#allocation7 + $0x14] sm:$0xf]
    %v484 = vld [vmem:[#allocation7 + $0x18] sm:$0xf]
    %v485 = vld [vmem:[#allocation7 + $0x1c] sm:$0xf]
    %v486 = vld [vmem:[#allocation7 + $0x20] sm:$0xf]
    %v487 = vld [vmem:[#allocation7 + $0x24] sm:$0xf]
    %v488 = vld [vmem:[#allocation7 + $0x28] sm:$0xf]
    %v489 = vld [vmem:[#allocation7 + $0x2c] sm:$0xf]
    %v490 = vld [vmem:[#allocation7 + $0x30] sm:$0xf]
    %v491 = vld [vmem:[#allocation7 + $0x34] sm:$0xf]
    %v492 = vld [vmem:[#allocation7 + $0x38] sm:$0xf]
    %v493 = vld [vmem:[#allocation7 + $0x3c] sm:$0xf]
    %v494 = vld [vmem:[#allocation7 + $0x40] sm:$0xf]
    %v495 = vld [vmem:[#allocation7 + $0x44] sm:$0xf]
    %v496 = vld [vmem:[#allocation7 + $0x48] sm:$0xf]
    %v497 = vld [vmem:[#allocation7 + $0x4c] sm:$0xf]
    %v498 = vld [vmem:[#allocation7 + $0x50] sm:$0xf]
    %v499 = vld [vmem:[#allocation7 + $0x54] sm:$0xf]
    %v500 = vld [vmem:[#allocation7 + $0x58] sm:$0xf]
    %v501 = vld [vmem:[#allocation7 + $0x5c] sm:$0xf]
    %v502 = vld [vmem:[#allocation7 + $0x60] sm:$0xf]
    %v503 = vld [vmem:[#allocation7 + $0x64] sm:$0xf]
    %v504 = vld [vmem:[#allocation7 + $0x68] sm:$0xf]
    %v505 = vld [vmem:[#allocation7 + $0x6c] sm:$0xf]
    %v506 = vld [vmem:[#allocation7 + $0x70] sm:$0xf]
    %v507 = vld [vmem:[#allocation7 + $0x74] sm:$0xf]
    %v508 = vld [vmem:[#allocation7 + $0x78] sm:$0xf]
    %v509 = vld [vmem:[#allocation7 + $0x7c] sm:$0xf]
    %v542 = vunpack.c.l.b16 %v478
    %v543 = vunpack.c.l.b16 %v479
    %v544 = vunpack.c.l.b16 %v480
    %v545 = vunpack.c.l.b16 %v481
    %v546 = vunpack.c.l.b16 %v482
    %v547 = vunpack.c.l.b16 %v483
    %v548 = vunpack.c.l.b16 %v484
    %v549 = vunpack.c.l.b16 %v485
    %v550 = vunpack.c.l.b16 %v486
    %v551 = vunpack.c.l.b16 %v487
    %v552 = vunpack.c.l.b16 %v488
    %v553 = vunpack.c.l.b16 %v489
    %v554 = vunpack.c.l.b16 %v490
    %v555 = vunpack.c.l.b16 %v491
    %v556 = vunpack.c.l.b16 %v492
    %v557 = vunpack.c.l.b16 %v493
    %v558 = vunpack.c.l.b16 %v494
    %v559 = vunpack.c.l.b16 %v495
    %v560 = vunpack.c.l.b16 %v496
    %v561 = vunpack.c.l.b16 %v497
    %v562 = vunpack.c.l.b16 %v498
    %v563 = vunpack.c.l.b16 %v499
    %v564 = vunpack.c.l.b16 %v500
    %v565 = vunpack.c.l.b16 %v501
    %v566 = vunpack.c.l.b16 %v502
    %v567 = vunpack.c.l.b16 %v503
    %v568 = vunpack.c.l.b16 %v504
    %v569 = vunpack.c.l.b16 %v505
    %v570 = vunpack.c.l.b16 %v506
    %v571 = vunpack.c.l.b16 %v507
    %v572 = vunpack.c.l.b16 %v508
    %v573 = vunpack.c.l.b16 %v509
    %v574 = vpack.c.b16 %v543, %v542
    %v575 = vpack.c.b16 %v545, %v544
    %v576 = vpack.c.b16 %v547, %v546
    %v577 = vpack.c.b16 %v549, %v548
    %v578 = vpack.c.b16 %v551, %v550
    %v579 = vpack.c.b16 %v553, %v552
    %v580 = vpack.c.b16 %v555, %v554
    %v581 = vpack.c.b16 %v557, %v556
    %v582 = vpack.c.b16 %v559, %v558
    %v583 = vpack.c.b16 %v561, %v560
    %v584 = vpack.c.b16 %v563, %v562
    %v585 = vpack.c.b16 %v565, %v564
    %v586 = vpack.c.b16 %v567, %v566
    %v587 = vpack.c.b16 %v569, %v568
    %v588 = vpack.c.b16 %v571, %v570
    %v589 = vpack.c.b16 %v573, %v572
    %606 = vmatpush.bf16.msra.mxu0 %v581
    %607 = vmatpush.bf16.msra.mxu0 %v580
    %608 = vmatpush.bf16.msra.mxu0 %v579
    %609 = vmatpush.bf16.msra.mxu0 %v578
    %610 = vmatpush.bf16.msra.mxu0 %v577
    %611 = vmatpush.bf16.msra.mxu0 %v576
    %612 = vmatpush.bf16.msra.mxu0 %v575
    %613 = vmatpush.bf16.msra.mxu0 %v574
    %614 = vmatmul.bf16.gmra.mxu0 %v474
    %v615 = vpop.f32.mrf.mxu0
    %v616 = vadd.f32 0.0, %v615
    %v617 = vpop.f32.mrf.mxu0
    %v618 = vadd.f32 0.0, %v617
    %619 = vmatmul.bf16.gmra.mxu0 %v476
    %v620 = vpop.f32.mrf.mxu0
    %v621 = vadd.f32 0.0, %v620
    %v622 = vpop.f32.mrf.mxu0
    %v623 = vadd.f32 0.0, %v622
    %624 = vdwg.mxu0
    %625 = vmatpush.bf16.msra.mxu0 %v589
    %626 = vmatpush.bf16.msra.mxu0 %v588
    %627 = vmatpush.bf16.msra.mxu0 %v587
    %628 = vmatpush.bf16.msra.mxu0 %v586
    %629 = vmatpush.bf16.msra.mxu0 %v585
    %630 = vmatpush.bf16.msra.mxu0 %v584
    %631 = vmatpush.bf16.msra.mxu0 %v583
    %632 = vmatpush.bf16.msra.mxu0 %v582
    %633 = vmatmul.bf16.gmra.mxu0 %v475
    %v634 = vpop.f32.mrf.mxu0
    %v635 = vadd.f32 %v616, %v634
    %v636 = vpop.f32.mrf.mxu0
    %v637 = vadd.f32 %v618, %v636
    %638 = vmatmul.bf16.gmra.mxu0 %v477
    %v639 = vpop.f32.mrf.mxu0
    %v640 = vadd.f32 %v621, %v639
    %v641 = vpop.f32.mrf.mxu0
    %v642 = vadd.f32 %v623, %v641
    %643 = vdwg.mxu0
    %v644 = vadd.f32 %v470, %v635
    %v645 = vadd.f32 %v471, %v637
    %v646 = vadd.f32 %v472, %v640
    %v647 = vadd.f32 %v473, %v642
    %648 = vst [vmem:[%s10] sm:$0xff] %v644
    %649 = vst [vmem:[%s10 + $0x8] sm:$0xff] %v645
    %650 = vst [vmem:[%s10 + $0x10] sm:$0xff] %v646
    %651 = vst [vmem:[%s10 + $0x18] sm:$0xff] %v647
    // Predicated region
    $region58: #{transformer_lm_forward.12} parent=1 // pred_check
      _
    $region59: #{transformer_lm_forward.12} parent=1 // pred_check_branch
      %653 = sbr.rel (0) target = $region61
    $region60: #{transformer_lm_forward.12} parent=1 // pred_region
      _
    $region61: #{transformer_lm_forward.12} parent=1 // pred_fallthru
      _
    // Predicated region
    $region62: #{transformer_lm_forward.12} parent=1 // pred_check
      _
    $region63: #{transformer_lm_forward.12} parent=1 // pred_check_branch
      %655 = sbr.rel (0) target = $region65
    $region64: #{transformer_lm_forward.12} parent=1 // pred_region
      _
    $region65: #{transformer_lm_forward.12} parent=1 // pred_fallthru
      _
    %656 = vsyncpa [#allocation4], 1
    %657 = vsyncpa [#allocation6], 1

// kernel: transformer_lm_forward.7
$region0: #{transformer_lm_forward.7}
  #allocation0 [shape = 'u32[]', space=smem, size = 0x4, offset = 0x4, fixed_abs, tag = 'smem constant byte address 0x4 - core index']
  #allocation1 [shape = 'u32[72,128]{1,0:T(1,128)}', space=vmem, size = 0x9000, scoped, tag = 'internal scratch']
  %s0 = inlined_call_operand.vmem [shape: f32[32,128], index: 0, kind: input, shape index: {}]
  %s1 = inlined_call_operand.vmem [shape: f32[1,128], index: 1, kind: input, shape index: {}]
  %s2 = inlined_call_operand.vmem [shape: f32[1,128], index: 2, kind: input, shape index: {}]
  %s3 = inlined_call_operand.hbm [shape: bf16[128,384], index: 3, kind: input, shape index: {}]
  %s4 = inlined_call_operand.vmem [shape: f32[1,384], index: 4, kind: input, shape index: {}]
  %s5 = inlined_call_operand.vmem [shape: bf16[32,384], index: 5, kind: output, shape index: {0}]
  %s6 = inlined_call_operand.vmem [shape: f32[32,128], index: 6, kind: output, shape index: {1}]
  %7 = xla_tuple %s5, %s6
  %s8 = sld [smem:[#allocation0]]
  $region42: #{transformer_lm_forward.7} parent=0
    _
  %s10 = ssub.s32 1, %s8
  %s11 = scalar_select 0, %s10, %s8
  $region1: #{transformer_lm_forward.7} parent=0
    #allocation2 [shape = 'u8[98304]{0}', space=vmem, size = 0x18000, scoped, tag = 'input window, operand 3, single buffered']
    #allocation3 [shape = 's32[1]{0}', space=sflag, size = 0x4, scoped, tag = 'scoped memory for transformer_lm_forward.7']
    %12 = vsyncpa [#allocation3], 0
    // Predicated region
    $region2: #{transformer_lm_forward.7} parent=1 // pred_check
      _
    $region3: #{transformer_lm_forward.7} parent=1 // pred_check_branch
      %14 = sbr.rel (0) target = $region5
    $region4: #{transformer_lm_forward.7} parent=1 // pred_region
      _
    $region5: #{transformer_lm_forward.7} parent=1 // pred_fallthru
      _
    // Predicated region
    $region6: #{transformer_lm_forward.7} parent=1 // pred_check
      _
    $region7: #{transformer_lm_forward.7} parent=1 // pred_check_branch
      %16 = sbr.rel (0) target = $region9
    $region8: #{transformer_lm_forward.7} parent=1 // pred_region
      _
    $region9: #{transformer_lm_forward.7} parent=1 // pred_fallthru
      _
    // Predicated region
    $region10: #{transformer_lm_forward.7} parent=1 // pred_check
      _
    $region11: #{transformer_lm_forward.7} parent=1 // pred_check_branch
      %18 = sbr.rel (0) target = $region13
    $region12: #{transformer_lm_forward.7} parent=1 // pred_region
      _
    $region13: #{transformer_lm_forward.7} parent=1 // pred_fallthru
      _
    // Predicated region
    $region14: #{transformer_lm_forward.7} parent=1 // pred_check
      _
    $region15: #{transformer_lm_forward.7} parent=1 // pred_check_branch
      %20 = sbr.rel (0) target = $region17
    $region16: #{transformer_lm_forward.7} parent=1 // pred_region
      %22 = vsyncadd [#allocation3], 0
      %s23 = sshll.u32 %s3, 4
      %s24 = int_to_ptr.hbm [resolvable:$true] %s23
      %s25 = sshll.u32 [#allocation2], 4
      %s26 = int_to_ptr.vmem [resolvable:$true] %s25
      %31 = dma.hbm_to_vmem [thread:$0]  %s24, 3072, %s26, [#allocation3], 192, 192, 12
    $region17: #{transformer_lm_forward.7} parent=1 // pred_fallthru
      _
    // Predicated region
    $region18: #{transformer_lm_forward.7} parent=1 // pred_check
      _
    $region19: #{transformer_lm_forward.7} parent=1 // pred_check_branch
      %33 = sbr.rel (0) target = $region21
    $region20: #{transformer_lm_forward.7} parent=1 // pred_region
      _
    $region21: #{transformer_lm_forward.7} parent=1 // pred_fallthru
      _
    // Predicated region
    $region22: #{transformer_lm_forward.7} parent=1 // pred_check
      _
    $region23: #{transformer_lm_forward.7} parent=1 // pred_check_branch
      %35 = sbr.rel (0) target = $region25
    $region24: #{transformer_lm_forward.7} parent=1 // pred_region
      %37 = dma.done [#allocation3], 3072
    $region25: #{transformer_lm_forward.7} parent=1 // pred_fallthru
      _
    %v38 = vld [vmem:[%s0] sm:$0xff]
    %v39 = vld [vmem:[%s0 + $0x8] sm:$0xff]
    %v40 = vld [vmem:[%s0 + $0x10] sm:$0xff]
    %v41 = vld [vmem:[%s0 + $0x18] sm:$0xff]
    %v42 = vld [vmem:[%s1] sm:$0x1]
    %v43 = vld [vmem:[%s2] sm:$0x1]
    %44 = vadd.xlane.f32.xlu0 %v38
    %v45 = vpop.xlane.xlu0 %44
    %46 = vadd.xlane.f32.xlu0 %v39
    %v47 = vpop.xlane.xlu0 %46
    %48 = vadd.xlane.f32.xlu0 %v40
    %v49 = vpop.xlane.xlu0 %48
    %50 = vadd.xlane.f32.xlu0 %v41
    %v51 = vpop.xlane.xlu0 %50
    %v52 = vrcp.pop 128.0
    %v53 = vmul.f32 128.0, %v52
    %v54 = vsub.f32 1.0, %v53
    %v55 = vmul.f32 %v52, %v54
    %v56 = vadd.f32 %v52, %v55
    %vm57 = vweird.f32 %v52
    %v58 = vsel %vm57, %v52, %v56
    %v59 = vmul.f32 %v45, %v58
    %v60 = vmul.f32 %v47, %v58
    %v61 = vmul.f32 %v49, %v58
    %v62 = vmul.f32 %v51, %v58
    %v63 = vsub.f32 %v38, %v59
    %v64 = vsub.f32 %v39, %v60
    %v65 = vsub.f32 %v40, %v61
    %v66 = vsub.f32 %v41, %v62
    %v67 = vmul.f32 %v63, %v63
    %v68 = vmul.f32 %v64, %v64
    %v69 = vmul.f32 %v65, %v65
    %v70 = vmul.f32 %v66, %v66
    %71 = vadd.xlane.f32.xlu0 %v67
    %v72 = vpop.xlane.xlu0 %71
    %73 = vadd.xlane.f32.xlu0 %v68
    %v74 = vpop.xlane.xlu0 %73
    %75 = vadd.xlane.f32.xlu0 %v69
    %v76 = vpop.xlane.xlu0 %75
    %77 = vadd.xlane.f32.xlu0 %v70
    %v78 = vpop.xlane.xlu0 %77
    %v79 = vmul.f32 %v72, %v58
    %v80 = vmul.f32 %v74, %v58
    %v81 = vmul.f32 %v76, %v58
    %v82 = vmul.f32 %v78, %v58
    %v83 = vadd.f32 %v79, 1e-12
    %v84 = vadd.f32 %v80, 1e-12
    %v85 = vadd.f32 %v81, 1e-12
    %v86 = vadd.f32 %v82, 1e-12
    %v87 = vrsqrt.pop %v83
    %v88 = vmul.f32 %v87, %v83
    %v89 = vmul.f32 %v88, %v87
    %v90 = vmul.f32 0.5, %v89
    %v91 = vsub.f32 1.5, %v90
    %v92 = vmul.f32 %v87, %v91
    %vm93 = vweird.f32 %v83
    %vm94 = vweird.f32 %v87
    %vm95 = vmor %vm93, %vm94
    %v96 = vsel %vm95, %v87, %v92
    %v97 = vrsqrt.pop %v84
    %v98 = vmul.f32 %v97, %v84
    %v99 = vmul.f32 %v98, %v97
    %v100 = vmul.f32 0.5, %v99
    %v101 = vsub.f32 1.5, %v100
    %v102 = vmul.f32 %v97, %v101
    %vm103 = vweird.f32 %v84
    %vm104 = vweird.f32 %v97
    %vm105 = vmor %vm103, %vm104
    %v106 = vsel %vm105, %v97, %v102
    %v107 = vrsqrt.pop %v85
    %v108 = vmul.f32 %v107, %v85
    %v109 = vmul.f32 %v108, %v107
    %v110 = vmul.f32 0.5, %v109
    %v111 = vsub.f32 1.5, %v110
    %v112 = vmul.f32 %v107, %v111
    %vm113 = vweird.f32 %v85
    %vm114 = vweird.f32 %v107
    %vm115 = vmor %vm113, %vm114
    %v116 = vsel %vm115, %v107, %v112
    %v117 = vrsqrt.pop %v86
    %v118 = vmul.f32 %v117, %v86
    %v119 = vmul.f32 %v118, %v117
    %v120 = vmul.f32 0.5, %v119
    %v121 = vsub.f32 1.5, %v120
    %v122 = vmul.f32 %v117, %v121
    %vm123 = vweird.f32 %v86
    %vm124 = vweird.f32 %v117
    %vm125 = vmor %vm123, %vm124
    %v126 = vsel %vm125, %v117, %v122
    %v127 = vmul.f32 %v63, %v96
    %v128 = vmul.f32 %v64, %v106
    %v129 = vmul.f32 %v65, %v116
    %v130 = vmul.f32 %v66, %v126
    %v132 = vperm.slane %v42, 0
    %v134 = vmul.f32 %v127, %v132
    %v135 = vmul.f32 %v128, %v132
    %v136 = vmul.f32 %v129, %v132
    %v137 = vmul.f32 %v130, %v132
    %v139 = vperm.slane %v43, 0
    %v141 = vadd.f32 %v134, %v139
    %v142 = vadd.f32 %v135, %v139
    %v143 = vadd.f32 %v136, %v139
    %v144 = vadd.f32 %v137, %v139
    %145 = vst [vmem:[%s6] sm:$0xff] %v141
    %146 = vst [vmem:[%s6 + $0x8] sm:$0xff] %v142
    %147 = vst [vmem:[%s6 + $0x10] sm:$0xff] %v143
    %148 = vst [vmem:[%s6 + $0x18] sm:$0xff] %v144
    %v149 = vpack.c.bf16 %v142, %v141
    %v150 = vpack.c.bf16 %v144, %v143
    %v151 = vld [vmem:[#allocation2] sm:$0xff]
    %v152 = vld [vmem:[#allocation2 + $0x8] sm:$0xf]
    %v153 = vld [vmem:[#allocation2 + $0xc] sm:$0xff]
    %v154 = vld [vmem:[#allocation2 + $0x14] sm:$0xf]
    %v155 = vld [vmem:[#allocation2 + $0x18] sm:$0xff]
    %v156 = vld [vmem:[#allocation2 + $0x20] sm:$0xf]
    %v157 = vld [vmem:[#allocation2 + $0x24] sm:$0xff]
    %v158 = vld [vmem:[#allocation2 + $0x2c] sm:$0xf]
    %v159 = vld [vmem:[#allocation2 + $0x30] sm:$0xff]
    %v160 = vld [vmem:[#allocation2 + $0x38] sm:$0xf]
    %v161 = vld [vmem:[#allocation2 + $0x3c] sm:$0xff]
    %v162 = vld [vmem:[#allocation2 + $0x44] sm:$0xf]
    %v163 = vld [vmem:[#allocation2 + $0x48] sm:$0xff]
    %v164 = vld [vmem:[#allocation2 + $0x50] sm:$0xf]
    %v165 = vld [vmem:[#allocation2 + $0x54] sm:$0xff]
    %v166 = vld [vmem:[#allocation2 + $0x5c] sm:$0xf]
    %v167 = vld [vmem:[#allocation2 + $0x60] sm:$0xff]
    %v168 = vld [vmem:[#allocation2 + $0x68] sm:$0xf]
    %v169 = vld [vmem:[#allocation2 + $0x6c] sm:$0xff]
    %v170 = vld [vmem:[#allocation2 + $0x74] sm:$0xf]
    %v171 = vld [vmem:[#allocation2 + $0x78] sm:$0xff]
    %v172 = vld [vmem:[#allocation2 + $0x80] sm:$0xf]
    %v173 = vld [vmem:[#allocation2 + $0x84] sm:$0xff]
    %v174 = vld [vmem:[#allocation2 + $0x8c] sm:$0xf]
    %v175 = vld [vmem:[#allocation2 + $0x90] sm:$0xff]
    %v176 = vld [vmem:[#allocation2 + $0x98] sm:$0xf]
    %v177 = vld [vmem:[#allocation2 + $0x9c] sm:$0xff]
    %v178 = vld [vmem:[#allocation2 + $0xa4] sm:$0xf]
    %v179 = vld [vmem:[#allocation2 + $0xa8] sm:$0xff]
    %v180 = vld [vmem:[#allocation2 + $0xb0] sm:$0xf]
    %v181 = vld [vmem:[#allocation2 + $0xb4] sm:$0xff]
    %v182 = vld [vmem:[#allocation2 + $0xbc] sm:$0xf]
    %v183 = vld [vmem:[%s4] sm:$0x7]
    %v185 = vperm.slane %v183, 0
    %v186 = vperm.slane %v183, 1
    %v187 = vperm.slane %v183, 2
    %v223 = vunpack.c.l.b16 %v151
    %v224 = vunpack.c.h.b16 %v151
    %v225 = vunpack.c.l.b16 %v152
    %v226 = vunpack.c.l.b16 %v153
    %v227 = vunpack.c.h.b16 %v153
    %v228 = vunpack.c.l.b16 %v154
    %v229 = vunpack.c.l.b16 %v155
    %v230 = vunpack.c.h.b16 %v155
    %v231 = vunpack.c.l.b16 %v156
    %v232 = vunpack.c.l.b16 %v157
    %v233 = vunpack.c.h.b16 %v157
    %v234 = vunpack.c.l.b16 %v158
    %v235 = vunpack.c.l.b16 %v159
    %v236 = vunpack.c.h.b16 %v159
    %v237 = vunpack.c.l.b16 %v160
    %v238 = vunpack.c.l.b16 %v161
    %v239 = vunpack.c.h.b16 %v161
    %v240 = vunpack.c.l.b16 %v162
    %v241 = vunpack.c.l.b16 %v163
    %v242 = vunpack.c.h.b16 %v163
    %v243 = vunpack.c.l.b16 %v164
    %v244 = vunpack.c.l.b16 %v165
    %v245 = vunpack.c.h.b16 %v165
    %v246 = vunpack.c.l.b16 %v166
    %v247 = vunpack.c.l.b16 %v167
    %v248 = vunpack.c.h.b16 %v167
    %v249 = vunpack.c.l.b16 %v168
    %v250 = vunpack.c.l.b16 %v169
    %v251 = vunpack.c.h.b16 %v169
    %v252 = vunpack.c.l.b16 %v170
    %v253 = vunpack.c.l.b16 %v171
    %v254 = vunpack.c.h.b16 %v171
    %v255 = vunpack.c.l.b16 %v172
    %v256 = vunpack.c.l.b16 %v173
    %v257 = vunpack.c.h.b16 %v173
    %v258 = vunpack.c.l.b16 %v174
    %v259 = vunpack.c.l.b16 %v175
    %v260 = vunpack.c.h.b16 %v175
    %v261 = vunpack.c.l.b16 %v176
    %v262 = vunpack.c.l.b16 %v177
    %v263 = vunpack.c.h.b16 %v177
    %v264 = vunpack.c.l.b16 %v178
    %v265 = vunpack.c.l.b16 %v179
    %v266 = vunpack.c.h.b16 %v179
    %v267 = vunpack.c.l.b16 %v180
    %v268 = vunpack.c.l.b16 %v181
    %v269 = vunpack.c.h.b16 %v181
    %v270 = vunpack.c.l.b16 %v182
    %v271 = vpack.c.b16 %v226, %v223
    %v272 = vpack.c.b16 %v227, %v224
    %v273 = vpack.c.b16 %v228, %v225
    %v274 = vpack.c.b16 %v232, %v229
    %v275 = vpack.c.b16 %v233, %v230
    %v276 = vpack.c.b16 %v234, %v231
    %v277 = vpack.c.b16 %v238, %v235
    %v278 = vpack.c.b16 %v239, %v236
    %v279 = vpack.c.b16 %v240, %v237
    %v280 = vpack.c.b16 %v244, %v241
    %v281 = vpack.c.b16 %v245, %v242
    %v282 = vpack.c.b16 %v246, %v243
    %v283 = vpack.c.b16 %v250, %v247
    %v284 = vpack.c.b16 %v251, %v248
    %v285 = vpack.c.b16 %v252, %v249
    %v286 = vpack.c.b16 %v256, %v253
    %v287 = vpack.c.b16 %v257, %v254
    %v288 = vpack.c.b16 %v258, %v255
    %v289 = vpack.c.b16 %v262, %v259
    %v290 = vpack.c.b16 %v263, %v260
    %v291 = vpack.c.b16 %v264, %v261
    %v292 = vpack.c.b16 %v268, %v265
    %v293 = vpack.c.b16 %v269, %v266
    %v294 = vpack.c.b16 %v270, %v267
    %319 = vmatpush.bf16.msra.mxu0 %v292
    %320 = vmatpush.bf16.msra.mxu0 %v289
    %321 = vmatpush.bf16.msra.mxu0 %v286
    %322 = vmatpush.bf16.msra.mxu0 %v283
    %323 = vmatpush.bf16.msra.mxu0 %v280
    %324 = vmatpush.bf16.msra.mxu0 %v277
    %325 = vmatpush.bf16.msra.mxu0 %v274
    %326 = vmatpush.bf16.msra.mxu0 %v271
    %327 = vmatmul.bf16.gmra.mxu0 %v149
    %v328 = vpop.f32.mrf.mxu0
    %v329 = vadd.f32 %v185, %v328
    %v330 = vpop.f32.mrf.mxu0
    %v331 = vadd.f32 %v185, %v330
    %332 = vmatmul.bf16.gmra.mxu0 %v150
    %v333 = vpop.f32.mrf.mxu0
    %v334 = vadd.f32 %v185, %v333
    %v335 = vpop.f32.mrf.mxu0
    %v336 = vadd.f32 %v185, %v335
    %337 = vdwg.mxu0
    %338 = vmatpush.bf16.msra.mxu0 %v293
    %339 = vmatpush.bf16.msra.mxu0 %v290
    %340 = vmatpush.bf16.msra.mxu0 %v287
    %341 = vmatpush.bf16.msra.mxu0 %v284
    %342 = vmatpush.bf16.msra.mxu0 %v281
    %343 = vmatpush.bf16.msra.mxu0 %v278
    %344 = vmatpush.bf16.msra.mxu0 %v275
    %345 = vmatpush.bf16.msra.mxu0 %v272
    %346 = vmatmul.bf16.gmra.mxu0 %v149
    %v347 = vpop.f32.mrf.mxu0
    %v348 = vadd.f32 %v186, %v347
    %v349 = vpop.f32.mrf.mxu0
    %v350 = vadd.f32 %v186, %v349
    %351 = vmatmul.bf16.gmra.mxu0 %v150
    %v352 = vpop.f32.mrf.mxu0
    %v353 = vadd.f32 %v186, %v352
    %v354 = vpop.f32.mrf.mxu0
    %v355 = vadd.f32 %v186, %v354
    %356 = vdwg.mxu0
    %357 = vmatpush.bf16.msra.mxu0 %v294
    %358 = vmatpush.bf16.msra.mxu0 %v291
    %359 = vmatpush.bf16.msra.mxu0 %v288
    %360 = vmatpush.bf16.msra.mxu0 %v285
    %361 = vmatpush.bf16.msra.mxu0 %v282
    %362 = vmatpush.bf16.msra.mxu0 %v279
    %363 = vmatpush.bf16.msra.mxu0 %v276
    %364 = vmatpush.bf16.msra.mxu0 %v273
    %365 = vmatmul.bf16.gmra.mxu0 %v149
    %v366 = vpop.f32.mrf.mxu0
    %v367 = vadd.f32 %v187, %v366
    %v368 = vpop.f32.mrf.mxu0
    %v369 = vadd.f32 %v187, %v368
    %370 = vmatmul.bf16.gmra.mxu0 %v150
    %v371 = vpop.f32.mrf.mxu0
    %v372 = vadd.f32 %v187, %v371
    %v373 = vpop.f32.mrf.mxu0
    %v374 = vadd.f32 %v187, %v373
    %375 = vdwg.mxu0
    %v376 = vpack.c.bf16 %v348, %v329
    %v377 = vpack.c.bf16 %v367, %v367
    %v378 = vpack.c.bf16 %v350, %v331
    %v379 = vpack.c.bf16 %v369, %v369
    %v380 = vpack.c.bf16 %v353, %v334
    %v381 = vpack.c.bf16 %v372, %v372
    %v382 = vpack.c.bf16 %v355, %v336
    %v383 = vpack.c.bf16 %v374, %v374
    %384 = vst [vmem:[%s5] sm:$0xff] %v376
    %385 = vst [vmem:[%s5 + $0x8] sm:$0xf] %v377
    %386 = vst [vmem:[%s5 + $0xc] sm:$0xff] %v378
    %387 = vst [vmem:[%s5 + $0x14] sm:$0xf] %v379
    %388 = vst [vmem:[%s5 + $0x18] sm:$0xff] %v380
    %389 = vst [vmem:[%s5 + $0x20] sm:$0xf] %v381
    %390 = vst [vmem:[%s5 + $0x24] sm:$0xff] %v382
    %391 = vst [vmem:[%s5 + $0x2c] sm:$0xf] %v383
    // Predicated region
    $region26: #{transformer_lm_forward.7} parent=1 // pred_check
      _
    $region27: #{transformer_lm_forward.7} parent=1 // pred_check_branch
      %393 = sbr.rel (0) target = $region29
    $region28: #{transformer_lm_forward.7} parent=1 // pred_region
      _
    $region29: #{transformer_lm_forward.7} parent=1 // pred_fallthru
      _
    // Predicated region
    $region30: #{transformer_lm_forward.7} parent=1 // pred_check
      _
    $region31: #{transformer_lm_forward.7} parent=1 // pred_check_branch
      %395 = sbr.rel (0) target = $region33
    $region32: #{transformer_lm_forward.7} parent=1 // pred_region
      _
    $region33: #{transformer_lm_forward.7} parent=1 // pred_fallthru
      _
    // Predicated region
    $region34: #{transformer_lm_forward.7} parent=1 // pred_check
      _
    $region35: #{transformer_lm_forward.7} parent=1 // pred_check_branch
      %397 = sbr.rel (0) target = $region37
    $region36: #{transformer_lm_forward.7} parent=1 // pred_region
      _
    $region37: #{transformer_lm_forward.7} parent=1 // pred_fallthru
      _
    // Predicated region
    $region38: #{transformer_lm_forward.7} parent=1 // pred_check
      _
    $region39: #{transformer_lm_forward.7} parent=1 // pred_check_branch
      %399 = sbr.rel (0) target = $region41
    $region40: #{transformer_lm_forward.7} parent=1 // pred_region
      _
    $region41: #{transformer_lm_forward.7} parent=1 // pred_fallthru
      _
    %400 = vsyncpa [#allocation3], 1

// kernel: transformer_lm_forward.13
$region0: #{transformer_lm_forward.13}
  #allocation0 [shape = 'u32[]', space=smem, size = 0x4, offset = 0x4, fixed_abs, tag = 'smem constant byte address 0x4 - core index']
  #allocation1 [shape = 'u32[72,128]{1,0:T(1,128)}', space=vmem, size = 0x9000, scoped, tag = 'internal scratch']
  %s0 = inlined_call_operand.vmem [shape: f32[32,128], index: 0, kind: input, shape index: {}]
  %s1 = inlined_call_operand.vmem [shape: bf16[128,512], index: 1, kind: input, shape index: {}]
  %s2 = inlined_call_operand.vmem [shape: f32[1,512], index: 2, kind: input, shape index: {}]
  %s3 = inlined_call_operand.hbm [shape: f32[32,512], index: 3, kind: output, shape index: {}]
  %s4 = sld [smem:[#allocation0]]
  $region22: #{transformer_lm_forward.13} parent=0
    _
  %s6 = ssub.s32 1, %s4
  %s7 = scalar_select 0, %s6, %s4
  $region1: #{transformer_lm_forward.13} parent=0
    #allocation2 [shape = 'u8[65536]{0}', space=vmem, size = 0x10000, scoped, tag = 'output window, operand 0, single buffered']
    #allocation3 [shape = 's32[1]{0}', space=sflag, size = 0x4, scoped, tag = 'scoped memory for transformer_lm_forward.13']
    %8 = vsyncpa [#allocation3], 0
    // Predicated region
    $region2: #{transformer_lm_forward.13} parent=1 // pred_check
      _
    $region3: #{transformer_lm_forward.13} parent=1 // pred_check_branch
      %10 = sbr.rel (0) target = $region5
    $region4: #{transformer_lm_forward.13} parent=1 // pred_region
      _
    $region5: #{transformer_lm_forward.13} parent=1 // pred_fallthru
      _
    // Predicated region
    $region6: #{transformer_lm_forward.13} parent=1 // pred_check
      _
    $region7: #{transformer_lm_forward.13} parent=1 // pred_check_branch
      %12 = sbr.rel (0) target = $region9
    $region8: #{transformer_lm_forward.13} parent=1 // pred_region
      _
    $region9: #{transformer_lm_forward.13} parent=1 // pred_fallthru
      _
    // Predicated region
    $region10: #{transformer_lm_forward.13} parent=1 // pred_check
      _
    $region11: #{transformer_lm_forward.13} parent=1 // pred_check_branch
      %14 = sbr.rel (0) target = $region13
    $region12: #{transformer_lm_forward.13} parent=1 // pred_region
      _
    $region13: #{transformer_lm_forward.13} parent=1 // pred_fallthru
      _
    %v15 = vld [vmem:[%s0] sm:$0xff]
    %v16 = vld [vmem:[%s0 + $0x8] sm:$0xff]
    %v17 = vld [vmem:[%s0 + $0x10] sm:$0xff]
    %v18 = vld [vmem:[%s0 + $0x18] sm:$0xff]
    %v19 = vpack.c.bf16 %v16, %v15
    %v20 = vpack.c.bf16 %v18, %v17
    %v21 = vld [vmem:[%s1] sm:$0xff]
    %v22 = vld [vmem:[%s1 + $0x8] sm:$0xff]
    %v23 = vld [vmem:[%s1 + $0x10] sm:$0xff]
    %v24 = vld [vmem:[%s1 + $0x18] sm:$0xff]
    %v25 = vld [vmem:[%s1 + $0x20] sm:$0xff]
    %v26 = vld [vmem:[%s1 + $0x28] sm:$0xff]
    %v27 = vld [vmem:[%s1 + $0x30] sm:$0xff]
    %v28 = vld [vmem:[%s1 + $0x38] sm:$0xff]
    %v29 = vld [vmem:[%s1 + $0x40] sm:$0xff]
    %v30 = vld [vmem:[%s1 + $0x48] sm:$0xff]
    %v31 = vld [vmem:[%s1 + $0x50] sm:$0xff]
    %v32 = vld [vmem:[%s1 + $0x58] sm:$0xff]
    %v33 = vld [vmem:[%s1 + $0x60] sm:$0xff]
    %v34 = vld [vmem:[%s1 + $0x68] sm:$0xff]
    %v35 = vld [vmem:[%s1 + $0x70] sm:$0xff]
    %v36 = vld [vmem:[%s1 + $0x78] sm:$0xff]
    %v37 = vld [vmem:[%s1 + $0x80] sm:$0xff]
    %v38 = vld [vmem:[%s1 + $0x88] sm:$0xff]
    %v39 = vld [vmem:[%s1 + $0x90] sm:$0xff]
    %v40 = vld [vmem:[%s1 + $0x98] sm:$0xff]
    %v41 = vld [vmem:[%s1 + $0xa0] sm:$0xff]
    %v42 = vld [vmem:[%s1 + $0xa8] sm:$0xff]
    %v43 = vld [vmem:[%s1 + $0xb0] sm:$0xff]
    %v44 = vld [vmem:[%s1 + $0xb8] sm:$0xff]
    %v45 = vld [vmem:[%s1 + $0xc0] sm:$0xff]
    %v46 = vld [vmem:[%s1 + $0xc8] sm:$0xff]
    %v47 = vld [vmem:[%s1 + $0xd0] sm:$0xff]
    %v48 = vld [vmem:[%s1 + $0xd8] sm:$0xff]
    %v49 = vld [vmem:[%s1 + $0xe0] sm:$0xff]
    %v50 = vld [vmem:[%s1 + $0xe8] sm:$0xff]
    %v51 = vld [vmem:[%s1 + $0xf0] sm:$0xff]
    %v52 = vld [vmem:[%s1 + $0xf8] sm:$0xff]
    %v53 = vld [vmem:[%s2] sm:$0xf]
    %v55 = vperm.slane %v53, 0
    %v56 = vperm.slane %v53, 1
    %v57 = vperm.slane %v53, 2
    %v58 = vperm.slane %v53, 3
    %v95 = vunpack.c.l.b16 %v21
    %v96 = vunpack.c.h.b16 %v21
    %v97 = vunpack.c.l.b16 %v22
    %v98 = vunpack.c.h.b16 %v22
    %v99 = vunpack.c.l.b16 %v23
    %v100 = vunpack.c.h.b16 %v23
    %v101 = vunpack.c.l.b16 %v24
    %v102 = vunpack.c.h.b16 %v24
    %v103 = vunpack.c.l.b16 %v25
    %v104 = vunpack.c.h.b16 %v25
    %v105 = vunpack.c.l.b16 %v26
    %v106 = vunpack.c.h.b16 %v26
    %v107 = vunpack.c.l.b16 %v27
    %v108 = vunpack.c.h.b16 %v27
    %v109 = vunpack.c.l.b16 %v28
    %v110 = vunpack.c.h.b16 %v28
    %v111 = vunpack.c.l.b16 %v29
    %v112 = vunpack.c.h.b16 %v29
    %v113 = vunpack.c.l.b16 %v30
    %v114 = vunpack.c.h.b16 %v30
    %v115 = vunpack.c.l.b16 %v31
    %v116 = vunpack.c.h.b16 %v31
    %v117 = vunpack.c.l.b16 %v32
    %v118 = vunpack.c.h.b16 %v32
    %v119 = vunpack.c.l.b16 %v33
    %v120 = vunpack.c.h.b16 %v33
    %v121 = vunpack.c.l.b16 %v34
    %v122 = vunpack.c.h.b16 %v34
    %v123 = vunpack.c.l.b16 %v35
    %v124 = vunpack.c.h.b16 %v35
    %v125 = vunpack.c.l.b16 %v36
    %v126 = vunpack.c.h.b16 %v36
    %v127 = vunpack.c.l.b16 %v37
    %v128 = vunpack.c.h.b16 %v37
    %v129 = vunpack.c.l.b16 %v38
    %v130 = vunpack.c.h.b16 %v38
    %v131 = vunpack.c.l.b16 %v39
    %v132 = vunpack.c.h.b16 %v39
    %v133 = vunpack.c.l.b16 %v40
    %v134 = vunpack.c.h.b16 %v40
    %v135 = vunpack.c.l.b16 %v41
    %v136 = vunpack.c.h.b16 %v41
    %v137 = vunpack.c.l.b16 %v42
    %v138 = vunpack.c.h.b16 %v42
    %v139 = vunpack.c.l.b16 %v43
    %v140 = vunpack.c.h.b16 %v43
    %v141 = vunpack.c.l.b16 %v44
    %v142 = vunpack.c.h.b16 %v44
    %v143 = vunpack.c.l.b16 %v45
    %v144 = vunpack.c.h.b16 %v45
    %v145 = vunpack.c.l.b16 %v46
    %v146 = vunpack.c.h.b16 %v46
    %v147 = vunpack.c.l.b16 %v47
    %v148 = vunpack.c.h.b16 %v47
    %v149 = vunpack.c.l.b16 %v48
    %v150 = vunpack.c.h.b16 %v48
    %v151 = vunpack.c.l.b16 %v49
    %v152 = vunpack.c.h.b16 %v49
    %v153 = vunpack.c.l.b16 %v50
    %v154 = vunpack.c.h.b16 %v50
    %v155 = vunpack.c.l.b16 %v51
    %v156 = vunpack.c.h.b16 %v51
    %v157 = vunpack.c.l.b16 %v52
    %v158 = vunpack.c.h.b16 %v52
    %v159 = vpack.c.b16 %v99, %v95
    %v160 = vpack.c.b16 %v100, %v96
    %v161 = vpack.c.b16 %v101, %v97
    %v162 = vpack.c.b16 %v102, %v98
    %v163 = vpack.c.b16 %v107, %v103
    %v164 = vpack.c.b16 %v108, %v104
    %v165 = vpack.c.b16 %v109, %v105
    %v166 = vpack.c.b16 %v110, %v106
    %v167 = vpack.c.b16 %v115, %v111
    %v168 = vpack.c.b16 %v116, %v112
    %v169 = vpack.c.b16 %v117, %v113
    %v170 = vpack.c.b16 %v118, %v114
    %v171 = vpack.c.b16 %v123, %v119
    %v172 = vpack.c.b16 %v124, %v120
    %v173 = vpack.c.b16 %v125, %v121
    %v174 = vpack.c.b16 %v126, %v122
    %v175 = vpack.c.b16 %v131, %v127
    %v176 = vpack.c.b16 %v132, %v128
    %v177 = vpack.c.b16 %v133, %v129
    %v178 = vpack.c.b16 %v134, %v130
    %v179 = vpack.c.b16 %v139, %v135
    %v180 = vpack.c.b16 %v140, %v136
    %v181 = vpack.c.b16 %v141, %v137
    %v182 = vpack.c.b16 %v142, %v138
    %v183 = vpack.c.b16 %v147, %v143
    %v184 = vpack.c.b16 %v148, %v144
    %v185 = vpack.c.b16 %v149, %v145
    %v186 = vpack.c.b16 %v150, %v146
    %v187 = vpack.c.b16 %v155, %v151
    %v188 = vpack.c.b16 %v156, %v152
    %v189 = vpack.c.b16 %v157, %v153
    %v190 = vpack.c.b16 %v158, %v154
    %223 = vmatpush.bf16.msra.mxu0 %v187
    %224 = vmatpush.bf16.msra.mxu0 %v183
    %225 = vmatpush.bf16.msra.mxu0 %v179
    %226 = vmatpush.bf16.msra.mxu0 %v175
    %227 = vmatpush.bf16.msra.mxu0 %v171
    %228 = vmatpush.bf16.msra.mxu0 %v167
    %229 = vmatpush.bf16.msra.mxu0 %v163
    %230 = vmatpush.bf16.msra.mxu0 %v159
    %231 = vmatmul.bf16.gmra.mxu0 %v19
    %v232 = vpop.f32.mrf.mxu0
    %v233 = vadd.f32 %v55, %v232
    %v234 = vpop.f32.mrf.mxu0
    %v235 = vadd.f32 %v55, %v234
    %236 = vmatmul.bf16.gmra.mxu0 %v20
    %v237 = vpop.f32.mrf.mxu0
    %v238 = vadd.f32 %v55, %v237
    %v239 = vpop.f32.mrf.mxu0
    %v240 = vadd.f32 %v55, %v239
    %241 = vdwg.mxu0
    %242 = vmatpush.bf16.msra.mxu0 %v188
    %243 = vmatpush.bf16.msra.mxu0 %v184
    %244 = vmatpush.bf16.msra.mxu0 %v180
    %245 = vmatpush.bf16.msra.mxu0 %v176
    %246 = vmatpush.bf16.msra.mxu0 %v172
    %247 = vmatpush.bf16.msra.mxu0 %v168
    %248 = vmatpush.bf16.msra.mxu0 %v164
    %249 = vmatpush.bf16.msra.mxu0 %v160
    %250 = vmatmul.bf16.gmra.mxu0 %v19
    %v251 = vpop.f32.mrf.mxu0
    %v252 = vadd.f32 %v56, %v251
    %v253 = vpop.f32.mrf.mxu0
    %v254 = vadd.f32 %v56, %v253
    %255 = vmatmul.bf16.gmra.mxu0 %v20
    %v256 = vpop.f32.mrf.mxu0
    %v257 = vadd.f32 %v56, %v256
    %v258 = vpop.f32.mrf.mxu0
    %v259 = vadd.f32 %v56, %v258
    %260 = vdwg.mxu0
    %261 = vmatpush.bf16.msra.mxu0 %v189
    %262 = vmatpush.bf16.msra.mxu0 %v185
    %263 = vmatpush.bf16.msra.mxu0 %v181
    %264 = vmatpush.bf16.msra.mxu0 %v177
    %265 = vmatpush.bf16.msra.mxu0 %v173
    %266 = vmatpush.bf16.msra.mxu0 %v169
    %267 = vmatpush.bf16.msra.mxu0 %v165
    %268 = vmatpush.bf16.msra.mxu0 %v161
    %269 = vmatmul.bf16.gmra.mxu0 %v19
    %v270 = vpop.f32.mrf.mxu0
    %v271 = vadd.f32 %v57, %v270
    %v272 = vpop.f32.mrf.mxu0
    %v273 = vadd.f32 %v57, %v272
    %274 = vmatmul.bf16.gmra.mxu0 %v20
    %v275 = vpop.f32.mrf.mxu0
    %v276 = vadd.f32 %v57, %v275
    %v277 = vpop.f32.mrf.mxu0
    %v278 = vadd.f32 %v57, %v277
    %279 = vdwg.mxu0
    %280 = vmatpush.bf16.msra.mxu0 %v190
    %281 = vmatpush.bf16.msra.mxu0 %v186
    %282 = vmatpush.bf16.msra.mxu0 %v182
    %283 = vmatpush.bf16.msra.mxu0 %v178
    %284 = vmatpush.bf16.msra.mxu0 %v174
    %285 = vmatpush.bf16.msra.mxu0 %v170
    %286 = vmatpush.bf16.msra.mxu0 %v166
    %287 = vmatpush.bf16.msra.mxu0 %v162
    %288 = vmatmul.bf16.gmra.mxu0 %v19
    %v289 = vpop.f32.mrf.mxu0
    %v290 = vadd.f32 %v58, %v289
    %v291 = vpop.f32.mrf.mxu0
    %v292 = vadd.f32 %v58, %v291
    %293 = vmatmul.bf16.gmra.mxu0 %v20
    %v294 = vpop.f32.mrf.mxu0
    %v295 = vadd.f32 %v58, %v294
    %v296 = vpop.f32.mrf.mxu0
    %v297 = vadd.f32 %v58, %v296
    %298 = vdwg.mxu0
    %299 = vst [vmem:[#allocation2] sm:$0xff] %v233
    %300 = vst [vmem:[#allocation2 + $0x8] sm:$0xff] %v252
    %301 = vst [vmem:[#allocation2 + $0x10] sm:$0xff] %v271
    %302 = vst [vmem:[#allocation2 + $0x18] sm:$0xff] %v290
    %303 = vst [vmem:[#allocation2 + $0x20] sm:$0xff] %v235
    %304 = vst [vmem:[#allocation2 + $0x28] sm:$0xff] %v254
    %305 = vst [vmem:[#allocation2 + $0x30] sm:$0xff] %v273
    %306 = vst [vmem:[#allocation2 + $0x38] sm:$0xff] %v292
    %307 = vst [vmem:[#allocation2 + $0x40] sm:$0xff] %v238
    %308 = vst [vmem:[#allocation2 + $0x48] sm:$0xff] %v257
    %309 = vst [vmem:[#allocation2 + $0x50] sm:$0xff] %v276
    %310 = vst [vmem:[#allocation2 + $0x58] sm:$0xff] %v295
    %311 = vst [vmem:[#allocation2 + $0x60] sm:$0xff] %v240
    %312 = vst [vmem:[#allocation2 + $0x68] sm:$0xff] %v259
    %313 = vst [vmem:[#allocation2 + $0x70] sm:$0xff] %v278
    %314 = vst [vmem:[#allocation2 + $0x78] sm:$0xff] %v297
    // Predicated region
    $region14: #{transformer_lm_forward.13} parent=1 // pred_check
      _
    $region15: #{transformer_lm_forward.13} parent=1 // pred_check_branch
      %316 = sbr.rel (0) target = $region17
    $region16: #{transformer_lm_forward.13} parent=1 // pred_region
      %318 = vsyncadd [#allocation3], 0
      %s319 = sshll.u32 [#allocation2], 4
      %s320 = int_to_ptr.vmem [resolvable:$true] %s319
      %s321 = sshll.u32 %s3, 4
      %s322 = int_to_ptr.hbm [resolvable:$true] %s321
      %327 = dma.vmem_to_hbm [thread:$0]  %s320, 2048, %s322, [#allocation3], 512, 512, 32
    $region17: #{transformer_lm_forward.13} parent=1 // pred_fallthru
      _
    // Predicated region
    $region18: #{transformer_lm_forward.13} parent=1 // pred_check
      _
    $region19: #{transformer_lm_forward.13} parent=1 // pred_check_branch
      %329 = sbr.rel (0) target = $region21
    $region20: #{transformer_lm_forward.13} parent=1 // pred_region
      %331 = dma.done [#allocation3], 2048
    $region21: #{transformer_lm_forward.13} parent=1 // pred_fallthru
      _
    %332 = vsyncpa [#allocation3], 1

</llo_original>
